<compile_context>
chip_gen: v7x
topology: tpu7x:2x2x1
jax: 0.10.0
libtpu: 0.0.40
codegen_flags: <defaults>
</compile_context>

<pallas_src>
import numpy as np
import jax
import jax.numpy as jnp
from jax import lax
from jax.experimental import pallas as pl
from jax.experimental.pallas import tpu as pltpu


_DEFAULT_MIN_PALLAS_BYTES = 512 * 1024   # below this, plain XLA beats the pallas_call fixed cost
_MAX_PALLAS_DIM = 256                    # largest 2^k gate kept VMEM-resident in the kernel


# ------------------------------------------------------------------ helpers
def _round_down(x, m):
    return (x // m) * m


def _tpu_vmem_capacity_bytes():
    try:
        return int(pltpu.get_tpu_info().vmem_capacity_bytes)
    except Exception:
        return 64 * 1024 * 1024          # conservative (v7x-sized) default


def _vmem_limits():
    """(scoped vmem limit, tile budget) derived from the chip's VMEM capacity."""
    cap = _tpu_vmem_capacity_bytes()
    if cap <= 64 * 1024 * 1024:          # v7x-class TensorCore: 64 MiB VMEM
        limit = 32 * 1024 * 1024
    else:                                # v5e / v6e: 128 MiB VMEM
        limit = 48 * 1024 * 1024
    return limit, limit // 2


def _pick_tiles(A, D, R, tile_budget):
    """Pick (a_group, r_tile) for x of logical shape (A, D, R)."""
    MAX_LANES = 32768                    # >= 2-4 MiB moved per grid step even for small D
    if R <= 128:
        r_tile = R                       # full (possibly <128) lane dim: single masked tile
    else:
        per_lane = 4 * 2 * 4 * D         # xr/xi/yr/yi, double-buffered, f32 bytes per lane
        r_tile = _round_down(max(tile_budget // per_lane, 128), 128)
        r_tile = max(128, min(r_tile, MAX_LANES, _round_down(R, 128)))

    # Fold A-rows into the sublane axis (block-diagonal gate = kron(I_a, M)) so each
    # grid step moves enough bytes to amortize the per-step overhead; cap the fused
    # contraction depth at 128 so the f32 MXU work stays well under the HBM time.
    a_group = 1
    target_elems = 1 << 17               # 512 KiB of f32 per component per step
    while (a_group * 2 <= A
           and a_group * 2 * D <= 128
           and a_group * D * r_tile < target_elems
           and 32 * (a_group * 2 * D) * r_tile <= tile_budget):
        a_group *= 2

    # v7x megacore: make sure the parallel grid has >= 2 steps so both TensorCores
    # get work (harmless extra step on single-core v5e/v6e).
    if (A // a_group) * pl.cdiv(R, r_tile) < 2 and R >= 256:
        r_tile = max(128, _round_down(pl.cdiv(R, 2), 128))
    return a_group, r_tile


# ------------------------------------------------------------------ Pallas kernel
def _complex_gate_kernel(mr_ref, mi_ref, xr_ref, xi_ref, yr_ref, yi_ref):
    # One (dblk, r_tile) tile per grid step.  Mr/Mi stay VMEM-resident (constant
    # block index); the X tiles are read from VMEM once and reused by all four
    # real matmuls -- no concatenated M2/X2 staging buffers, no extra HBM passes.
    mr = mr_ref[...]
    mi = mi_ref[...]
    xr = xr_ref[...]
    xi = xi_ref[...]

    # TODO(synk): request precision=lax.Precision.HIGHEST once Mosaic's dot_general
    # lowering is guaranteed to accept it; the default already matched the XLA
    # reference to <1e-4 here and the kernel is HBM-bound either way.
    def mm(a, b):
        return jnp.dot(a, b, preferred_element_type=jnp.float32)

    yr_ref[...] = mm(mr, xr) - mm(mi, xi)
    yi_ref[...] = mm(mi, xr) + mm(mr, xi)


def _pallas_apply_gate(m, x):
    """y[a, :, r] = m @ x[a, :, r] for complex m (D, D) and x (A, D, R); f32 MXU compute."""
    A, D, R = x.shape
    vmem_limit, tile_budget = _vmem_limits()
    a_group, r_tile = _pick_tiles(A, D, R, tile_budget)

    dblk = a_group * D
    G = A // a_group                      # A is a power of two, a_group divides it
    x = x.reshape(G, dblk, R)             # free contiguous reshape (adjacent axes)

    # Real/imag parts of the (tiny) gate, block-diagonal over the fused A-group.
    mr = jnp.real(m).astype(jnp.float32)
    mi = jnp.imag(m).astype(jnp.float32)
    if a_group > 1:
        eye = jnp.eye(a_group, dtype=jnp.float32)
        mr = jnp.kron(eye, mr)
        mi = jnp.kron(eye, mi)

    # TODO(synk): a zero-copy complex<->interleaved-f32 bitcast view would remove
    # these extraction passes and the complex() recombine entirely.
    xr = jnp.real(x).astype(jnp.float32)
    xi = jnp.imag(x).astype(jnp.float32)

    # Lane grid over the unpadded R: the last tile may overhang; Pallas masks its
    # store, and each garbage input column only feeds its own masked output column.
    grid = (G, pl.cdiv(R, r_tile))
    mat_spec = pl.BlockSpec((dblk, dblk), lambda g, r: (0, 0))          # VMEM-resident
    x_spec = pl.BlockSpec((None, dblk, r_tile), lambda g, r: (g, 0, r))  # pipelined tiles
    y_spec = pl.BlockSpec((None, dblk, r_tile), lambda g, r: (g, 0, r))

    cost = pl.CostEstimate(
        flops=8 * G * dblk * dblk * R,
        transcendentals=0,
        bytes_accessed=4 * (2 * dblk * dblk + 4 * G * dblk * R),
    )

    yr, yi = pl.pallas_call(
        _complex_gate_kernel,
        out_shape=(jax.ShapeDtypeStruct((G, dblk, R), jnp.float32),
                   jax.ShapeDtypeStruct((G, dblk, R), jnp.float32)),
        grid=grid,
        in_specs=[mat_spec, mat_spec, x_spec, x_spec],
        out_specs=(y_spec, y_spec),
        compiler_params=pltpu.CompilerParams(
            dimension_semantics=("parallel", "parallel"),
            vmem_limit_bytes=vmem_limit,
        ),
        cost_estimate=cost,
    )(mr, mi, xr, xi)

    return lax.complex(yr, yi).reshape(A, D, R)


# ------------------------------------------------------------------ gate application
def _apply_gate_xla(state, m, qubits, n_qubits):
    """Plain XLA path for tiny problems (pallas_call fixed cost would dominate)."""
    k = len(qubits)
    mt = m.reshape((2,) * (2 * k))
    out = jnp.tensordot(mt, state, axes=(list(range(k, 2 * k)), list(qubits)))
    cur = list(qubits) + [q for q in range(n_qubits) if q not in qubits] + [n_qubits]
    inv = [0] * (n_qubits + 1)
    for i, p in enumerate(cur):
        inv[p] = i
    return jnp.transpose(out, tuple(inv)).astype(state.dtype)


def _apply_batch_gate(state, matrices, qubits, n_qubits, batch_size,
                      min_pallas_bytes=_DEFAULT_MIN_PALLAS_BYTES):
    qubits = tuple(int(q) for q in qubits)
    k = len(qubits)
    D = 2 ** k

    # MatrixBlock always supplies an unbatched matrix (mat batch dim == 1).
    # TODO(synk): batched gate matrices (mat batch == state batch) are not supported here.
    m = matrices[:, :, 0]

    # Absorb the support ordering into the (tiny) gate matrix instead of permuting
    # the (huge) state: M' acting on sorted(qubits) == M acting on qubits.
    sorted_q = tuple(sorted(qubits))
    if sorted_q != qubits:
        pos = tuple(qubits.index(q) for q in sorted_q)
        axes = pos + tuple(k + p for p in pos)
        m = m.reshape((2,) * (2 * k)).transpose(axes).reshape(D, D)

    # Small problems / oversized gates: plain XLA.
    state_bytes = state.size * state.dtype.itemsize
    if state_bytes < min_pallas_bytes or D > _MAX_PALLAS_DIM:
        return _apply_gate_xla(state, m, sorted_q, n_qubits)

    q0 = sorted_q[0]
    contiguous = sorted_q == tuple(range(q0, q0 + k))
    A = 2 ** q0
    Rb = (2 ** (n_qubits - q0 - k)) * batch_size

    # TODO(synk): compute runs in f32 on the MXU; complex128 inputs lose precision.
    if contiguous and (A == 1 or Rb >= 128):
        # Row-major layout is already (A, D, Rb): no state transpose at all.
        x = state.reshape(A, D, Rb)
        y = _pallas_apply_gate(m, x).astype(state.dtype)
        return y.reshape(state.shape)

    # Non-contiguous support: one forward/backward transpose of the state (with the
    # support already sorted so the trailing axes are disturbed as little as possible).
    other = tuple(q for q in range(n_qubits) if q not in sorted_q)
    perm = sorted_q + other + (n_qubits,)
    xt = jnp.transpose(state, perm).reshape(1, D, -1)
    y = _pallas_apply_gate(m, xt).astype(state.dtype)
    y = y.reshape((2,) * n_qubits + (batch_size,))
    inv = [0] * (n_qubits + 1)
    for i, p in enumerate(perm):
        inv[p] = i
    return jnp.transpose(y, tuple(inv))


# ------------------------------------------------------------------ module equivalent
class PyQMatrixBlockPallas:
    """JAX/Pallas equivalent of qadence's PyQMatrixBlock."""

    def __init__(self, matrix: jnp.ndarray, qubit_support, n_qubits: int):
        self.n_qubits = int(n_qubits)
        self.qubits = tuple(int(q) for q in qubit_support)
        # register_buffer('mat', block.matrix.unsqueeze(2))
        self.mat = jnp.asarray(matrix)[:, :, None]   # (2^k, 2^k, 1), complex
        self._apply_jit = jax.jit(
            lambda mat, state: _apply_batch_gate(
                state, mat, self.qubits, self.n_qubits, state.shape[-1]))

    def forward(self, state: jnp.ndarray, _=None) -> jnp.ndarray:
        return self._apply_jit(self.mat, state)

    def apply(self, matrices: jnp.ndarray, state: jnp.ndarray) -> jnp.ndarray:
        batch_size = state.shape[-1]
        return _apply_batch_gate(state, matrices, self.qubits, self.n_qubits, batch_size)


# ------------------------------------------------------------------ pure-JAX reference
def _reference_apply(state, matrices, qubits, n_qubits):
    """Independent reference using the ORIGINAL (unsorted) support order."""
    k = len(qubits)
    m = matrices[:, :, 0].reshape((2,) * (2 * k))
    out = jnp.tensordot(m, state, axes=(list(range(k, 2 * k)), list(qubits)))
    cur = list(qubits) + [q for q in range(n_qubits) if q not in qubits] + [n_qubits]
    inv = [0] * (n_qubits + 1)
    for i, p in enumerate(cur):
        inv[p] = i
    return jnp.transpose(out, tuple(inv))


# ------------------------------------------------------------------ tests
def _run_case(seed, n_qubits, qubit_support, batch):
    key = jax.random.PRNGKey(seed)
    k_mr, k_mi, k_sr, k_si = jax.random.split(key, 4)
    D = 2 ** len(qubit_support)
    matrix = (jax.random.normal(k_mr, (D, D), dtype=jnp.float32)
              + 1j * jax.random.normal(k_mi, (D, D), dtype=jnp.float32)).astype(jnp.complex64)
    state_shape = (2,) * n_qubits + (batch,)
    state = (jax.random.normal(k_sr, state_shape, dtype=jnp.float32)
             + 1j * jax.random.normal(k_si, state_shape, dtype=jnp.float32)).astype(jnp.complex64)

    block = PyQMatrixBlockPallas(matrix, qubit_support, n_qubits)
    out = jax.block_until_ready(block.forward(state))
    ref = jax.block_until_ready(_reference_apply(state, block.mat, block.qubits, n_qubits))

    assert out.shape == state.shape and out.dtype == state.dtype
    np.testing.assert_allclose(np.asarray(out), np.asarray(ref), rtol=1e-4, atol=1e-4)


if __name__ == "__main__":
    # Unsorted but (after sorting) contiguous support away from qubit 0:
    # matrix bit-permutation + A-group folding path, no state transpose.
    _run_case(seed=0, n_qubits=13, qubit_support=(4, 2, 3), batch=16)
    # Prefix support: straight (D, R) slab, megacore split of the lane grid.
    _run_case(seed=0, n_qubits=13, qubit_support=(0, 1, 2), batch=16)
    # Non-contiguous support: sorted-support transpose path.
    _run_case(seed=0, n_qubits=13, qubit_support=(1, 7), batch=16)
    # Ragged lane axis (R = 2080): masked last tile, no pad/slice.
    _run_case(seed=0, n_qubits=10, qubit_support=(0, 1, 2, 3, 4), batch=65)
    # Tiny problem: XLA small-problem dispatch.
    _run_case(seed=0, n_qubits=5, qubit_support=(2,), batch=3)
    print("KERNEL_OK")
</pallas_src>

<mosaic_0001>
module attributes {stable_mosaic.version = 11 : i64} {
  func.func @_complex_gate_kernel(%arg0: i32, %arg1: i32, %arg2: memref<32x32xf32, #tpu.memory_space<vmem>>, %arg3: memref<32x32xf32, #tpu.memory_space<vmem>>, %arg4: memref<1x32x2048xf32, #tpu.memory_space<vmem>>, %arg5: memref<1x32x2048xf32, #tpu.memory_space<vmem>>, %arg6: memref<1x32x2048xf32, #tpu.memory_space<vmem>>, %arg7: memref<1x32x2048xf32, #tpu.memory_space<vmem>>) attributes {dimension_semantics = [#tpu.dimension_semantics<parallel>, #tpu.dimension_semantics<parallel>], iteration_bounds = array<i64: 1, 2>, scalar_prefetch = 0 : i64, scratch_operands = 0 : i64, tpu.core_type = #tpu.core_type<tc>, window_params = [{pipeline_mode = #tpu.pipeline_mode<synchronous>, transform_indices = @transform_0, window_bounds = array<i64: 32, 32>}, {pipeline_mode = #tpu.pipeline_mode<synchronous>, transform_indices = @transform_1, window_bounds = array<i64: 32, 32>}, {transform_indices = @transform_2, window_bounds = array<i64: 1, 32, 2048>}, {transform_indices = @transform_3, window_bounds = array<i64: 1, 32, 2048>}, {transform_indices = @transform_4, window_bounds = array<i64: 1, 32, 2048>}, {transform_indices = @transform_5, window_bounds = array<i64: 1, 32, 2048>}]} {
    %c0 = arith.constant 0 : index
    %c0_0 = arith.constant 0 : index
    %0 = vector.load %arg2[%c0, %c0_0] : memref<32x32xf32, #tpu.memory_space<vmem>>, vector<32x32xf32>
    %c0_1 = arith.constant 0 : index
    %c0_2 = arith.constant 0 : index
    %1 = vector.load %arg3[%c0_1, %c0_2] : memref<32x32xf32, #tpu.memory_space<vmem>>, vector<32x32xf32>
    %c0_3 = arith.constant 0 : index
    %c0_4 = arith.constant 0 : index
    %c0_5 = arith.constant 0 : index
    %2 = vector.load %arg4[%c0_3, %c0_4, %c0_5] : memref<1x32x2048xf32, #tpu.memory_space<vmem>>, vector<1x32x2048xf32>
    %3 = vector.shape_cast %2 : vector<1x32x2048xf32> to vector<32x2048xf32>
    %c0_6 = arith.constant 0 : index
    %c0_7 = arith.constant 0 : index
    %c0_8 = arith.constant 0 : index
    %4 = vector.load %arg5[%c0_6, %c0_7, %c0_8] : memref<1x32x2048xf32, #tpu.memory_space<vmem>>, vector<1x32x2048xf32>
    %5 = vector.shape_cast %4 : vector<1x32x2048xf32> to vector<32x2048xf32>
    %cst = arith.constant dense<0.000000e+00> : vector<32x2048xf32>
    %6 = tpu.matmul %0, %3, %cst {dimension_numbers = #tpu.dot_dimension_numbers<[1], [0], [0], [1], [0, 0, 1, 1], [], []>} : vector<32x32xf32>, vector<32x2048xf32>, vector<32x2048xf32> -> vector<32x2048xf32>
    %cst_9 = arith.constant dense<0.000000e+00> : vector<32x2048xf32>
    %7 = tpu.matmul %1, %5, %cst_9 {dimension_numbers = #tpu.dot_dimension_numbers<[1], [0], [0], [1], [0, 0, 1, 1], [], []>} : vector<32x32xf32>, vector<32x2048xf32>, vector<32x2048xf32> -> vector<32x2048xf32>
    %8 = arith.subf %6, %7 : vector<32x2048xf32>
    %c0_10 = arith.constant 0 : index
    %c0_11 = arith.constant 0 : index
    %c0_12 = arith.constant 0 : index
    %9 = vector.load %arg6[%c0_10, %c0_11, %c0_12] : memref<1x32x2048xf32, #tpu.memory_space<vmem>>, vector<1x32x2048xf32>
    %10 = vector.shape_cast %9 : vector<1x32x2048xf32> to vector<32x2048xf32>
    %11 = vector.shape_cast %8 : vector<32x2048xf32> to vector<1x32x2048xf32>
    tpu.vector_store %arg6[%c0_10, %c0_11, %c0_12], %11 {strides = array<i32>} : memref<1x32x2048xf32, #tpu.memory_space<vmem>>, vector<1x32x2048xf32>,
    %cst_13 = arith.constant dense<0.000000e+00> : vector<32x2048xf32>
    %12 = tpu.matmul %1, %3, %cst_13 {dimension_numbers = #tpu.dot_dimension_numbers<[1], [0], [0], [1], [0, 0, 1, 1], [], []>} : vector<32x32xf32>, vector<32x2048xf32>, vector<32x2048xf32> -> vector<32x2048xf32>
    %cst_14 = arith.constant dense<0.000000e+00> : vector<32x2048xf32>
    %13 = tpu.matmul %0, %5, %cst_14 {dimension_numbers = #tpu.dot_dimension_numbers<[1], [0], [0], [1], [0, 0, 1, 1], [], []>} : vector<32x32xf32>, vector<32x2048xf32>, vector<32x2048xf32> -> vector<32x2048xf32>
    %14 = arith.addf %12, %13 : vector<32x2048xf32>
    %c0_15 = arith.constant 0 : index
    %c0_16 = arith.constant 0 : index
    %c0_17 = arith.constant 0 : index
    %15 = vector.load %arg7[%c0_15, %c0_16, %c0_17] : memref<1x32x2048xf32, #tpu.memory_space<vmem>>, vector<1x32x2048xf32>
    %16 = vector.shape_cast %15 : vector<1x32x2048xf32> to vector<32x2048xf32>
    %17 = vector.shape_cast %14 : vector<32x2048xf32> to vector<1x32x2048xf32>
    tpu.vector_store %arg7[%c0_15, %c0_16, %c0_17], %17 {strides = array<i32>} : memref<1x32x2048xf32, #tpu.memory_space<vmem>>, vector<1x32x2048xf32>,
    return
  }
  func.func @transform_0(%arg0: i32, %arg1: i32) -> (i32, i32) {
    %c0_i32 = arith.constant 0 : i32
    %c0_i32_0 = arith.constant 0 : i32
    %c0_i32_1 = arith.constant 0 : i32
    return %c0_i32, %c0_i32_0 : i32, i32
  }
  func.func @transform_1(%arg0: i32, %arg1: i32) -> (i32, i32) {
    %c0_i32 = arith.constant 0 : i32
    %c0_i32_0 = arith.constant 0 : i32
    %c0_i32_1 = arith.constant 0 : i32
    return %c0_i32, %c0_i32_0 : i32, i32
  }
  func.func @transform_2(%arg0: i32, %arg1: i32) -> (i32, i32, i32) {
    %c0_i32 = arith.constant 0 : i32
    %c0_i32_0 = arith.constant 0 : i32
    return %arg0, %c0_i32, %arg1 : i32, i32, i32
  }
  func.func @transform_3(%arg0: i32, %arg1: i32) -> (i32, i32, i32) {
    %c0_i32 = arith.constant 0 : i32
    %c0_i32_0 = arith.constant 0 : i32
    return %arg0, %c0_i32, %arg1 : i32, i32, i32
  }
  func.func @transform_4(%arg0: i32, %arg1: i32) -> (i32, i32, i32) {
    %c0_i32 = arith.constant 0 : i32
    %c0_i32_0 = arith.constant 0 : i32
    return %arg0, %c0_i32, %arg1 : i32, i32, i32
  }
  func.func @transform_5(%arg0: i32, %arg1: i32) -> (i32, i32, i32) {
    %c0_i32 = arith.constant 0 : i32
    %c0_i32_0 = arith.constant 0 : i32
    return %arg0, %c0_i32, %arg1 : i32, i32, i32
  }
}

</mosaic_0001>

<llo_original>
// kernel: custom-call.1
$region0: #{custom-call.1}
  %s0 = inlined_call_operand.hbm [shape: c64[8,8,1], index: 0, kind: input, shape index: {}]
  %s1 = inlined_call_operand.vmem [shape: f32[8,8,1], index: 1, kind: output, shape index: {}]
  %s2 = scalar_lea.hbm %s0, 128
  $region1: #{custom-call.1} parent=0
    #allocation0 [shape = 's32[1]{0}', space=sflag, size = 0x4, scoped, tag = 'scoped memory for custom-call.1']
    %3 = vsyncpa [#allocation0], 0
    %s4 = sshll.u32 %s1, 4
    %s5 = int_to_ptr.vmem [resolvable:$true] %s4
    %7 = dma.hbm_to_vmem [thread:$0]  %s2, 128, %s5, [#allocation0]
    %8 = dma.done [#allocation0], 128
    %9 = vsyncpa [#allocation0], 1

// kernel: custom-call
$region0: #{custom-call}
  %s0 = inlined_call_operand.hbm [shape: c64[8,8,1], index: 0, kind: input, shape index: {}]
  %s1 = inlined_call_operand.vmem [shape: f32[8,8,1], index: 1, kind: output, shape index: {}]
  $region1: #{custom-call} parent=0
    #allocation0 [shape = 's32[1]{0}', space=sflag, size = 0x4, scoped, tag = 'scoped memory for custom-call']
    %2 = vsyncpa [#allocation0], 0
    %s3 = sshll.u32 %s1, 4
    %s4 = int_to_ptr.vmem [resolvable:$true] %s3
    %6 = dma.hbm_to_vmem [thread:$0]  %s0, 128, %s4, [#allocation0]
    %7 = dma.done [#allocation0], 128
    %8 = vsyncpa [#allocation0], 1

// kernel: squeeze.1
$region0: #{squeeze.1}
  %s0 = inlined_call_operand.vmem [shape: f32[8,8], index: 0, kind: input, shape index: {}]
  %s1 = inlined_call_operand.vmem [shape: f32[2,2,2,2,2,2], index: 1, kind: output, shape index: {}]
  $region1: #{squeeze.1} parent=0
    #allocation0 [shape = 'u8[65536]{0}', space=vmem, size = 0x10000, scoped, tag = 'scoped mem for output reshape']
    %v2 = vld [vmem:[%s0] sm:$0xff]
    %vm3 = vcmask 15360
    %4 = vst.msk [vmem:[#allocation0] ss:$16 sm:$0x3] %vm3, %v2
    %5 = vst.msk [vmem:[#allocation0] ss:$16 sm:$0xc] %vm3, %v2
    %6 = vst.msk [vmem:[#allocation0] ss:$16 sm:$0x30] %vm3, %v2
    %7 = vst.msk [vmem:[#allocation0] ss:$16 sm:$0xc0] %vm3, %v2
    %v8 = vld [vmem:[%s0] sm:$0xff]
    %9 = vrot.lane.b32.xlu0 %v8, 126
    %v10 = vpop.permute.xlu0 %9
    %vm11 = vcmask 15360
    %s12 = scalar_lea.vmem [#allocation0], 1
    %13 = vst.msk [vmem:[%s12] ss:$16 sm:$0x3] %vm11, %v10
    %s14 = scalar_lea.vmem [#allocation0], 1
    %15 = vst.msk [vmem:[%s14] ss:$16 sm:$0xc] %vm11, %v10
    %s16 = scalar_lea.vmem [#allocation0], 1
    %17 = vst.msk [vmem:[%s16] ss:$16 sm:$0x30] %vm11, %v10
    %s18 = scalar_lea.vmem [#allocation0], 1
    %19 = vst.msk [vmem:[%s18] ss:$16 sm:$0xc0] %vm11, %v10
    %v20 = vld [vmem:[%s0] sm:$0xff]
    %21 = vrot.lane.b32.xlu0 %v20, 124
    %v22 = vpop.permute.xlu0 %21
    %vm23 = vcmask 15360
    %s24 = scalar_lea.vmem [#allocation0], 8
    %25 = vst.msk [vmem:[%s24] ss:$16 sm:$0x3] %vm23, %v22
    %s26 = scalar_lea.vmem [#allocation0], 8
    %27 = vst.msk [vmem:[%s26] ss:$16 sm:$0xc] %vm23, %v22
    %s28 = scalar_lea.vmem [#allocation0], 8
    %29 = vst.msk [vmem:[%s28] ss:$16 sm:$0x30] %vm23, %v22
    %s30 = scalar_lea.vmem [#allocation0], 8
    %31 = vst.msk [vmem:[%s30] ss:$16 sm:$0xc0] %vm23, %v22
    %v32 = vld [vmem:[%s0] sm:$0xff]
    %33 = vrot.lane.b32.xlu0 %v32, 122
    %v34 = vpop.permute.xlu0 %33
    %vm35 = vcmask 15360
    %s36 = scalar_lea.vmem [#allocation0], 9
    %37 = vst.msk [vmem:[%s36] ss:$16 sm:$0x3] %vm35, %v34
    %s38 = scalar_lea.vmem [#allocation0], 9
    %39 = vst.msk [vmem:[%s38] ss:$16 sm:$0xc] %vm35, %v34
    %s40 = scalar_lea.vmem [#allocation0], 9
    %41 = vst.msk [vmem:[%s40] ss:$16 sm:$0x30] %vm35, %v34
    %s42 = scalar_lea.vmem [#allocation0], 9
    %43 = vst.msk [vmem:[%s42] ss:$16 sm:$0xc0] %vm35, %v34
    %s45 = sshllo.u32 0, 2
    %v47 = vld [vmem:[#allocation0] sm:%s45]
    %s48 = sshllo.u32 0, 2
    %49 = vst [vmem:[%s1] sm:%s48] %v47
    %s50 = scalar_lea.vmem [#allocation0], 8
    %v51 = vld [vmem:[%s50] sm:%s45]
    %s52 = sshllo.u32 0, 2
    %s53 = scalar_lea.vmem %s1, 2
    %54 = vst [vmem:[%s53] sm:%s52] %v51
    %s55 = scalar_lea.vmem [#allocation0], 16
    %v56 = vld [vmem:[%s55] sm:%s45]
    %s57 = sshllo.u32 0, 2
    %s58 = smul.addr 2, 2
    %s59 = scalar_lea.vmem %s1, %s58
    %60 = vst [vmem:[%s59] sm:%s57] %v56
    %s61 = scalar_lea.vmem [#allocation0], 24
    %v62 = vld [vmem:[%s61] sm:%s45]
    %s63 = sshllo.u32 0, 2
    %s64 = smul.addr 2, 3
    %s65 = scalar_lea.vmem %s1, %s64
    %66 = vst [vmem:[%s65] sm:%s63] %v62
    %s67 = scalar_lea.vmem [#allocation0], 32
    %v68 = vld [vmem:[%s67] sm:%s45]
    %s69 = sshllo.u32 0, 2
    %s70 = smul.addr 2, 4
    %s71 = scalar_lea.vmem %s1, %s70
    %72 = vst [vmem:[%s71] sm:%s69] %v68
    %s73 = scalar_lea.vmem [#allocation0], 40
    %v74 = vld [vmem:[%s73] sm:%s45]
    %s75 = sshllo.u32 0, 2
    %s76 = smul.addr 2, 5
    %s77 = scalar_lea.vmem %s1, %s76
    %78 = vst [vmem:[%s77] sm:%s75] %v74
    %s79 = scalar_lea.vmem [#allocation0], 48
    %v80 = vld [vmem:[%s79] sm:%s45]
    %s81 = sshllo.u32 0, 2
    %s82 = smul.addr 2, 6
    %s83 = scalar_lea.vmem %s1, %s82
    %84 = vst [vmem:[%s83] sm:%s81] %v80
    %s85 = scalar_lea.vmem [#allocation0], 56
    %v86 = vld [vmem:[%s85] sm:%s45]
    %s87 = sshllo.u32 0, 2
    %s88 = smul.addr 2, 7
    %s89 = scalar_lea.vmem %s1, %s88
    %90 = vst [vmem:[%s89] sm:%s87] %v86
    %s91 = scalar_lea.vmem [#allocation0], 64
    %v92 = vld [vmem:[%s91] sm:%s45]
    %s93 = sshllo.u32 0, 2
    %s94 = smul.addr 2, 8
    %s95 = scalar_lea.vmem %s1, %s94
    %96 = vst [vmem:[%s95] sm:%s93] %v92
    %s97 = scalar_lea.vmem [#allocation0], 72
    %v98 = vld [vmem:[%s97] sm:%s45]
    %s99 = sshllo.u32 0, 2
    %s100 = smul.addr 2, 9
    %s101 = scalar_lea.vmem %s1, %s100
    %102 = vst [vmem:[%s101] sm:%s99] %v98
    %s103 = scalar_lea.vmem [#allocation0], 80
    %v104 = vld [vmem:[%s103] sm:%s45]
    %s105 = sshllo.u32 0, 2
    %s106 = smul.addr 2, 10
    %s107 = scalar_lea.vmem %s1, %s106
    %108 = vst [vmem:[%s107] sm:%s105] %v104
    %s109 = scalar_lea.vmem [#allocation0], 88
    %v110 = vld [vmem:[%s109] sm:%s45]
    %s111 = sshllo.u32 0, 2
    %s112 = smul.addr 2, 11
    %s113 = scalar_lea.vmem %s1, %s112
    %114 = vst [vmem:[%s113] sm:%s111] %v110
    %s115 = scalar_lea.vmem [#allocation0], 96
    %v116 = vld [vmem:[%s115] sm:%s45]
    %s117 = sshllo.u32 0, 2
    %s118 = smul.addr 2, 12
    %s119 = scalar_lea.vmem %s1, %s118
    %120 = vst [vmem:[%s119] sm:%s117] %v116
    %s121 = scalar_lea.vmem [#allocation0], 104
    %v122 = vld [vmem:[%s121] sm:%s45]
    %s123 = sshllo.u32 0, 2
    %s124 = smul.addr 2, 13
    %s125 = scalar_lea.vmem %s1, %s124
    %126 = vst [vmem:[%s125] sm:%s123] %v122
    %s127 = scalar_lea.vmem [#allocation0], 112
    %v128 = vld [vmem:[%s127] sm:%s45]
    %s129 = sshllo.u32 0, 2
    %s130 = smul.addr 2, 14
    %s131 = scalar_lea.vmem %s1, %s130
    %132 = vst [vmem:[%s131] sm:%s129] %v128
    %s133 = scalar_lea.vmem [#allocation0], 120
    %v134 = vld [vmem:[%s133] sm:%s45]
    %s135 = sshllo.u32 0, 2
    %s136 = smul.addr 2, 15
    %s137 = scalar_lea.vmem %s1, %s136
    %138 = vst [vmem:[%s137] sm:%s135] %v134

// kernel: mul.4
$region0: #{mul.4}
  %s0 = inlined_call_operand.vmem [shape: f32[2,2,2,2,2,2], index: 0, kind: input, shape index: {}]
  %s1 = inlined_call_operand.vmem [shape: f32[8,8], index: 1, kind: output, shape index: {}]
  $region1: #{mul.4} parent=0
    #allocation0 [shape = 'u8[65536]{0}', space=vmem, size = 0x10000, scoped, tag = 'scoped mem for input reshape']
    %s3 = sshllo.u32 0, 2
    %s4 = smul.addr 2, 15
    %s5 = scalar_lea.vmem %s0, %s4
    %v6 = vld [vmem:[%s5] sm:%s3]
    %s7 = scalar_lea.vmem [#allocation0], 120
    %8 = vst [vmem:[%s7] sm:%s3] %v6
    %s9 = smul.addr 2, 14
    %s10 = scalar_lea.vmem %s0, %s9
    %v11 = vld [vmem:[%s10] sm:%s3]
    %s12 = scalar_lea.vmem [#allocation0], 112
    %13 = vst [vmem:[%s12] sm:%s3] %v11
    %s14 = smul.addr 2, 13
    %s15 = scalar_lea.vmem %s0, %s14
    %v16 = vld [vmem:[%s15] sm:%s3]
    %s17 = scalar_lea.vmem [#allocation0], 104
    %18 = vst [vmem:[%s17] sm:%s3] %v16
    %s19 = smul.addr 2, 12
    %s20 = scalar_lea.vmem %s0, %s19
    %v21 = vld [vmem:[%s20] sm:%s3]
    %s22 = scalar_lea.vmem [#allocation0], 96
    %23 = vst [vmem:[%s22] sm:%s3] %v21
    %s24 = smul.addr 2, 11
    %s25 = scalar_lea.vmem %s0, %s24
    %v26 = vld [vmem:[%s25] sm:%s3]
    %s27 = scalar_lea.vmem [#allocation0], 88
    %28 = vst [vmem:[%s27] sm:%s3] %v26
    %s29 = smul.addr 2, 10
    %s30 = scalar_lea.vmem %s0, %s29
    %v31 = vld [vmem:[%s30] sm:%s3]
    %s32 = scalar_lea.vmem [#allocation0], 80
    %33 = vst [vmem:[%s32] sm:%s3] %v31
    %s34 = smul.addr 2, 9
    %s35 = scalar_lea.vmem %s0, %s34
    %v36 = vld [vmem:[%s35] sm:%s3]
    %s37 = scalar_lea.vmem [#allocation0], 72
    %38 = vst [vmem:[%s37] sm:%s3] %v36
    %s39 = smul.addr 2, 8
    %s40 = scalar_lea.vmem %s0, %s39
    %v41 = vld [vmem:[%s40] sm:%s3]
    %s42 = scalar_lea.vmem [#allocation0], 64
    %43 = vst [vmem:[%s42] sm:%s3] %v41
    %s44 = smul.addr 2, 7
    %s45 = scalar_lea.vmem %s0, %s44
    %v46 = vld [vmem:[%s45] sm:%s3]
    %s47 = scalar_lea.vmem [#allocation0], 56
    %48 = vst [vmem:[%s47] sm:%s3] %v46
    %s49 = smul.addr 2, 6
    %s50 = scalar_lea.vmem %s0, %s49
    %v51 = vld [vmem:[%s50] sm:%s3]
    %s52 = scalar_lea.vmem [#allocation0], 48
    %53 = vst [vmem:[%s52] sm:%s3] %v51
    %s54 = smul.addr 2, 5
    %s55 = scalar_lea.vmem %s0, %s54
    %v56 = vld [vmem:[%s55] sm:%s3]
    %s57 = scalar_lea.vmem [#allocation0], 40
    %58 = vst [vmem:[%s57] sm:%s3] %v56
    %s59 = smul.addr 2, 4
    %s60 = scalar_lea.vmem %s0, %s59
    %v61 = vld [vmem:[%s60] sm:%s3]
    %s62 = scalar_lea.vmem [#allocation0], 32
    %63 = vst [vmem:[%s62] sm:%s3] %v61
    %s64 = smul.addr 2, 3
    %s65 = scalar_lea.vmem %s0, %s64
    %v66 = vld [vmem:[%s65] sm:%s3]
    %s67 = scalar_lea.vmem [#allocation0], 24
    %68 = vst [vmem:[%s67] sm:%s3] %v66
    %s69 = smul.addr 2, 2
    %s70 = scalar_lea.vmem %s0, %s69
    %v71 = vld [vmem:[%s70] sm:%s3]
    %s72 = scalar_lea.vmem [#allocation0], 16
    %73 = vst [vmem:[%s72] sm:%s3] %v71
    %s74 = scalar_lea.vmem %s0, 2
    %v75 = vld [vmem:[%s74] sm:%s3]
    %s76 = scalar_lea.vmem [#allocation0], 8
    %77 = vst [vmem:[%s76] sm:%s3] %v75
    %v78 = vld [vmem:[%s0] sm:%s3]
    %79 = vst [vmem:[#allocation0] sm:%s3] %v78
    %s80 = smov 3
    %v81 = vld [vmem:[#allocation0] ss:$16 sm:%s80]
    %s82 = smov 12
    %v83 = vld [vmem:[#allocation0] ss:$16 sm:%s82]
    %vm84 = vcmask 1043458
    %v85 = vsel %vm84, %v83, %v81
    %s86 = smov 48
    %v87 = vld [vmem:[#allocation0] ss:$16 sm:%s86]
    %vm88 = vcmask 1045508
    %v89 = vsel %vm88, %v87, %v85
    %s90 = smov 192
    %v91 = vld [vmem:[#allocation0] ss:$16 sm:%s90]
    %vm92 = vcmask 1047558
    %v93 = vsel %vm92, %v91, %v89
    %vm94 = vcmask 15360
    %95 = vst.msk [vmem:[%s1] sm:$0xff] %vm94, %v93
    %s96 = scalar_lea.vmem [#allocation0], 9
    %s97 = smov 3
    %v98 = vld [vmem:[%s96] ss:$16 sm:%s97]
    %s99 = scalar_lea.vmem [#allocation0], 9
    %s100 = smov 12
    %v101 = vld [vmem:[%s99] ss:$16 sm:%s100]
    %vm102 = vcmask 1043458
    %v103 = vsel %vm102, %v101, %v98
    %s104 = scalar_lea.vmem [#allocation0], 9
    %s105 = smov 48
    %v106 = vld [vmem:[%s104] ss:$16 sm:%s105]
    %vm107 = vcmask 1045508
    %v108 = vsel %vm107, %v106, %v103
    %s109 = scalar_lea.vmem [#allocation0], 9
    %s110 = smov 192
    %v111 = vld [vmem:[%s109] ss:$16 sm:%s110]
    %vm112 = vcmask 1047558
    %v113 = vsel %vm112, %v111, %v108
    %114 = vrot.lane.b32.xlu0 %v113, 6
    %v115 = vpop.permute.xlu0 %114
    %vm116 = vcmask 64560
    %117 = vst.msk [vmem:[%s1] sm:$0xff] %vm116, %v115
    %s118 = scalar_lea.vmem [#allocation0], 8
    %s119 = smov 3
    %v120 = vld [vmem:[%s118] ss:$16 sm:%s119]
    %s121 = scalar_lea.vmem [#allocation0], 8
    %s122 = smov 12
    %v123 = vld [vmem:[%s121] ss:$16 sm:%s122]
    %vm124 = vcmask 1043458
    %v125 = vsel %vm124, %v123, %v120
    %s126 = scalar_lea.vmem [#allocation0], 8
    %s127 = smov 48
    %v128 = vld [vmem:[%s126] ss:$16 sm:%s127]
    %vm129 = vcmask 1045508
    %v130 = vsel %vm129, %v128, %v125
    %s131 = scalar_lea.vmem [#allocation0], 8
    %s132 = smov 192
    %v133 = vld [vmem:[%s131] ss:$16 sm:%s132]
    %vm134 = vcmask 1047558
    %v135 = vsel %vm134, %v133, %v130
    %136 = vrot.lane.b32.xlu0 %v135, 4
    %v137 = vpop.permute.xlu0 %136
    %vm138 = vcmask 48160
    %139 = vst.msk [vmem:[%s1] sm:$0xff] %vm138, %v137
    %s140 = scalar_lea.vmem [#allocation0], 1
    %s141 = smov 3
    %v142 = vld [vmem:[%s140] ss:$16 sm:%s141]
    %s143 = scalar_lea.vmem [#allocation0], 1
    %s144 = smov 12
    %v145 = vld [vmem:[%s143] ss:$16 sm:%s144]
    %vm146 = vcmask 1043458
    %v147 = vsel %vm146, %v145, %v142
    %s148 = scalar_lea.vmem [#allocation0], 1
    %s149 = smov 48
    %v150 = vld [vmem:[%s148] ss:$16 sm:%s149]
    %vm151 = vcmask 1045508
    %v152 = vsel %vm151, %v150, %v147
    %s153 = scalar_lea.vmem [#allocation0], 1
    %s154 = smov 192
    %v155 = vld [vmem:[%s153] ss:$16 sm:%s154]
    %vm156 = vcmask 1047558
    %v157 = vsel %vm156, %v155, %v152
    %158 = vrot.lane.b32.xlu0 %v157, 2
    %v159 = vpop.permute.xlu0 %158
    %vm160 = vcmask 31760
    %161 = vst.msk [vmem:[%s1] sm:$0xff] %vm160, %v159

// kernel: custom-call.3
$region0: #{custom-call.3}
  %s0 = inlined_call_operand.hbm [shape: c64[2,2,2,2,2,2,2,2,2,2,2,2,2,16], index: 0, kind: input, shape index: {}]
  %s1 = inlined_call_operand.vmem [shape: f32[2,2,2,2,2,2,2,2,2,2,2,2,2,16], index: 1, kind: output, shape index: {}]
  %s2 = scalar_lea.hbm %s0, 131072
  $region1: #{custom-call.3} parent=0
    #allocation0 [shape = 's32[1]{0}', space=sflag, size = 0x4, scoped, tag = 'scoped memory for custom-call.3']
    %3 = vsyncpa [#allocation0], 0
    %s4 = sshll.u32 %s1, 4
    %s5 = int_to_ptr.vmem [resolvable:$true] %s4
    %7 = dma.hbm_to_vmem [thread:$0]  %s2, 131072, %s5, [#allocation0]
    %8 = dma.done [#allocation0], 131072
    %9 = vsyncpa [#allocation0], 1

// kernel: custom-call.2
$region0: #{custom-call.2}
  %s0 = inlined_call_operand.hbm [shape: c64[2,2,2,2,2,2,2,2,2,2,2,2,2,16], index: 0, kind: input, shape index: {}]
  %s1 = inlined_call_operand.vmem [shape: f32[2,2,2,2,2,2,2,2,2,2,2,2,2,16], index: 1, kind: output, shape index: {}]
  $region1: #{custom-call.2} parent=0
    #allocation0 [shape = 's32[1]{0}', space=sflag, size = 0x4, scoped, tag = 'scoped memory for custom-call.2']
    %2 = vsyncpa [#allocation0], 0
    %s3 = sshll.u32 %s1, 4
    %s4 = int_to_ptr.vmem [resolvable:$true] %s3
    %6 = dma.hbm_to_vmem [thread:$0]  %s0, 131072, %s4, [#allocation0]
    %7 = dma.done [#allocation0], 131072
    %8 = vsyncpa [#allocation0], 1

// kernel: custom-call.4
$region0: #{custom-call.4}
  %s0 = inlined_call_operand.vmem [shape: f32[2,2,2,2,2,2,2,2,2,2,2,2,2,16], index: 0, kind: input, shape index: {}]
  %s1 = inlined_call_operand.vmem [shape: f32[2,2,2,2,2,2,2,2,2,2,2,2,2,16], index: 1, kind: input, shape index: {}]
  %s2 = inlined_call_operand.hbm [shape: c64[2,2,2,2,2,2,2,2,2,2,2,2,2,16], index: 2, kind: output, shape index: {}]
  %s3 = scalar_lea.hbm %s2, 131072
  $region1: #{custom-call.4} parent=0
    #allocation0 [shape = 's32[1]{0}', space=sflag, size = 0x4, scoped, tag = 'scoped memory for custom-call.4']
    %4 = vsyncpa [#allocation0], 0
    %s5 = sshll.u32 %s0, 4
    %s6 = int_to_ptr.vmem [resolvable:$true] %s5
    %8 = dma.vmem_to_hbm [thread:$0]  %s6, 131072, %s2, [#allocation0]
    %9 = dma.done [#allocation0], 131072
    %10 = vsyncpa [#allocation0], 1
  $region2: #{custom-call.4} parent=0
    #allocation1 [shape = 's32[1]{0}', space=sflag, size = 0x4, scoped, tag = 'scoped memory for custom-call.4']
    %11 = vsyncpa [#allocation1], 0
    %s12 = sshll.u32 %s1, 4
    %s13 = int_to_ptr.vmem [resolvable:$true] %s12
    %15 = dma.vmem_to_hbm [thread:$0]  %s13, 131072, %s3, [#allocation1]
    %16 = dma.done [#allocation1], 131072
    %17 = vsyncpa [#allocation1], 1

// kernel: _lambda_.1
$region0: #{_lambda_.1}
  #allocation0 [shape = 'u32[]', space=smem, size = 0x4, offset = 0x4, fixed_abs, tag = 'smem constant byte address 0x4 - core index']
  #allocation1 [shape = 'u32[144,128]{1,0:T(1,128)}', space=vmem, size = 0x12000, scoped, tag = 'internal scratch']
  %s0 = inlined_call_operand.vmem [shape: f32[32,32], index: 0, kind: input, shape index: {}]
  %s1 = inlined_call_operand.vmem [shape: f32[32,32], index: 1, kind: input, shape index: {}]
  %s2 = inlined_call_operand.vmem [shape: f32[1,32,4096], index: 2, kind: input, shape index: {}]
  %s3 = inlined_call_operand.vmem [shape: f32[1,32,4096], index: 3, kind: input, shape index: {}]
  %s4 = inlined_call_operand.vmem [shape: f32[1,32,4096], index: 4, kind: output, shape index: {0}]
  %s5 = inlined_call_operand.vmem [shape: f32[1,32,4096], index: 5, kind: output, shape index: {1}]
  %6 = xla_tuple %s4, %s5
  %s7 = sld [smem:[#allocation0]]
  $region141: #{_lambda_.1} parent=0
    _
  %s9 = ssub.s32 1, %s7
  %s10 = scalar_select 0, %s9, %s7
  $region1: #{_lambda_.1} parent=0
    #allocation2 [shape = 'u8[524288]{0}', space=vmem, size = 0x80000, scoped, tag = 'input window, operand 2']
    #allocation3 [shape = 'u8[524288]{0}', space=vmem, size = 0x80000, scoped, tag = 'input window, operand 3']
    #allocation4 [shape = 'u8[524288]{0}', space=vmem, size = 0x80000, scoped, tag = 'output window, operand 0']
    #allocation5 [shape = 'u8[524288]{0}', space=vmem, size = 0x80000, scoped, tag = 'output window, operand 1']
    loop: start=0, step=1, limit=4
    $region2: #{_lambda_.1} parent=1 // loop_pre_header
      _
    $region3: #{_lambda_.1} parent=1 // loop_header
      %s12 = sphi 0, %s16
      %p13 = scmp.ge.s32.totalorder %s12, 4
      %s19 = sphi 0, %s31
      %s20 = sphi 0, %s27
      %s21 = sphi 0, %s19
      %s22 = sphi 0, %s20
      %s23 = sphi 0, %s21
      %s24 = sphi 0, %s22
      %s32 = sphi 0, %s32
      %s34 = sphi 0, %s32
      %s35 = sphi 0, %s34
      %s49 = sphi 0, %s35
      %s53 = sphi 0, %s53
      %s55 = sphi 0, %s53
      %s56 = sphi 0, %s55
      %s70 = sphi 0, %s56
      %s78 = sphi 0, %s80
      %s81 = sphi 0, %s78
      %s82 = sphi 0, %s81
      %s98 = sphi 0, %s82
      %s106 = sphi 0, %s108
      %s109 = sphi 0, %s106
      %s110 = sphi 0, %s109
      %s126 = sphi 0, %s110
      %s134 = sphi 0, %s136
      %s137 = sphi 0, %s134
      %s138 = sphi 0, %s137
      %s154 = sphi 0, %s138
      %s162 = sphi 0, %s164
      %s165 = sphi 0, %s162
      %s166 = sphi 0, %s165
      %s182 = sphi 0, %s166
    $region4: #{_lambda_.1} parent=1 // loop_header_branch
      %15 = sbr.rel (%p13) target = $region8
    $region5: #{_lambda_.1} parent=1 // loop_body
      %s17 = ssub.s32 %s12, 1
      %s18 = ssub.s32 %s12, 2
      %s25 = sadd.s32 1, %s20
      %p26 = scmp.ge.s32.totalorder %s25, 2
      %s27 = scalar_select %p26, 0, %s25
      %s28 = sadd.s32 1, %s19
      %s29 = scalar_select %p26, %s28, %s19
      %p30 = scmp.ge.s32.totalorder %s29, 1
      %s31 = scalar_select %p30, 0, %s29
      %s33 = sadd.s32 %s32, 1
      %p36 = scmp.eq.s32.totalorder %s12, 1
      %p37 = scmp.ne.s32.totalorder %s32, %s34
      %p38 = scmp.eq.s32.totalorder %s12, 0
      %p39 = por %p37, %p38
      %p40 = scmp.ne.s32.totalorder %s32, %s34
      %p41 = scmp.eq.s32.totalorder %s17, 1
      %p42 = por %p40, %p41
      %p43 = scmp.ne.s32.totalorder %s34, %s35
      %p44 = scmp.eq.s32.totalorder %s17, 0
      %p45 = por %p43, %p44
      %p46 = scmp.ne.s32.totalorder %s34, %s35
      %p47 = scmp.eq.s32.totalorder %s18, 1
      %p48 = por %p46, %p47
      %p50 = scmp.ne.s32.totalorder %s35, %s49
      %p51 = scmp.eq.s32.totalorder %s18, 0
      %p52 = por %p50, %p51
      %s54 = sadd.s32 %s53, 1
      %p57 = scmp.eq.s32.totalorder %s12, 1
      %p58 = scmp.ne.s32.totalorder %s53, %s55
      %p59 = scmp.eq.s32.totalorder %s12, 0
      %p60 = por %p58, %p59
      %p61 = scmp.ne.s32.totalorder %s53, %s55
      %p62 = scmp.eq.s32.totalorder %s17, 1
      %p63 = por %p61, %p62
      %p64 = scmp.ne.s32.totalorder %s55, %s56
      %p65 = scmp.eq.s32.totalorder %s17, 0
      %p66 = por %p64, %p65
      %p67 = scmp.ne.s32.totalorder %s55, %s56
      %p68 = scmp.eq.s32.totalorder %s18, 1
      %p69 = por %p67, %p68
      %p71 = scmp.ne.s32.totalorder %s56, %s70
      %p72 = scmp.eq.s32.totalorder %s18, 0
      %p73 = por %p71, %p72
      %s74 = ssub.s32 %s19, %s31
      %s75 = ssub.s32 %s20, %s27
      %s76 = sor.u32 %s74, %s75
      %p77 = scmp.eq.s32.totalorder %s76, 0
      %s79 = sadd.s32 %s78, 1
      %s80 = scalar_select %p77, %s78, %s79
      %p83 = pneg %p77
      %p84 = scmp.eq.s32.totalorder %s12, 1
      %p85 = por %p83, %p84
      %p86 = scmp.ne.s32.totalorder %s78, %s81
      %p87 = scmp.eq.s32.totalorder %s12, 0
      %p88 = por %p86, %p87
      %p89 = scmp.ne.s32.totalorder %s78, %s81
      %p90 = scmp.eq.s32.totalorder %s17, 1
      %p91 = por %p89, %p90
      %p92 = scmp.ne.s32.totalorder %s81, %s82
      %p93 = scmp.eq.s32.totalorder %s17, 0
      %p94 = por %p92, %p93
      %p95 = scmp.ne.s32.totalorder %s81, %s82
      %p96 = scmp.eq.s32.totalorder %s18, 1
      %p97 = por %p95, %p96
      %p99 = scmp.ne.s32.totalorder %s82, %s98
      %p100 = scmp.eq.s32.totalorder %s18, 0
      %p101 = por %p99, %p100
      %s102 = ssub.s32 %s19, %s31
      %s103 = ssub.s32 %s20, %s27
      %s104 = sor.u32 %s102, %s103
      %p105 = scmp.eq.s32.totalorder %s104, 0
      %s107 = sadd.s32 %s106, 1
      %s108 = scalar_select %p105, %s106, %s107
      %p111 = pneg %p105
      %p112 = scmp.eq.s32.totalorder %s12, 1
      %p113 = por %p111, %p112
      %p114 = scmp.ne.s32.totalorder %s106, %s109
      %p115 = scmp.eq.s32.totalorder %s12, 0
      %p116 = por %p114, %p115
      %p117 = scmp.ne.s32.totalorder %s106, %s109
      %p118 = scmp.eq.s32.totalorder %s17, 1
      %p119 = por %p117, %p118
      %p120 = scmp.ne.s32.totalorder %s109, %s110
      %p121 = scmp.eq.s32.totalorder %s17, 0
      %p122 = por %p120, %p121
      %p123 = scmp.ne.s32.totalorder %s109, %s110
      %p124 = scmp.eq.s32.totalorder %s18, 1
      %p125 = por %p123, %p124
      %p127 = scmp.ne.s32.totalorder %s110, %s126
      %p128 = scmp.eq.s32.totalorder %s18, 0
      %p129 = por %p127, %p128
      %s130 = ssub.s32 %s19, %s31
      %s131 = ssub.s32 %s20, %s27
      %s132 = sor.u32 %s130, %s131
      %p133 = scmp.eq.s32.totalorder %s132, 0
      %s135 = sadd.s32 %s134, 1
      %s136 = scalar_select %p133, %s134, %s135
      %p139 = pneg %p133
      %p140 = scmp.eq.s32.totalorder %s12, 1
      %p141 = por %p139, %p140
      %p142 = scmp.ne.s32.totalorder %s134, %s137
      %p143 = scmp.eq.s32.totalorder %s12, 0
      %p144 = por %p142, %p143
      %p145 = scmp.ne.s32.totalorder %s134, %s137
      %p146 = scmp.eq.s32.totalorder %s17, 1
      %p147 = por %p145, %p146
      %p148 = scmp.ne.s32.totalorder %s137, %s138
      %p149 = scmp.eq.s32.totalorder %s17, 0
      %p150 = por %p148, %p149
      %p151 = scmp.ne.s32.totalorder %s137, %s138
      %p152 = scmp.eq.s32.totalorder %s18, 1
      %p153 = por %p151, %p152
      %p155 = scmp.ne.s32.totalorder %s138, %s154
      %p156 = scmp.eq.s32.totalorder %s18, 0
      %p157 = por %p155, %p156
      %s158 = ssub.s32 %s19, %s31
      %s159 = ssub.s32 %s20, %s27
      %s160 = sor.u32 %s158, %s159
      %p161 = scmp.eq.s32.totalorder %s160, 0
      %s163 = sadd.s32 %s162, 1
      %s164 = scalar_select %p161, %s162, %s163
      %p167 = pneg %p161
      %p168 = scmp.eq.s32.totalorder %s12, 1
      %p169 = por %p167, %p168
      %p170 = scmp.ne.s32.totalorder %s162, %s165
      %p171 = scmp.eq.s32.totalorder %s12, 0
      %p172 = por %p170, %p171
      %p173 = scmp.ne.s32.totalorder %s162, %s165
      %p174 = scmp.eq.s32.totalorder %s17, 1
      %p175 = por %p173, %p174
      %p176 = scmp.ne.s32.totalorder %s165, %s166
      %p177 = scmp.eq.s32.totalorder %s17, 0
      %p178 = por %p176, %p177
      %p179 = scmp.ne.s32.totalorder %s165, %s166
      %p180 = scmp.eq.s32.totalorder %s18, 1
      %p181 = por %p179, %p180
      %p183 = scmp.ne.s32.totalorder %s166, %s182
      %p184 = scmp.eq.s32.totalorder %s18, 0
      %p185 = por %p183, %p184
      %p186 = scmp.le.s32.totalorder 1, %s12
      %p187 = scmp.lt.s32.totalorder %s12, 3
      %p188 = pnand %p186, %p187
      %p189 = pneg %p188
      // Predicated region
      $region9: #{_lambda_.1} parent=5 // pred_check
        _
      $region10: #{_lambda_.1} parent=5 // pred_check_branch
        %191 = sbr.rel (%p188) target = $region12
      $region11: #{_lambda_.1} parent=5 // pred_region
        %s192 = ssub.s32 %s12, 1
        // Predicated region
        $region13: #{_lambda_.1} parent=11 // pred_check
          %p193 = pneg %p45
        $region14: #{_lambda_.1} parent=11 // pred_check_branch
          %195 = sbr.rel (%p193) target = $region16
        $region15: #{_lambda_.1} parent=11 // pred_region
          _
        $region16: #{_lambda_.1} parent=11 // pred_fallthru
          _
        // Predicated region
        $region17: #{_lambda_.1} parent=11 // pred_check
          %p196 = pneg %p66
        $region18: #{_lambda_.1} parent=11 // pred_check_branch
          %198 = sbr.rel (%p196) target = $region20
        $region19: #{_lambda_.1} parent=11 // pred_region
          _
        $region20: #{_lambda_.1} parent=11 // pred_fallthru
          _
      $region12: #{_lambda_.1} parent=5 // pred_fallthru
        _
      %p199 = scmp.lt.s32.totalorder %s12, 2
      // Predicated region
      $region21: #{_lambda_.1} parent=5 // pred_check
        %p200 = pneg %p199
      $region22: #{_lambda_.1} parent=5 // pred_check_branch
        %202 = sbr.rel (%p200) target = $region24
      $region23: #{_lambda_.1} parent=5 // pred_region
        // Predicated region
        $region25: #{_lambda_.1} parent=23 // pred_check
          %p203 = pneg %p88
        $region26: #{_lambda_.1} parent=23 // pred_check_branch
          %205 = sbr.rel (%p203) target = $region28
        $region27: #{_lambda_.1} parent=23 // pred_region
          %s206 = sand.u32 %s78, 1
          %s207 = sand.u32 %s78, 1
          %s208 = smul.addr %s207, 512
          %s209 = scalar_lea.vmem [#allocation2], %s208
          %s210 = smul.u32 16, %s20
          %s211 = smul.addr %s19, 128
          %s212 = sadd.s32 %s210, %s211
          %s213 = smul.addr %s212, 8
          %s214 = scalar_lea.vmem %s2, %s213
          // Predicated region
          $region29: #{_lambda_.1} parent=27 // pred_check
            _
          $region30: #{_lambda_.1} parent=27 // pred_check_branch
            %216 = sbr.rel (0) target = $region32
          $region31: #{_lambda_.1} parent=27 // pred_region
            // Predicated region
            $region33: #{_lambda_.1} parent=31 // pred_check
              _
            $region34: #{_lambda_.1} parent=31 // pred_check_branch
              %218 = sbr.rel (0) target = $region36
            $region35: #{_lambda_.1} parent=31 // pred_region
              loop: start=0, step=1, limit=1
              $region37: #{_lambda_.1} parent=35 // loop_pre_header
                _
              $region38: #{_lambda_.1} parent=35 // loop_header
                %s220 = sphi 0, %s224
                %p221 = scmp.ge.s32.totalorder %s220, 1
                %s225 = sphi %s214, %s214
                %s226 = sphi %s209, %s209
              $region39: #{_lambda_.1} parent=35 // loop_header_branch
                %223 = sbr.rel (%p221) target = $region43
              $region40: #{_lambda_.1} parent=35 // loop_body
                %v227 = vld [vmem:[%s225] sm:$0xff]
                %228 = vst [vmem:[%s226] sm:$0xff] %v227
                %v229 = vld [vmem:[%s225 + $0x8] sm:$0xff]
                %230 = vst [vmem:[%s226 + $0x8] sm:$0xff] %v229
                %v231 = vld [vmem:[%s225 + $0x10] sm:$0xff]
                %232 = vst [vmem:[%s226 + $0x10] sm:$0xff] %v231
                %v233 = vld [vmem:[%s225 + $0x18] sm:$0xff]
                %234 = vst [vmem:[%s226 + $0x18] sm:$0xff] %v233
                %v235 = vld [vmem:[%s225 + $0x20] sm:$0xff]
                %236 = vst [vmem:[%s226 + $0x20] sm:$0xff] %v235
                %v237 = vld [vmem:[%s225 + $0x28] sm:$0xff]
                %238 = vst [vmem:[%s226 + $0x28] sm:$0xff] %v237
                %v239 = vld [vmem:[%s225 + $0x30] sm:$0xff]
                %240 = vst [vmem:[%s226 + $0x30] sm:$0xff] %v239
                %v241 = vld [vmem:[%s225 + $0x38] sm:$0xff]
                %242 = vst [vmem:[%s226 + $0x38] sm:$0xff] %v241
                %v243 = vld [vmem:[%s225 + $0x40] sm:$0xff]
                %244 = vst [vmem:[%s226 + $0x40] sm:$0xff] %v243
                %v245 = vld [vmem:[%s225 + $0x48] sm:$0xff]
                %246 = vst [vmem:[%s226 + $0x48] sm:$0xff] %v245
                %v247 = vld [vmem:[%s225 + $0x50] sm:$0xff]
                %248 = vst [vmem:[%s226 + $0x50] sm:$0xff] %v247
                %v249 = vld [vmem:[%s225 + $0x58] sm:$0xff]
                %250 = vst [vmem:[%s226 + $0x58] sm:$0xff] %v249
                %v251 = vld [vmem:[%s225 + $0x60] sm:$0xff]
                %252 = vst [vmem:[%s226 + $0x60] sm:$0xff] %v251
                %v253 = vld [vmem:[%s225 + $0x68] sm:$0xff]
                %254 = vst [vmem:[%s226 + $0x68] sm:$0xff] %v253
                %v255 = vld [vmem:[%s225 + $0x70] sm:$0xff]
                %256 = vst [vmem:[%s226 + $0x70] sm:$0xff] %v255
                %v257 = vld [vmem:[%s225 + $0x78] sm:$0xff]
                %258 = vst [vmem:[%s226 + $0x78] sm:$0xff] %v257
                %v259 = vld [vmem:[%s225 + $0x100] sm:$0xff]
                %260 = vst [vmem:[%s226 + $0x80] sm:$0xff] %v259
                %v261 = vld [vmem:[%s225 + $0x108] sm:$0xff]
                %262 = vst [vmem:[%s226 + $0x88] sm:$0xff] %v261
                %v263 = vld [vmem:[%s225 + $0x110] sm:$0xff]
                %264 = vst [vmem:[%s226 + $0x90] sm:$0xff] %v263
                %v265 = vld [vmem:[%s225 + $0x118] sm:$0xff]
                %266 = vst [vmem:[%s226 + $0x98] sm:$0xff] %v265
                %v267 = vld [vmem:[%s225 + $0x120] sm:$0xff]
                %268 = vst [vmem:[%s226 + $0xa0] sm:$0xff] %v267
                %v269 = vld [vmem:[%s225 + $0x128] sm:$0xff]
                %270 = vst [vmem:[%s226 + $0xa8] sm:$0xff] %v269
                %v271 = vld [vmem:[%s225 + $0x130] sm:$0xff]
                %272 = vst [vmem:[%s226 + $0xb0] sm:$0xff] %v271
                %v273 = vld [vmem:[%s225 + $0x138] sm:$0xff]
                %274 = vst [vmem:[%s226 + $0xb8] sm:$0xff] %v273
                %v275 = vld [vmem:[%s225 + $0x140] sm:$0xff]
                %276 = vst [vmem:[%s226 + $0xc0] sm:$0xff] %v275
                %v277 = vld [vmem:[%s225 + $0x148] sm:$0xff]
                %278 = vst [vmem:[%s226 + $0xc8] sm:$0xff] %v277
                %v279 = vld [vmem:[%s225 + $0x150] sm:$0xff]
                %280 = vst [vmem:[%s226 + $0xd0] sm:$0xff] %v279
                %v281 = vld [vmem:[%s225 + $0x158] sm:$0xff]
                %282 = vst [vmem:[%s226 + $0xd8] sm:$0xff] %v281
                %v283 = vld [vmem:[%s225 + $0x160] sm:$0xff]
                %284 = vst [vmem:[%s226 + $0xe0] sm:$0xff] %v283
                %v285 = vld [vmem:[%s225 + $0x168] sm:$0xff]
                %286 = vst [vmem:[%s226 + $0xe8] sm:$0xff] %v285
                %v287 = vld [vmem:[%s225 + $0x170] sm:$0xff]
                %288 = vst [vmem:[%s226 + $0xf0] sm:$0xff] %v287
                %v289 = vld [vmem:[%s225 + $0x178] sm:$0xff]
                %290 = vst [vmem:[%s226 + $0xf8] sm:$0xff] %v289
                %v291 = vld [vmem:[%s225 + $0x200] sm:$0xff]
                %292 = vst [vmem:[%s226 + $0x100] sm:$0xff] %v291
                %v293 = vld [vmem:[%s225 + $0x208] sm:$0xff]
                %294 = vst [vmem:[%s226 + $0x108] sm:$0xff] %v293
                %v295 = vld [vmem:[%s225 + $0x210] sm:$0xff]
                %296 = vst [vmem:[%s226 + $0x110] sm:$0xff] %v295
                %v297 = vld [vmem:[%s225 + $0x218] sm:$0xff]
                %298 = vst [vmem:[%s226 + $0x118] sm:$0xff] %v297
                %v299 = vld [vmem:[%s225 + $0x220] sm:$0xff]
                %300 = vst [vmem:[%s226 + $0x120] sm:$0xff] %v299
                %v301 = vld [vmem:[%s225 + $0x228] sm:$0xff]
                %302 = vst [vmem:[%s226 + $0x128] sm:$0xff] %v301
                %v303 = vld [vmem:[%s225 + $0x230] sm:$0xff]
                %304 = vst [vmem:[%s226 + $0x130] sm:$0xff] %v303
                %v305 = vld [vmem:[%s225 + $0x238] sm:$0xff]
                %306 = vst [vmem:[%s226 + $0x138] sm:$0xff] %v305
                %v307 = vld [vmem:[%s225 + $0x240] sm:$0xff]
                %308 = vst [vmem:[%s226 + $0x140] sm:$0xff] %v307
                %v309 = vld [vmem:[%s225 + $0x248] sm:$0xff]
                %310 = vst [vmem:[%s226 + $0x148] sm:$0xff] %v309
                %v311 = vld [vmem:[%s225 + $0x250] sm:$0xff]
                %312 = vst [vmem:[%s226 + $0x150] sm:$0xff] %v311
                %v313 = vld [vmem:[%s225 + $0x258] sm:$0xff]
                %314 = vst [vmem:[%s226 + $0x158] sm:$0xff] %v313
                %v315 = vld [vmem:[%s225 + $0x260] sm:$0xff]
                %316 = vst [vmem:[%s226 + $0x160] sm:$0xff] %v315
                %v317 = vld [vmem:[%s225 + $0x268] sm:$0xff]
                %318 = vst [vmem:[%s226 + $0x168] sm:$0xff] %v317
                %v319 = vld [vmem:[%s225 + $0x270] sm:$0xff]
                %320 = vst [vmem:[%s226 + $0x170] sm:$0xff] %v319
                %v321 = vld [vmem:[%s225 + $0x278] sm:$0xff]
                %322 = vst [vmem:[%s226 + $0x178] sm:$0xff] %v321
                %v323 = vld [vmem:[%s225 + $0x300] sm:$0xff]
                %324 = vst [vmem:[%s226 + $0x180] sm:$0xff] %v323
                %v325 = vld [vmem:[%s225 + $0x308] sm:$0xff]
                %326 = vst [vmem:[%s226 + $0x188] sm:$0xff] %v325
                %v327 = vld [vmem:[%s225 + $0x310] sm:$0xff]
                %328 = vst [vmem:[%s226 + $0x190] sm:$0xff] %v327
                %v329 = vld [vmem:[%s225 + $0x318] sm:$0xff]
                %330 = vst [vmem:[%s226 + $0x198] sm:$0xff] %v329
                %v331 = vld [vmem:[%s225 + $0x320] sm:$0xff]
                %332 = vst [vmem:[%s226 + $0x1a0] sm:$0xff] %v331
                %v333 = vld [vmem:[%s225 + $0x328] sm:$0xff]
                %334 = vst [vmem:[%s226 + $0x1a8] sm:$0xff] %v333
                %v335 = vld [vmem:[%s225 + $0x330] sm:$0xff]
                %336 = vst [vmem:[%s226 + $0x1b0] sm:$0xff] %v335
                %v337 = vld [vmem:[%s225 + $0x338] sm:$0xff]
                %338 = vst [vmem:[%s226 + $0x1b8] sm:$0xff] %v337
                %v339 = vld [vmem:[%s225 + $0x340] sm:$0xff]
                %340 = vst [vmem:[%s226 + $0x1c0] sm:$0xff] %v339
                %v341 = vld [vmem:[%s225 + $0x348] sm:$0xff]
                %342 = vst [vmem:[%s226 + $0x1c8] sm:$0xff] %v341
                %v343 = vld [vmem:[%s225 + $0x350] sm:$0xff]
                %344 = vst [vmem:[%s226 + $0x1d0] sm:$0xff] %v343
                %v345 = vld [vmem:[%s225 + $0x358] sm:$0xff]
                %346 = vst [vmem:[%s226 + $0x1d8] sm:$0xff] %v345
                %v347 = vld [vmem:[%s225 + $0x360] sm:$0xff]
                %348 = vst [vmem:[%s226 + $0x1e0] sm:$0xff] %v347
                %v349 = vld [vmem:[%s225 + $0x368] sm:$0xff]
                %350 = vst [vmem:[%s226 + $0x1e8] sm:$0xff] %v349
                %v351 = vld [vmem:[%s225 + $0x370] sm:$0xff]
                %352 = vst [vmem:[%s226 + $0x1f0] sm:$0xff] %v351
                %v353 = vld [vmem:[%s225 + $0x378] sm:$0xff]
                %354 = vst [vmem:[%s226 + $0x1f8] sm:$0xff] %v353
              $region41: #{_lambda_.1} parent=35 // loop_footer
                %s224 = sadd.s32 1, %s220
              $region42: #{_lambda_.1} parent=35 // loop_footer_branch
                %219 = sbr.rel target = $region38
              $region43: #{_lambda_.1} parent=35 // loop_exit
                _
            $region36: #{_lambda_.1} parent=31 // pred_fallthru
              _
            // Predicated region
            $region44: #{_lambda_.1} parent=31 // pred_check
              _
            $region45: #{_lambda_.1} parent=31 // pred_check_branch
              %356 = sbr.rel target = $region47
            $region46: #{_lambda_.1} parent=31 // pred_region
              _
            $region47: #{_lambda_.1} parent=31 // pred_fallthru
              _
          $region32: #{_lambda_.1} parent=27 // pred_fallthru
            _
          %357 = vnop
        $region28: #{_lambda_.1} parent=23 // pred_fallthru
          _
        // Predicated region
        $region48: #{_lambda_.1} parent=23 // pred_check
          %p358 = pneg %p116
        $region49: #{_lambda_.1} parent=23 // pred_check_branch
          %360 = sbr.rel (%p358) target = $region51
        $region50: #{_lambda_.1} parent=23 // pred_region
          %s361 = sand.u32 %s106, 1
          %s362 = sand.u32 %s106, 1
          %s363 = smul.addr %s362, 512
          %s364 = scalar_lea.vmem [#allocation3], %s363
          %s365 = smul.u32 16, %s20
          %s366 = smul.addr %s19, 128
          %s367 = sadd.s32 %s365, %s366
          %s368 = smul.addr %s367, 8
          %s369 = scalar_lea.vmem %s3, %s368
          // Predicated region
          $region52: #{_lambda_.1} parent=50 // pred_check
            _
          $region53: #{_lambda_.1} parent=50 // pred_check_branch
            %371 = sbr.rel (0) target = $region55
          $region54: #{_lambda_.1} parent=50 // pred_region
            // Predicated region
            $region56: #{_lambda_.1} parent=54 // pred_check
              _
            $region57: #{_lambda_.1} parent=54 // pred_check_branch
              %373 = sbr.rel (0) target = $region59
            $region58: #{_lambda_.1} parent=54 // pred_region
              loop: start=0, step=1, limit=1
              $region60: #{_lambda_.1} parent=58 // loop_pre_header
                _
              $region61: #{_lambda_.1} parent=58 // loop_header
                %s375 = sphi 0, %s379
                %p376 = scmp.ge.s32.totalorder %s375, 1
                %s380 = sphi %s369, %s369
                %s381 = sphi %s364, %s364
              $region62: #{_lambda_.1} parent=58 // loop_header_branch
                %378 = sbr.rel (%p376) target = $region66
              $region63: #{_lambda_.1} parent=58 // loop_body
                %v382 = vld [vmem:[%s380] sm:$0xff]
                %383 = vst [vmem:[%s381] sm:$0xff] %v382
                %v384 = vld [vmem:[%s380 + $0x8] sm:$0xff]
                %385 = vst [vmem:[%s381 + $0x8] sm:$0xff] %v384
                %v386 = vld [vmem:[%s380 + $0x10] sm:$0xff]
                %387 = vst [vmem:[%s381 + $0x10] sm:$0xff] %v386
                %v388 = vld [vmem:[%s380 + $0x18] sm:$0xff]
                %389 = vst [vmem:[%s381 + $0x18] sm:$0xff] %v388
                %v390 = vld [vmem:[%s380 + $0x20] sm:$0xff]
                %391 = vst [vmem:[%s381 + $0x20] sm:$0xff] %v390
                %v392 = vld [vmem:[%s380 + $0x28] sm:$0xff]
                %393 = vst [vmem:[%s381 + $0x28] sm:$0xff] %v392
                %v394 = vld [vmem:[%s380 + $0x30] sm:$0xff]
                %395 = vst [vmem:[%s381 + $0x30] sm:$0xff] %v394
                %v396 = vld [vmem:[%s380 + $0x38] sm:$0xff]
                %397 = vst [vmem:[%s381 + $0x38] sm:$0xff] %v396
                %v398 = vld [vmem:[%s380 + $0x40] sm:$0xff]
                %399 = vst [vmem:[%s381 + $0x40] sm:$0xff] %v398
                %v400 = vld [vmem:[%s380 + $0x48] sm:$0xff]
                %401 = vst [vmem:[%s381 + $0x48] sm:$0xff] %v400
                %v402 = vld [vmem:[%s380 + $0x50] sm:$0xff]
                %403 = vst [vmem:[%s381 + $0x50] sm:$0xff] %v402
                %v404 = vld [vmem:[%s380 + $0x58] sm:$0xff]
                %405 = vst [vmem:[%s381 + $0x58] sm:$0xff] %v404
                %v406 = vld [vmem:[%s380 + $0x60] sm:$0xff]
                %407 = vst [vmem:[%s381 + $0x60] sm:$0xff] %v406
                %v408 = vld [vmem:[%s380 + $0x68] sm:$0xff]
                %409 = vst [vmem:[%s381 + $0x68] sm:$0xff] %v408
                %v410 = vld [vmem:[%s380 + $0x70] sm:$0xff]
                %411 = vst [vmem:[%s381 + $0x70] sm:$0xff] %v410
                %v412 = vld [vmem:[%s380 + $0x78] sm:$0xff]
                %413 = vst [vmem:[%s381 + $0x78] sm:$0xff] %v412
                %v414 = vld [vmem:[%s380 + $0x100] sm:$0xff]
                %415 = vst [vmem:[%s381 + $0x80] sm:$0xff] %v414
                %v416 = vld [vmem:[%s380 + $0x108] sm:$0xff]
                %417 = vst [vmem:[%s381 + $0x88] sm:$0xff] %v416
                %v418 = vld [vmem:[%s380 + $0x110] sm:$0xff]
                %419 = vst [vmem:[%s381 + $0x90] sm:$0xff] %v418
                %v420 = vld [vmem:[%s380 + $0x118] sm:$0xff]
                %421 = vst [vmem:[%s381 + $0x98] sm:$0xff] %v420
                %v422 = vld [vmem:[%s380 + $0x120] sm:$0xff]
                %423 = vst [vmem:[%s381 + $0xa0] sm:$0xff] %v422
                %v424 = vld [vmem:[%s380 + $0x128] sm:$0xff]
                %425 = vst [vmem:[%s381 + $0xa8] sm:$0xff] %v424
                %v426 = vld [vmem:[%s380 + $0x130] sm:$0xff]
                %427 = vst [vmem:[%s381 + $0xb0] sm:$0xff] %v426
                %v428 = vld [vmem:[%s380 + $0x138] sm:$0xff]
                %429 = vst [vmem:[%s381 + $0xb8] sm:$0xff] %v428
                %v430 = vld [vmem:[%s380 + $0x140] sm:$0xff]
                %431 = vst [vmem:[%s381 + $0xc0] sm:$0xff] %v430
                %v432 = vld [vmem:[%s380 + $0x148] sm:$0xff]
                %433 = vst [vmem:[%s381 + $0xc8] sm:$0xff] %v432
                %v434 = vld [vmem:[%s380 + $0x150] sm:$0xff]
                %435 = vst [vmem:[%s381 + $0xd0] sm:$0xff] %v434
                %v436 = vld [vmem:[%s380 + $0x158] sm:$0xff]
                %437 = vst [vmem:[%s381 + $0xd8] sm:$0xff] %v436
                %v438 = vld [vmem:[%s380 + $0x160] sm:$0xff]
                %439 = vst [vmem:[%s381 + $0xe0] sm:$0xff] %v438
                %v440 = vld [vmem:[%s380 + $0x168] sm:$0xff]
                %441 = vst [vmem:[%s381 + $0xe8] sm:$0xff] %v440
                %v442 = vld [vmem:[%s380 + $0x170] sm:$0xff]
                %443 = vst [vmem:[%s381 + $0xf0] sm:$0xff] %v442
                %v444 = vld [vmem:[%s380 + $0x178] sm:$0xff]
                %445 = vst [vmem:[%s381 + $0xf8] sm:$0xff] %v444
                %v446 = vld [vmem:[%s380 + $0x200] sm:$0xff]
                %447 = vst [vmem:[%s381 + $0x100] sm:$0xff] %v446
                %v448 = vld [vmem:[%s380 + $0x208] sm:$0xff]
                %449 = vst [vmem:[%s381 + $0x108] sm:$0xff] %v448
                %v450 = vld [vmem:[%s380 + $0x210] sm:$0xff]
                %451 = vst [vmem:[%s381 + $0x110] sm:$0xff] %v450
                %v452 = vld [vmem:[%s380 + $0x218] sm:$0xff]
                %453 = vst [vmem:[%s381 + $0x118] sm:$0xff] %v452
                %v454 = vld [vmem:[%s380 + $0x220] sm:$0xff]
                %455 = vst [vmem:[%s381 + $0x120] sm:$0xff] %v454
                %v456 = vld [vmem:[%s380 + $0x228] sm:$0xff]
                %457 = vst [vmem:[%s381 + $0x128] sm:$0xff] %v456
                %v458 = vld [vmem:[%s380 + $0x230] sm:$0xff]
                %459 = vst [vmem:[%s381 + $0x130] sm:$0xff] %v458
                %v460 = vld [vmem:[%s380 + $0x238] sm:$0xff]
                %461 = vst [vmem:[%s381 + $0x138] sm:$0xff] %v460
                %v462 = vld [vmem:[%s380 + $0x240] sm:$0xff]
                %463 = vst [vmem:[%s381 + $0x140] sm:$0xff] %v462
                %v464 = vld [vmem:[%s380 + $0x248] sm:$0xff]
                %465 = vst [vmem:[%s381 + $0x148] sm:$0xff] %v464
                %v466 = vld [vmem:[%s380 + $0x250] sm:$0xff]
                %467 = vst [vmem:[%s381 + $0x150] sm:$0xff] %v466
                %v468 = vld [vmem:[%s380 + $0x258] sm:$0xff]
                %469 = vst [vmem:[%s381 + $0x158] sm:$0xff] %v468
                %v470 = vld [vmem:[%s380 + $0x260] sm:$0xff]
                %471 = vst [vmem:[%s381 + $0x160] sm:$0xff] %v470
                %v472 = vld [vmem:[%s380 + $0x268] sm:$0xff]
                %473 = vst [vmem:[%s381 + $0x168] sm:$0xff] %v472
                %v474 = vld [vmem:[%s380 + $0x270] sm:$0xff]
                %475 = vst [vmem:[%s381 + $0x170] sm:$0xff] %v474
                %v476 = vld [vmem:[%s380 + $0x278] sm:$0xff]
                %477 = vst [vmem:[%s381 + $0x178] sm:$0xff] %v476
                %v478 = vld [vmem:[%s380 + $0x300] sm:$0xff]
                %479 = vst [vmem:[%s381 + $0x180] sm:$0xff] %v478
                %v480 = vld [vmem:[%s380 + $0x308] sm:$0xff]
                %481 = vst [vmem:[%s381 + $0x188] sm:$0xff] %v480
                %v482 = vld [vmem:[%s380 + $0x310] sm:$0xff]
                %483 = vst [vmem:[%s381 + $0x190] sm:$0xff] %v482
                %v484 = vld [vmem:[%s380 + $0x318] sm:$0xff]
                %485 = vst [vmem:[%s381 + $0x198] sm:$0xff] %v484
                %v486 = vld [vmem:[%s380 + $0x320] sm:$0xff]
                %487 = vst [vmem:[%s381 + $0x1a0] sm:$0xff] %v486
                %v488 = vld [vmem:[%s380 + $0x328] sm:$0xff]
                %489 = vst [vmem:[%s381 + $0x1a8] sm:$0xff] %v488
                %v490 = vld [vmem:[%s380 + $0x330] sm:$0xff]
                %491 = vst [vmem:[%s381 + $0x1b0] sm:$0xff] %v490
                %v492 = vld [vmem:[%s380 + $0x338] sm:$0xff]
                %493 = vst [vmem:[%s381 + $0x1b8] sm:$0xff] %v492
                %v494 = vld [vmem:[%s380 + $0x340] sm:$0xff]
                %495 = vst [vmem:[%s381 + $0x1c0] sm:$0xff] %v494
                %v496 = vld [vmem:[%s380 + $0x348] sm:$0xff]
                %497 = vst [vmem:[%s381 + $0x1c8] sm:$0xff] %v496
                %v498 = vld [vmem:[%s380 + $0x350] sm:$0xff]
                %499 = vst [vmem:[%s381 + $0x1d0] sm:$0xff] %v498
                %v500 = vld [vmem:[%s380 + $0x358] sm:$0xff]
                %501 = vst [vmem:[%s381 + $0x1d8] sm:$0xff] %v500
                %v502 = vld [vmem:[%s380 + $0x360] sm:$0xff]
                %503 = vst [vmem:[%s381 + $0x1e0] sm:$0xff] %v502
                %v504 = vld [vmem:[%s380 + $0x368] sm:$0xff]
                %505 = vst [vmem:[%s381 + $0x1e8] sm:$0xff] %v504
                %v506 = vld [vmem:[%s380 + $0x370] sm:$0xff]
                %507 = vst [vmem:[%s381 + $0x1f0] sm:$0xff] %v506
                %v508 = vld [vmem:[%s380 + $0x378] sm:$0xff]
                %509 = vst [vmem:[%s381 + $0x1f8] sm:$0xff] %v508
              $region64: #{_lambda_.1} parent=58 // loop_footer
                %s379 = sadd.s32 1, %s375
              $region65: #{_lambda_.1} parent=58 // loop_footer_branch
                %374 = sbr.rel target = $region61
              $region66: #{_lambda_.1} parent=58 // loop_exit
                _
            $region59: #{_lambda_.1} parent=54 // pred_fallthru
              _
            // Predicated region
            $region67: #{_lambda_.1} parent=54 // pred_check
              _
            $region68: #{_lambda_.1} parent=54 // pred_check_branch
              %511 = sbr.rel target = $region70
            $region69: #{_lambda_.1} parent=54 // pred_region
              _
            $region70: #{_lambda_.1} parent=54 // pred_fallthru
              _
          $region55: #{_lambda_.1} parent=50 // pred_fallthru
            _
          %512 = vnop
        $region51: #{_lambda_.1} parent=23 // pred_fallthru
          _
      $region24: #{_lambda_.1} parent=5 // pred_fallthru
        _
      %p513 = scmp.le.s32.totalorder 1, %s12
      %p514 = scmp.lt.s32.totalorder %s12, 3
      %p515 = pnand %p513, %p514
      %p516 = pneg %p515
      // Predicated region
      $region71: #{_lambda_.1} parent=5 // pred_check
        _
      $region72: #{_lambda_.1} parent=5 // pred_check_branch
        %518 = sbr.rel (%p515) target = $region74
      $region73: #{_lambda_.1} parent=5 // pred_region
        %s519 = ssub.s32 %s12, 1
        %s520 = sand.u32 %s81, 1
        %s521 = sand.u32 %s81, 1
        %s522 = smul.addr %s521, 512
        %s523 = scalar_lea.vmem [#allocation2], %s522
        // Predicated region
        $region75: #{_lambda_.1} parent=73 // pred_check
          %p524 = pneg %p94
        $region76: #{_lambda_.1} parent=73 // pred_check_branch
          %526 = sbr.rel (%p524) target = $region78
        $region77: #{_lambda_.1} parent=73 // pred_region
          _
        $region78: #{_lambda_.1} parent=73 // pred_fallthru
          _
        %s527 = sand.u32 %s109, 1
        %s528 = sand.u32 %s109, 1
        %s529 = smul.addr %s528, 512
        %s530 = scalar_lea.vmem [#allocation3], %s529
        // Predicated region
        $region79: #{_lambda_.1} parent=73 // pred_check
          %p531 = pneg %p122
        $region80: #{_lambda_.1} parent=73 // pred_check_branch
          %533 = sbr.rel (%p531) target = $region82
        $region81: #{_lambda_.1} parent=73 // pred_region
          _
        $region82: #{_lambda_.1} parent=73 // pred_fallthru
          _
        %p534 = pneg %p45
        %p535 = pneg %p42
        %p536 = pneg %p66
        %p537 = pneg %p63
        %s538 = sand.u32 %s81, 1
        %s539 = sand.u32 %s81, 1
        %s540 = smul.addr %s539, 512
        %s541 = scalar_lea.vmem [#allocation2], %s540
        %p542 = pneg %p94
        %p543 = pneg %p91
        %s544 = sand.u32 %s109, 1
        %s545 = sand.u32 %s109, 1
        %s546 = smul.addr %s545, 512
        %s547 = scalar_lea.vmem [#allocation3], %s546
        %p548 = pneg %p122
        %p549 = pneg %p119
        %p550 = pneg %p150
        %p551 = pneg %p147
        %s552 = sand.u32 %s137, 1
        %s553 = sand.u32 %s137, 1
        %s554 = smul.addr %s553, 512
        %s555 = scalar_lea.vmem [#allocation4], %s554
        %p556 = pneg %p178
        %p557 = pneg %p175
        %s558 = sand.u32 %s165, 1
        %s559 = sand.u32 %s165, 1
        %s560 = smul.addr %s559, 512
        %s561 = scalar_lea.vmem [#allocation5], %s560
        %s562 = smul.u32 16, %s22
        %s563 = smul.u32 16, %s22
        %s564 = smul.u32 16, %s22
        %s565 = smul.u32 16, %s22
        %v566 = vld [vmem:[%s0] sm:$0xff]
        %v567 = vld [vmem:[%s0 + $0x8] sm:$0xff]
        %v568 = vld [vmem:[%s0 + $0x10] sm:$0xff]
        %v569 = vld [vmem:[%s0 + $0x18] sm:$0xff]
        %v570 = vld [vmem:[%s1] sm:$0xff]
        %v571 = vld [vmem:[%s1 + $0x8] sm:$0xff]
        %v572 = vld [vmem:[%s1 + $0x10] sm:$0xff]
        %v573 = vld [vmem:[%s1 + $0x18] sm:$0xff]
        %v574 = vld [vmem:[%s523] sm:$0xff]
        %v575 = vld [vmem:[%s523 + $0x8] sm:$0xff]
        %v576 = vld [vmem:[%s523 + $0x10] sm:$0xff]
        %v577 = vld [vmem:[%s523 + $0x18] sm:$0xff]
        %v578 = vld [vmem:[%s523 + $0x20] sm:$0xff]
        %v579 = vld [vmem:[%s523 + $0x28] sm:$0xff]
        %v580 = vld [vmem:[%s523 + $0x30] sm:$0xff]
        %v581 = vld [vmem:[%s523 + $0x38] sm:$0xff]
        %v582 = vld [vmem:[%s523 + $0x40] sm:$0xff]
        %v583 = vld [vmem:[%s523 + $0x48] sm:$0xff]
        %v584 = vld [vmem:[%s523 + $0x50] sm:$0xff]
        %v585 = vld [vmem:[%s523 + $0x58] sm:$0xff]
        %v586 = vld [vmem:[%s523 + $0x60] sm:$0xff]
        %v587 = vld [vmem:[%s523 + $0x68] sm:$0xff]
        %v588 = vld [vmem:[%s523 + $0x70] sm:$0xff]
        %v589 = vld [vmem:[%s523 + $0x78] sm:$0xff]
        %v590 = vld [vmem:[%s523 + $0x80] sm:$0xff]
        %v591 = vld [vmem:[%s523 + $0x88] sm:$0xff]
        %v592 = vld [vmem:[%s523 + $0x90] sm:$0xff]
        %v593 = vld [vmem:[%s523 + $0x98] sm:$0xff]
        %v594 = vld [vmem:[%s523 + $0xa0] sm:$0xff]
        %v595 = vld [vmem:[%s523 + $0xa8] sm:$0xff]
        %v596 = vld [vmem:[%s523 + $0xb0] sm:$0xff]
        %v597 = vld [vmem:[%s523 + $0xb8] sm:$0xff]
        %v598 = vld [vmem:[%s523 + $0xc0] sm:$0xff]
        %v599 = vld [vmem:[%s523 + $0xc8] sm:$0xff]
        %v600 = vld [vmem:[%s523 + $0xd0] sm:$0xff]
        %v601 = vld [vmem:[%s523 + $0xd8] sm:$0xff]
        %v602 = vld [vmem:[%s523 + $0xe0] sm:$0xff]
        %v603 = vld [vmem:[%s523 + $0xe8] sm:$0xff]
        %v604 = vld [vmem:[%s523 + $0xf0] sm:$0xff]
        %v605 = vld [vmem:[%s523 + $0xf8] sm:$0xff]
        %v606 = vld [vmem:[%s523 + $0x100] sm:$0xff]
        %v607 = vld [vmem:[%s523 + $0x108] sm:$0xff]
        %v608 = vld [vmem:[%s523 + $0x110] sm:$0xff]
        %v609 = vld [vmem:[%s523 + $0x118] sm:$0xff]
        %v610 = vld [vmem:[%s523 + $0x120] sm:$0xff]
        %v611 = vld [vmem:[%s523 + $0x128] sm:$0xff]
        %v612 = vld [vmem:[%s523 + $0x130] sm:$0xff]
        %v613 = vld [vmem:[%s523 + $0x138] sm:$0xff]
        %v614 = vld [vmem:[%s523 + $0x140] sm:$0xff]
        %v615 = vld [vmem:[%s523 + $0x148] sm:$0xff]
        %v616 = vld [vmem:[%s523 + $0x150] sm:$0xff]
        %v617 = vld [vmem:[%s523 + $0x158] sm:$0xff]
        %v618 = vld [vmem:[%s523 + $0x160] sm:$0xff]
        %v619 = vld [vmem:[%s523 + $0x168] sm:$0xff]
        %v620 = vld [vmem:[%s523 + $0x170] sm:$0xff]
        %v621 = vld [vmem:[%s523 + $0x178] sm:$0xff]
        %v622 = vld [vmem:[%s523 + $0x180] sm:$0xff]
        %v623 = vld [vmem:[%s523 + $0x188] sm:$0xff]
        %v624 = vld [vmem:[%s523 + $0x190] sm:$0xff]
        %v625 = vld [vmem:[%s523 + $0x198] sm:$0xff]
        %v626 = vld [vmem:[%s523 + $0x1a0] sm:$0xff]
        %v627 = vld [vmem:[%s523 + $0x1a8] sm:$0xff]
        %v628 = vld [vmem:[%s523 + $0x1b0] sm:$0xff]
        %v629 = vld [vmem:[%s523 + $0x1b8] sm:$0xff]
        %v630 = vld [vmem:[%s523 + $0x1c0] sm:$0xff]
        %v631 = vld [vmem:[%s523 + $0x1c8] sm:$0xff]
        %v632 = vld [vmem:[%s523 + $0x1d0] sm:$0xff]
        %v633 = vld [vmem:[%s523 + $0x1d8] sm:$0xff]
        %v634 = vld [vmem:[%s523 + $0x1e0] sm:$0xff]
        %v635 = vld [vmem:[%s523 + $0x1e8] sm:$0xff]
        %v636 = vld [vmem:[%s523 + $0x1f0] sm:$0xff]
        %v637 = vld [vmem:[%s523 + $0x1f8] sm:$0xff]
        %v638 = vld [vmem:[%s530] sm:$0xff]
        %v639 = vld [vmem:[%s530 + $0x8] sm:$0xff]
        %v640 = vld [vmem:[%s530 + $0x10] sm:$0xff]
        %v641 = vld [vmem:[%s530 + $0x18] sm:$0xff]
        %v642 = vld [vmem:[%s530 + $0x20] sm:$0xff]
        %v643 = vld [vmem:[%s530 + $0x28] sm:$0xff]
        %v644 = vld [vmem:[%s530 + $0x30] sm:$0xff]
        %v645 = vld [vmem:[%s530 + $0x38] sm:$0xff]
        %v646 = vld [vmem:[%s530 + $0x40] sm:$0xff]
        %v647 = vld [vmem:[%s530 + $0x48] sm:$0xff]
        %v648 = vld [vmem:[%s530 + $0x50] sm:$0xff]
        %v649 = vld [vmem:[%s530 + $0x58] sm:$0xff]
        %v650 = vld [vmem:[%s530 + $0x60] sm:$0xff]
        %v651 = vld [vmem:[%s530 + $0x68] sm:$0xff]
        %v652 = vld [vmem:[%s530 + $0x70] sm:$0xff]
        %v653 = vld [vmem:[%s530 + $0x78] sm:$0xff]
        %v654 = vld [vmem:[%s530 + $0x80] sm:$0xff]
        %v655 = vld [vmem:[%s530 + $0x88] sm:$0xff]
        %v656 = vld [vmem:[%s530 + $0x90] sm:$0xff]
        %v657 = vld [vmem:[%s530 + $0x98] sm:$0xff]
        %v658 = vld [vmem:[%s530 + $0xa0] sm:$0xff]
        %v659 = vld [vmem:[%s530 + $0xa8] sm:$0xff]
        %v660 = vld [vmem:[%s530 + $0xb0] sm:$0xff]
        %v661 = vld [vmem:[%s530 + $0xb8] sm:$0xff]
        %v662 = vld [vmem:[%s530 + $0xc0] sm:$0xff]
        %v663 = vld [vmem:[%s530 + $0xc8] sm:$0xff]
        %v664 = vld [vmem:[%s530 + $0xd0] sm:$0xff]
        %v665 = vld [vmem:[%s530 + $0xd8] sm:$0xff]
        %v666 = vld [vmem:[%s530 + $0xe0] sm:$0xff]
        %v667 = vld [vmem:[%s530 + $0xe8] sm:$0xff]
        %v668 = vld [vmem:[%s530 + $0xf0] sm:$0xff]
        %v669 = vld [vmem:[%s530 + $0xf8] sm:$0xff]
        %v670 = vld [vmem:[%s530 + $0x100] sm:$0xff]
        %v671 = vld [vmem:[%s530 + $0x108] sm:$0xff]
        %v672 = vld [vmem:[%s530 + $0x110] sm:$0xff]
        %v673 = vld [vmem:[%s530 + $0x118] sm:$0xff]
        %v674 = vld [vmem:[%s530 + $0x120] sm:$0xff]
        %v675 = vld [vmem:[%s530 + $0x128] sm:$0xff]
        %v676 = vld [vmem:[%s530 + $0x130] sm:$0xff]
        %v677 = vld [vmem:[%s530 + $0x138] sm:$0xff]
        %v678 = vld [vmem:[%s530 + $0x140] sm:$0xff]
        %v679 = vld [vmem:[%s530 + $0x148] sm:$0xff]
        %v680 = vld [vmem:[%s530 + $0x150] sm:$0xff]
        %v681 = vld [vmem:[%s530 + $0x158] sm:$0xff]
        %v682 = vld [vmem:[%s530 + $0x160] sm:$0xff]
        %v683 = vld [vmem:[%s530 + $0x168] sm:$0xff]
        %v684 = vld [vmem:[%s530 + $0x170] sm:$0xff]
        %v685 = vld [vmem:[%s530 + $0x178] sm:$0xff]
        %v686 = vld [vmem:[%s530 + $0x180] sm:$0xff]
        %v687 = vld [vmem:[%s530 + $0x188] sm:$0xff]
        %v688 = vld [vmem:[%s530 + $0x190] sm:$0xff]
        %v689 = vld [vmem:[%s530 + $0x198] sm:$0xff]
        %v690 = vld [vmem:[%s530 + $0x1a0] sm:$0xff]
        %v691 = vld [vmem:[%s530 + $0x1a8] sm:$0xff]
        %v692 = vld [vmem:[%s530 + $0x1b0] sm:$0xff]
        %v693 = vld [vmem:[%s530 + $0x1b8] sm:$0xff]
        %v694 = vld [vmem:[%s530 + $0x1c0] sm:$0xff]
        %v695 = vld [vmem:[%s530 + $0x1c8] sm:$0xff]
        %v696 = vld [vmem:[%s530 + $0x1d0] sm:$0xff]
        %v697 = vld [vmem:[%s530 + $0x1d8] sm:$0xff]
        %v698 = vld [vmem:[%s530 + $0x1e0] sm:$0xff]
        %v699 = vld [vmem:[%s530 + $0x1e8] sm:$0xff]
        %v700 = vld [vmem:[%s530 + $0x1f0] sm:$0xff]
        %v701 = vld [vmem:[%s530 + $0x1f8] sm:$0xff]
        %vm702 = vcmask 261120
        %v704 = vsel %vm702, %v566, 0
        %v707 = vsel %vm702, %v567, 0
        %v710 = vsel %vm702, %v568, 0
        %v713 = vsel %vm702, %v569, 0
        %715 = vmatprep.subr.mxu0 %v575
        %716 = vmatpush1.msra.mxu0 %v574
        %717 = vmatprep.subr.mxu0 %v591
        %718 = vmatpush1.msra.mxu0 %v590
        %719 = vmatprep.subr.mxu0 %v607
        %720 = vmatpush1.msra.mxu0 %v606
        %721 = vmatprep.subr.mxu0 %v623
        %722 = vmatpush1.msra.mxu0 %v622
        %723 = vmatprep.subr.mxu0 0.0
        %724 = vmatpush1.msra.mxu0 0.0
        %725 = vmatprep.subr.mxu0 0.0
        %726 = vmatpush1.msra.mxu0 0.0
        %727 = vmatprep.subr.mxu0 0.0
        %728 = vmatpush1.msra.mxu0 0.0
        %729 = vmatprep.subr.mxu0 0.0
        %730 = vmatpush1.msra.mxu0 0.0
        %731 = vmatprep.subr.mxu0 0.0
        %732 = vmatpush1.msra.mxu0 0.0
        %733 = vmatprep.subr.mxu0 0.0
        %734 = vmatpush1.msra.mxu0 0.0
        %735 = vmatprep.subr.mxu0 0.0
        %736 = vmatpush1.msra.mxu0 0.0
        %737 = vmatprep.subr.mxu0 0.0
        %738 = vmatpush1.msra.mxu0 0.0
        %739 = vmatprep.subr.mxu0 0.0
        %740 = vmatpush1.msra.mxu0 0.0
        %741 = vmatprep.subr.mxu0 0.0
        %742 = vmatpush1.msra.mxu0 0.0
        %743 = vmatprep.subr.mxu0 0.0
        %744 = vmatpush1.msra.mxu0 0.0
        %745 = vmatprep.subr.mxu0 0.0
        %746 = vmatpush1.msra.mxu0 0.0
        %747 = vmatprep.subr.mxu0 0.0
        %748 = vmatpush1.msra.mxu0 0.0
        %749 = vmatprep.subr.mxu0 0.0
        %750 = vmatpush1.msra.mxu0 0.0
        %751 = vmatprep.subr.mxu0 0.0
        %752 = vmatpush1.msra.mxu0 0.0
        %753 = vmatprep.subr.mxu0 0.0
        %754 = vmatpush1.msra.mxu0 0.0
        %755 = vmatprep.subr.mxu0 0.0
        %756 = vmatpush1.msra.mxu0 0.0
        %757 = vmatprep.subr.mxu0 0.0
        %758 = vmatpush1.msra.mxu0 0.0
        %759 = vmatprep.subr.mxu0 0.0
        %760 = vmatpush1.msra.mxu0 0.0
        %761 = vmatprep.subr.mxu0 0.0
        %762 = vmatpush1.msra.mxu0 0.0
        %763 = vmatprep.subr.mxu0 0.0
        %764 = vmatpush1.msra.mxu0 0.0
        %765 = vmatprep.subr.mxu0 0.0
        %766 = vmatpush1.msra.mxu0 0.0
        %767 = vmatprep.subr.mxu0 0.0
        %768 = vmatpush1.msra.mxu0 0.0
        %769 = vmatprep.subr.mxu0 0.0
        %770 = vmatpush1.msra.mxu0 0.0
        %771 = vmatprep.subr.mxu0 0.0
        %772 = vmatpush1.msra.mxu0 0.0
        %773 = vmatprep.subr.mxu0 0.0
        %774 = vmatpush1.msra.mxu0 0.0
        %775 = vmatprep.subr.mxu0 0.0
        %776 = vmatpush1.msra.mxu0 0.0
        %777 = vmatprep.subr.mxu0 0.0
        %778 = vmatpush1.msra.mxu0 0.0
        %779 = vmatprep.mubr.f32.mxu0 0.0
        %780 = vmatmul.mubr.f32.gmra.mrb[0].mxu0 %v704
        %v781 = vpop.f32.mrb[0].mxu0
        %v782 = vadd.f32 0.0, %v781
        %v783 = vpop.f32.mrb[0].mxu0
        %v784 = vadd.f32 0.0, %v783
        %785 = vmatprep.mubr.f32.mxu0 0.0
        %786 = vmatmul.mubr.f32.gmra.mrb[0].mxu0 %v707
        %v787 = vpop.f32.mrb[0].mxu0
        %v788 = vadd.f32 0.0, %v787
        %v789 = vpop.f32.mrb[0].mxu0
        %v790 = vadd.f32 0.0, %v789
        %791 = vmatprep.mubr.f32.mxu0 0.0
        %792 = vmatmul.mubr.f32.gmra.mrb[0].mxu0 %v710
        %v793 = vpop.f32.mrb[0].mxu0
        %v794 = vadd.f32 0.0, %v793
        %v795 = vpop.f32.mrb[0].mxu0
        %v796 = vadd.f32 0.0, %v795
        %797 = vmatprep.mubr.f32.mxu0 0.0
        %798 = vmatmul.mubr.f32.gmra.mrb[0].mxu0 %v713
        %v799 = vpop.f32.mrb[0].mxu0
        %v800 = vadd.f32 0.0, %v799
        %v801 = vpop.f32.mrb[0].mxu0
        %v802 = vadd.f32 0.0, %v801
        %803 = vdwg.mxu0
        %804 = vmatprep.subr.mxu0 %v577
        %805 = vmatpush1.msra.mxu0 %v576
        %806 = vmatprep.subr.mxu0 %v593
        %807 = vmatpush1.msra.mxu0 %v592
        %808 = vmatprep.subr.mxu0 %v609
        %809 = vmatpush1.msra.mxu0 %v608
        %810 = vmatprep.subr.mxu0 %v625
        %811 = vmatpush1.msra.mxu0 %v624
        %812 = vmatprep.subr.mxu0 0.0
        %813 = vmatpush1.msra.mxu0 0.0
        %814 = vmatprep.subr.mxu0 0.0
        %815 = vmatpush1.msra.mxu0 0.0
        %816 = vmatprep.subr.mxu0 0.0
        %817 = vmatpush1.msra.mxu0 0.0
        %818 = vmatprep.subr.mxu0 0.0
        %819 = vmatpush1.msra.mxu0 0.0
        %820 = vmatprep.subr.mxu0 0.0
        %821 = vmatpush1.msra.mxu0 0.0
        %822 = vmatprep.subr.mxu0 0.0
        %823 = vmatpush1.msra.mxu0 0.0
        %824 = vmatprep.subr.mxu0 0.0
        %825 = vmatpush1.msra.mxu0 0.0
        %826 = vmatprep.subr.mxu0 0.0
        %827 = vmatpush1.msra.mxu0 0.0
        %828 = vmatprep.subr.mxu0 0.0
        %829 = vmatpush1.msra.mxu0 0.0
        %830 = vmatprep.subr.mxu0 0.0
        %831 = vmatpush1.msra.mxu0 0.0
        %832 = vmatprep.subr.mxu0 0.0
        %833 = vmatpush1.msra.mxu0 0.0
        %834 = vmatprep.subr.mxu0 0.0
        %835 = vmatpush1.msra.mxu0 0.0
        %836 = vmatprep.subr.mxu0 0.0
        %837 = vmatpush1.msra.mxu0 0.0
        %838 = vmatprep.subr.mxu0 0.0
        %839 = vmatpush1.msra.mxu0 0.0
        %840 = vmatprep.subr.mxu0 0.0
        %841 = vmatpush1.msra.mxu0 0.0
        %842 = vmatprep.subr.mxu0 0.0
        %843 = vmatpush1.msra.mxu0 0.0
        %844 = vmatprep.subr.mxu0 0.0
        %845 = vmatpush1.msra.mxu0 0.0
        %846 = vmatprep.subr.mxu0 0.0
        %847 = vmatpush1.msra.mxu0 0.0
        %848 = vmatprep.subr.mxu0 0.0
        %849 = vmatpush1.msra.mxu0 0.0
        %850 = vmatprep.subr.mxu0 0.0
        %851 = vmatpush1.msra.mxu0 0.0
        %852 = vmatprep.subr.mxu0 0.0
        %853 = vmatpush1.msra.mxu0 0.0
        %854 = vmatprep.subr.mxu0 0.0
        %855 = vmatpush1.msra.mxu0 0.0
        %856 = vmatprep.subr.mxu0 0.0
        %857 = vmatpush1.msra.mxu0 0.0
        %858 = vmatprep.subr.mxu0 0.0
        %859 = vmatpush1.msra.mxu0 0.0
        %860 = vmatprep.subr.mxu0 0.0
        %861 = vmatpush1.msra.mxu0 0.0
        %862 = vmatprep.subr.mxu0 0.0
        %863 = vmatpush1.msra.mxu0 0.0
        %864 = vmatprep.subr.mxu0 0.0
        %865 = vmatpush1.msra.mxu0 0.0
        %866 = vmatprep.subr.mxu0 0.0
        %867 = vmatpush1.msra.mxu0 0.0
        %868 = vmatprep.mubr.f32.mxu0 0.0
        %869 = vmatmul.mubr.f32.gmra.mrb[0].mxu0 %v704
        %v870 = vpop.f32.mrb[0].mxu0
        %v871 = vadd.f32 0.0, %v870
        %v872 = vpop.f32.mrb[0].mxu0
        %v873 = vadd.f32 0.0, %v872
        %874 = vmatprep.mubr.f32.mxu0 0.0
        %875 = vmatmul.mubr.f32.gmra.mrb[0].mxu0 %v707
        %v876 = vpop.f32.mrb[0].mxu0
        %v877 = vadd.f32 0.0, %v876
        %v878 = vpop.f32.mrb[0].mxu0
        %v879 = vadd.f32 0.0, %v878
        %880 = vmatprep.mubr.f32.mxu0 0.0
        %881 = vmatmul.mubr.f32.gmra.mrb[0].mxu0 %v710
        %v882 = vpop.f32.mrb[0].mxu0
        %v883 = vadd.f32 0.0, %v882
        %v884 = vpop.f32.mrb[0].mxu0
        %v885 = vadd.f32 0.0, %v884
        %886 = vmatprep.mubr.f32.mxu0 0.0
        %887 = vmatmul.mubr.f32.gmra.mrb[0].mxu0 %v713
        %v888 = vpop.f32.mrb[0].mxu0
        %v889 = vadd.f32 0.0, %v888
        %v890 = vpop.f32.mrb[0].mxu0
        %v891 = vadd.f32 0.0, %v890
        %892 = vdwg.mxu0
        %893 = vmatprep.subr.mxu0 %v579
        %894 = vmatpush1.msra.mxu0 %v578
        %895 = vmatprep.subr.mxu0 %v595
        %896 = vmatpush1.msra.mxu0 %v594
        %897 = vmatprep.subr.mxu0 %v611
        %898 = vmatpush1.msra.mxu0 %v610
        %899 = vmatprep.subr.mxu0 %v627
        %900 = vmatpush1.msra.mxu0 %v626
        %901 = vmatprep.subr.mxu0 0.0
        %902 = vmatpush1.msra.mxu0 0.0
        %903 = vmatprep.subr.mxu0 0.0
        %904 = vmatpush1.msra.mxu0 0.0
        %905 = vmatprep.subr.mxu0 0.0
        %906 = vmatpush1.msra.mxu0 0.0
        %907 = vmatprep.subr.mxu0 0.0
        %908 = vmatpush1.msra.mxu0 0.0
        %909 = vmatprep.subr.mxu0 0.0
        %910 = vmatpush1.msra.mxu0 0.0
        %911 = vmatprep.subr.mxu0 0.0
        %912 = vmatpush1.msra.mxu0 0.0
        %913 = vmatprep.subr.mxu0 0.0
        %914 = vmatpush1.msra.mxu0 0.0
        %915 = vmatprep.subr.mxu0 0.0
        %916 = vmatpush1.msra.mxu0 0.0
        %917 = vmatprep.subr.mxu0 0.0
        %918 = vmatpush1.msra.mxu0 0.0
        %919 = vmatprep.subr.mxu0 0.0
        %920 = vmatpush1.msra.mxu0 0.0
        %921 = vmatprep.subr.mxu0 0.0
        %922 = vmatpush1.msra.mxu0 0.0
        %923 = vmatprep.subr.mxu0 0.0
        %924 = vmatpush1.msra.mxu0 0.0
        %925 = vmatprep.subr.mxu0 0.0
        %926 = vmatpush1.msra.mxu0 0.0
        %927 = vmatprep.subr.mxu0 0.0
        %928 = vmatpush1.msra.mxu0 0.0
        %929 = vmatprep.subr.mxu0 0.0
        %930 = vmatpush1.msra.mxu0 0.0
        %931 = vmatprep.subr.mxu0 0.0
        %932 = vmatpush1.msra.mxu0 0.0
        %933 = vmatprep.subr.mxu0 0.0
        %934 = vmatpush1.msra.mxu0 0.0
        %935 = vmatprep.subr.mxu0 0.0
        %936 = vmatpush1.msra.mxu0 0.0
        %937 = vmatprep.subr.mxu0 0.0
        %938 = vmatpush1.msra.mxu0 0.0
        %939 = vmatprep.subr.mxu0 0.0
        %940 = vmatpush1.msra.mxu0 0.0
        %941 = vmatprep.subr.mxu0 0.0
        %942 = vmatpush1.msra.mxu0 0.0
        %943 = vmatprep.subr.mxu0 0.0
        %944 = vmatpush1.msra.mxu0 0.0
        %945 = vmatprep.subr.mxu0 0.0
        %946 = vmatpush1.msra.mxu0 0.0
        %947 = vmatprep.subr.mxu0 0.0
        %948 = vmatpush1.msra.mxu0 0.0
        %949 = vmatprep.subr.mxu0 0.0
        %950 = vmatpush1.msra.mxu0 0.0
        %951 = vmatprep.subr.mxu0 0.0
        %952 = vmatpush1.msra.mxu0 0.0
        %953 = vmatprep.subr.mxu0 0.0
        %954 = vmatpush1.msra.mxu0 0.0
        %955 = vmatprep.subr.mxu0 0.0
        %956 = vmatpush1.msra.mxu0 0.0
        %957 = vmatprep.mubr.f32.mxu0 0.0
        %958 = vmatmul.mubr.f32.gmra.mrb[0].mxu0 %v704
        %v959 = vpop.f32.mrb[0].mxu0
        %v960 = vadd.f32 0.0, %v959
        %v961 = vpop.f32.mrb[0].mxu0
        %v962 = vadd.f32 0.0, %v961
        %963 = vmatprep.mubr.f32.mxu0 0.0
        %964 = vmatmul.mubr.f32.gmra.mrb[0].mxu0 %v707
        %v965 = vpop.f32.mrb[0].mxu0
        %v966 = vadd.f32 0.0, %v965
        %v967 = vpop.f32.mrb[0].mxu0
        %v968 = vadd.f32 0.0, %v967
        %969 = vmatprep.mubr.f32.mxu0 0.0
        %970 = vmatmul.mubr.f32.gmra.mrb[0].mxu0 %v710
        %v971 = vpop.f32.mrb[0].mxu0
        %v972 = vadd.f32 0.0, %v971
        %v973 = vpop.f32.mrb[0].mxu0
        %v974 = vadd.f32 0.0, %v973
        %975 = vmatprep.mubr.f32.mxu0 0.0
        %976 = vmatmul.mubr.f32.gmra.mrb[0].mxu0 %v713
        %v977 = vpop.f32.mrb[0].mxu0
        %v978 = vadd.f32 0.0, %v977
        %v979 = vpop.f32.mrb[0].mxu0
        %v980 = vadd.f32 0.0, %v979
        %981 = vdwg.mxu0
        %982 = vmatprep.subr.mxu0 %v581
        %983 = vmatpush1.msra.mxu0 %v580
        %984 = vmatprep.subr.mxu0 %v597
        %985 = vmatpush1.msra.mxu0 %v596
        %986 = vmatprep.subr.mxu0 %v613
        %987 = vmatpush1.msra.mxu0 %v612
        %988 = vmatprep.subr.mxu0 %v629
        %989 = vmatpush1.msra.mxu0 %v628
        %990 = vmatprep.subr.mxu0 0.0
        %991 = vmatpush1.msra.mxu0 0.0
        %992 = vmatprep.subr.mxu0 0.0
        %993 = vmatpush1.msra.mxu0 0.0
        %994 = vmatprep.subr.mxu0 0.0
        %995 = vmatpush1.msra.mxu0 0.0
        %996 = vmatprep.subr.mxu0 0.0
        %997 = vmatpush1.msra.mxu0 0.0
        %998 = vmatprep.subr.mxu0 0.0
        %999 = vmatpush1.msra.mxu0 0.0
        %1000 = vmatprep.subr.mxu0 0.0
        %1001 = vmatpush1.msra.mxu0 0.0
        %1002 = vmatprep.subr.mxu0 0.0
        %1003 = vmatpush1.msra.mxu0 0.0
        %1004 = vmatprep.subr.mxu0 0.0
        %1005 = vmatpush1.msra.mxu0 0.0
        %1006 = vmatprep.subr.mxu0 0.0
        %1007 = vmatpush1.msra.mxu0 0.0
        %1008 = vmatprep.subr.mxu0 0.0
        %1009 = vmatpush1.msra.mxu0 0.0
        %1010 = vmatprep.subr.mxu0 0.0
        %1011 = vmatpush1.msra.mxu0 0.0
        %1012 = vmatprep.subr.mxu0 0.0
        %1013 = vmatpush1.msra.mxu0 0.0
        %1014 = vmatprep.subr.mxu0 0.0
        %1015 = vmatpush1.msra.mxu0 0.0
        %1016 = vmatprep.subr.mxu0 0.0
        %1017 = vmatpush1.msra.mxu0 0.0
        %1018 = vmatprep.subr.mxu0 0.0
        %1019 = vmatpush1.msra.mxu0 0.0
        %1020 = vmatprep.subr.mxu0 0.0
        %1021 = vmatpush1.msra.mxu0 0.0
        %1022 = vmatprep.subr.mxu0 0.0
        %1023 = vmatpush1.msra.mxu0 0.0
        %1024 = vmatprep.subr.mxu0 0.0
        %1025 = vmatpush1.msra.mxu0 0.0
        %1026 = vmatprep.subr.mxu0 0.0
        %1027 = vmatpush1.msra.mxu0 0.0
        %1028 = vmatprep.subr.mxu0 0.0
        %1029 = vmatpush1.msra.mxu0 0.0
        %1030 = vmatprep.subr.mxu0 0.0
        %1031 = vmatpush1.msra.mxu0 0.0
        %1032 = vmatprep.subr.mxu0 0.0
        %1033 = vmatpush1.msra.mxu0 0.0
        %1034 = vmatprep.subr.mxu0 0.0
        %1035 = vmatpush1.msra.mxu0 0.0
        %1036 = vmatprep.subr.mxu0 0.0
        %1037 = vmatpush1.msra.mxu0 0.0
        %1038 = vmatprep.subr.mxu0 0.0
        %1039 = vmatpush1.msra.mxu0 0.0
        %1040 = vmatprep.subr.mxu0 0.0
        %1041 = vmatpush1.msra.mxu0 0.0
        %1042 = vmatprep.subr.mxu0 0.0
        %1043 = vmatpush1.msra.mxu0 0.0
        %1044 = vmatprep.subr.mxu0 0.0
        %1045 = vmatpush1.msra.mxu0 0.0
        %1046 = vmatprep.mubr.f32.mxu0 0.0
        %1047 = vmatmul.mubr.f32.gmra.mrb[0].mxu0 %v704
        %v1048 = vpop.f32.mrb[0].mxu0
        %v1049 = vadd.f32 0.0, %v1048
        %v1050 = vpop.f32.mrb[0].mxu0
        %v1051 = vadd.f32 0.0, %v1050
        %1052 = vmatprep.mubr.f32.mxu0 0.0
        %1053 = vmatmul.mubr.f32.gmra.mrb[0].mxu0 %v707
        %v1054 = vpop.f32.mrb[0].mxu0
        %v1055 = vadd.f32 0.0, %v1054
        %v1056 = vpop.f32.mrb[0].mxu0
        %v1057 = vadd.f32 0.0, %v1056
        %1058 = vmatprep.mubr.f32.mxu0 0.0
        %1059 = vmatmul.mubr.f32.gmra.mrb[0].mxu0 %v710
        %v1060 = vpop.f32.mrb[0].mxu0
        %v1061 = vadd.f32 0.0, %v1060
        %v1062 = vpop.f32.mrb[0].mxu0
        %v1063 = vadd.f32 0.0, %v1062
        %1064 = vmatprep.mubr.f32.mxu0 0.0
        %1065 = vmatmul.mubr.f32.gmra.mrb[0].mxu0 %v713
        %v1066 = vpop.f32.mrb[0].mxu0
        %v1067 = vadd.f32 0.0, %v1066
        %v1068 = vpop.f32.mrb[0].mxu0
        %v1069 = vadd.f32 0.0, %v1068
        %1070 = vdwg.mxu0
        %1071 = vmatprep.subr.mxu0 %v583
        %1072 = vmatpush1.msra.mxu0 %v582
        %1073 = vmatprep.subr.mxu0 %v599
        %1074 = vmatpush1.msra.mxu0 %v598
        %1075 = vmatprep.subr.mxu0 %v615
        %1076 = vmatpush1.msra.mxu0 %v614
        %1077 = vmatprep.subr.mxu0 %v631
        %1078 = vmatpush1.msra.mxu0 %v630
        %1079 = vmatprep.subr.mxu0 0.0
        %1080 = vmatpush1.msra.mxu0 0.0
        %1081 = vmatprep.subr.mxu0 0.0
        %1082 = vmatpush1.msra.mxu0 0.0
        %1083 = vmatprep.subr.mxu0 0.0
        %1084 = vmatpush1.msra.mxu0 0.0
        %1085 = vmatprep.subr.mxu0 0.0
        %1086 = vmatpush1.msra.mxu0 0.0
        %1087 = vmatprep.subr.mxu0 0.0
        %1088 = vmatpush1.msra.mxu0 0.0
        %1089 = vmatprep.subr.mxu0 0.0
        %1090 = vmatpush1.msra.mxu0 0.0
        %1091 = vmatprep.subr.mxu0 0.0
        %1092 = vmatpush1.msra.mxu0 0.0
        %1093 = vmatprep.subr.mxu0 0.0
        %1094 = vmatpush1.msra.mxu0 0.0
        %1095 = vmatprep.subr.mxu0 0.0
        %1096 = vmatpush1.msra.mxu0 0.0
        %1097 = vmatprep.subr.mxu0 0.0
        %1098 = vmatpush1.msra.mxu0 0.0
        %1099 = vmatprep.subr.mxu0 0.0
        %1100 = vmatpush1.msra.mxu0 0.0
        %1101 = vmatprep.subr.mxu0 0.0
        %1102 = vmatpush1.msra.mxu0 0.0
        %1103 = vmatprep.subr.mxu0 0.0
        %1104 = vmatpush1.msra.mxu0 0.0
        %1105 = vmatprep.subr.mxu0 0.0
        %1106 = vmatpush1.msra.mxu0 0.0
        %1107 = vmatprep.subr.mxu0 0.0
        %1108 = vmatpush1.msra.mxu0 0.0
        %1109 = vmatprep.subr.mxu0 0.0
        %1110 = vmatpush1.msra.mxu0 0.0
        %1111 = vmatprep.subr.mxu0 0.0
        %1112 = vmatpush1.msra.mxu0 0.0
        %1113 = vmatprep.subr.mxu0 0.0
        %1114 = vmatpush1.msra.mxu0 0.0
        %1115 = vmatprep.subr.mxu0 0.0
        %1116 = vmatpush1.msra.mxu0 0.0
        %1117 = vmatprep.subr.mxu0 0.0
        %1118 = vmatpush1.msra.mxu0 0.0
        %1119 = vmatprep.subr.mxu0 0.0
        %1120 = vmatpush1.msra.mxu0 0.0
        %1121 = vmatprep.subr.mxu0 0.0
        %1122 = vmatpush1.msra.mxu0 0.0
        %1123 = vmatprep.subr.mxu0 0.0
        %1124 = vmatpush1.msra.mxu0 0.0
        %1125 = vmatprep.subr.mxu0 0.0
        %1126 = vmatpush1.msra.mxu0 0.0
        %1127 = vmatprep.subr.mxu0 0.0
        %1128 = vmatpush1.msra.mxu0 0.0
        %1129 = vmatprep.subr.mxu0 0.0
        %1130 = vmatpush1.msra.mxu0 0.0
        %1131 = vmatprep.subr.mxu0 0.0
        %1132 = vmatpush1.msra.mxu0 0.0
        %1133 = vmatprep.subr.mxu0 0.0
        %1134 = vmatpush1.msra.mxu0 0.0
        %1135 = vmatprep.mubr.f32.mxu0 0.0
        %1136 = vmatmul.mubr.f32.gmra.mrb[0].mxu0 %v704
        %v1137 = vpop.f32.mrb[0].mxu0
        %v1138 = vadd.f32 0.0, %v1137
        %v1139 = vpop.f32.mrb[0].mxu0
        %v1140 = vadd.f32 0.0, %v1139
        %1141 = vmatprep.mubr.f32.mxu0 0.0
        %1142 = vmatmul.mubr.f32.gmra.mrb[0].mxu0 %v707
        %v1143 = vpop.f32.mrb[0].mxu0
        %v1144 = vadd.f32 0.0, %v1143
        %v1145 = vpop.f32.mrb[0].mxu0
        %v1146 = vadd.f32 0.0, %v1145
        %1147 = vmatprep.mubr.f32.mxu0 0.0
        %1148 = vmatmul.mubr.f32.gmra.mrb[0].mxu0 %v710
        %v1149 = vpop.f32.mrb[0].mxu0
        %v1150 = vadd.f32 0.0, %v1149
        %v1151 = vpop.f32.mrb[0].mxu0
        %v1152 = vadd.f32 0.0, %v1151
        %1153 = vmatprep.mubr.f32.mxu0 0.0
        %1154 = vmatmul.mubr.f32.gmra.mrb[0].mxu0 %v713
        %v1155 = vpop.f32.mrb[0].mxu0
        %v1156 = vadd.f32 0.0, %v1155
        %v1157 = vpop.f32.mrb[0].mxu0
        %v1158 = vadd.f32 0.0, %v1157
        %1159 = vdwg.mxu0
        %1160 = vmatprep.subr.mxu0 %v585
        %1161 = vmatpush1.msra.mxu0 %v584
        %1162 = vmatprep.subr.mxu0 %v601
        %1163 = vmatpush1.msra.mxu0 %v600
        %1164 = vmatprep.subr.mxu0 %v617
        %1165 = vmatpush1.msra.mxu0 %v616
        %1166 = vmatprep.subr.mxu0 %v633
        %1167 = vmatpush1.msra.mxu0 %v632
        %1168 = vmatprep.subr.mxu0 0.0
        %1169 = vmatpush1.msra.mxu0 0.0
        %1170 = vmatprep.subr.mxu0 0.0
        %1171 = vmatpush1.msra.mxu0 0.0
        %1172 = vmatprep.subr.mxu0 0.0
        %1173 = vmatpush1.msra.mxu0 0.0
        %1174 = vmatprep.subr.mxu0 0.0
        %1175 = vmatpush1.msra.mxu0 0.0
        %1176 = vmatprep.subr.mxu0 0.0
        %1177 = vmatpush1.msra.mxu0 0.0
        %1178 = vmatprep.subr.mxu0 0.0
        %1179 = vmatpush1.msra.mxu0 0.0
        %1180 = vmatprep.subr.mxu0 0.0
        %1181 = vmatpush1.msra.mxu0 0.0
        %1182 = vmatprep.subr.mxu0 0.0
        %1183 = vmatpush1.msra.mxu0 0.0
        %1184 = vmatprep.subr.mxu0 0.0
        %1185 = vmatpush1.msra.mxu0 0.0
        %1186 = vmatprep.subr.mxu0 0.0
        %1187 = vmatpush1.msra.mxu0 0.0
        %1188 = vmatprep.subr.mxu0 0.0
        %1189 = vmatpush1.msra.mxu0 0.0
        %1190 = vmatprep.subr.mxu0 0.0
        %1191 = vmatpush1.msra.mxu0 0.0
        %1192 = vmatprep.subr.mxu0 0.0
        %1193 = vmatpush1.msra.mxu0 0.0
        %1194 = vmatprep.subr.mxu0 0.0
        %1195 = vmatpush1.msra.mxu0 0.0
        %1196 = vmatprep.subr.mxu0 0.0
        %1197 = vmatpush1.msra.mxu0 0.0
        %1198 = vmatprep.subr.mxu0 0.0
        %1199 = vmatpush1.msra.mxu0 0.0
        %1200 = vmatprep.subr.mxu0 0.0
        %1201 = vmatpush1.msra.mxu0 0.0
        %1202 = vmatprep.subr.mxu0 0.0
        %1203 = vmatpush1.msra.mxu0 0.0
        %1204 = vmatprep.subr.mxu0 0.0
        %1205 = vmatpush1.msra.mxu0 0.0
        %1206 = vmatprep.subr.mxu0 0.0
        %1207 = vmatpush1.msra.mxu0 0.0
        %1208 = vmatprep.subr.mxu0 0.0
        %1209 = vmatpush1.msra.mxu0 0.0
        %1210 = vmatprep.subr.mxu0 0.0
        %1211 = vmatpush1.msra.mxu0 0.0
        %1212 = vmatprep.subr.mxu0 0.0
        %1213 = vmatpush1.msra.mxu0 0.0
        %1214 = vmatprep.subr.mxu0 0.0
        %1215 = vmatpush1.msra.mxu0 0.0
        %1216 = vmatprep.subr.mxu0 0.0
        %1217 = vmatpush1.msra.mxu0 0.0
        %1218 = vmatprep.subr.mxu0 0.0
        %1219 = vmatpush1.msra.mxu0 0.0
        %1220 = vmatprep.subr.mxu0 0.0
        %1221 = vmatpush1.msra.mxu0 0.0
        %1222 = vmatprep.subr.mxu0 0.0
        %1223 = vmatpush1.msra.mxu0 0.0
        %1224 = vmatprep.mubr.f32.mxu0 0.0
        %1225 = vmatmul.mubr.f32.gmra.mrb[0].mxu0 %v704
        %v1226 = vpop.f32.mrb[0].mxu0
        %v1227 = vadd.f32 0.0, %v1226
        %v1228 = vpop.f32.mrb[0].mxu0
        %v1229 = vadd.f32 0.0, %v1228
        %1230 = vmatprep.mubr.f32.mxu0 0.0
        %1231 = vmatmul.mubr.f32.gmra.mrb[0].mxu0 %v707
        %v1232 = vpop.f32.mrb[0].mxu0
        %v1233 = vadd.f32 0.0, %v1232
        %v1234 = vpop.f32.mrb[0].mxu0
        %v1235 = vadd.f32 0.0, %v1234
        %1236 = vmatprep.mubr.f32.mxu0 0.0
        %1237 = vmatmul.mubr.f32.gmra.mrb[0].mxu0 %v710
        %v1238 = vpop.f32.mrb[0].mxu0
        %v1239 = vadd.f32 0.0, %v1238
        %v1240 = vpop.f32.mrb[0].mxu0
        %v1241 = vadd.f32 0.0, %v1240
        %1242 = vmatprep.mubr.f32.mxu0 0.0
        %1243 = vmatmul.mubr.f32.gmra.mrb[0].mxu0 %v713
        %v1244 = vpop.f32.mrb[0].mxu0
        %v1245 = vadd.f32 0.0, %v1244
        %v1246 = vpop.f32.mrb[0].mxu0
        %v1247 = vadd.f32 0.0, %v1246
        %1248 = vdwg.mxu0
        %1249 = vmatprep.subr.mxu0 %v587
        %1250 = vmatpush1.msra.mxu0 %v586
        %1251 = vmatprep.subr.mxu0 %v603
        %1252 = vmatpush1.msra.mxu0 %v602
        %1253 = vmatprep.subr.mxu0 %v619
        %1254 = vmatpush1.msra.mxu0 %v618
        %1255 = vmatprep.subr.mxu0 %v635
        %1256 = vmatpush1.msra.mxu0 %v634
        %1257 = vmatprep.subr.mxu0 0.0
        %1258 = vmatpush1.msra.mxu0 0.0
        %1259 = vmatprep.subr.mxu0 0.0
        %1260 = vmatpush1.msra.mxu0 0.0
        %1261 = vmatprep.subr.mxu0 0.0
        %1262 = vmatpush1.msra.mxu0 0.0
        %1263 = vmatprep.subr.mxu0 0.0
        %1264 = vmatpush1.msra.mxu0 0.0
        %1265 = vmatprep.subr.mxu0 0.0
        %1266 = vmatpush1.msra.mxu0 0.0
        %1267 = vmatprep.subr.mxu0 0.0
        %1268 = vmatpush1.msra.mxu0 0.0
        %1269 = vmatprep.subr.mxu0 0.0
        %1270 = vmatpush1.msra.mxu0 0.0
        %1271 = vmatprep.subr.mxu0 0.0
        %1272 = vmatpush1.msra.mxu0 0.0
        %1273 = vmatprep.subr.mxu0 0.0
        %1274 = vmatpush1.msra.mxu0 0.0
        %1275 = vmatprep.subr.mxu0 0.0
        %1276 = vmatpush1.msra.mxu0 0.0
        %1277 = vmatprep.subr.mxu0 0.0
        %1278 = vmatpush1.msra.mxu0 0.0
        %1279 = vmatprep.subr.mxu0 0.0
        %1280 = vmatpush1.msra.mxu0 0.0
        %1281 = vmatprep.subr.mxu0 0.0
        %1282 = vmatpush1.msra.mxu0 0.0
        %1283 = vmatprep.subr.mxu0 0.0
        %1284 = vmatpush1.msra.mxu0 0.0
        %1285 = vmatprep.subr.mxu0 0.0
        %1286 = vmatpush1.msra.mxu0 0.0
        %1287 = vmatprep.subr.mxu0 0.0
        %1288 = vmatpush1.msra.mxu0 0.0
        %1289 = vmatprep.subr.mxu0 0.0
        %1290 = vmatpush1.msra.mxu0 0.0
        %1291 = vmatprep.subr.mxu0 0.0
        %1292 = vmatpush1.msra.mxu0 0.0
        %1293 = vmatprep.subr.mxu0 0.0
        %1294 = vmatpush1.msra.mxu0 0.0
        %1295 = vmatprep.subr.mxu0 0.0
        %1296 = vmatpush1.msra.mxu0 0.0
        %1297 = vmatprep.subr.mxu0 0.0
        %1298 = vmatpush1.msra.mxu0 0.0
        %1299 = vmatprep.subr.mxu0 0.0
        %1300 = vmatpush1.msra.mxu0 0.0
        %1301 = vmatprep.subr.mxu0 0.0
        %1302 = vmatpush1.msra.mxu0 0.0
        %1303 = vmatprep.subr.mxu0 0.0
        %1304 = vmatpush1.msra.mxu0 0.0
        %1305 = vmatprep.subr.mxu0 0.0
        %1306 = vmatpush1.msra.mxu0 0.0
        %1307 = vmatprep.subr.mxu0 0.0
        %1308 = vmatpush1.msra.mxu0 0.0
        %1309 = vmatprep.subr.mxu0 0.0
        %1310 = vmatpush1.msra.mxu0 0.0
        %1311 = vmatprep.subr.mxu0 0.0
        %1312 = vmatpush1.msra.mxu0 0.0
        %1313 = vmatprep.mubr.f32.mxu0 0.0
        %1314 = vmatmul.mubr.f32.gmra.mrb[0].mxu0 %v704
        %v1315 = vpop.f32.mrb[0].mxu0
        %v1316 = vadd.f32 0.0, %v1315
        %v1317 = vpop.f32.mrb[0].mxu0
        %v1318 = vadd.f32 0.0, %v1317
        %1319 = vmatprep.mubr.f32.mxu0 0.0
        %1320 = vmatmul.mubr.f32.gmra.mrb[0].mxu0 %v707
        %v1321 = vpop.f32.mrb[0].mxu0
        %v1322 = vadd.f32 0.0, %v1321
        %v1323 = vpop.f32.mrb[0].mxu0
        %v1324 = vadd.f32 0.0, %v1323
        %1325 = vmatprep.mubr.f32.mxu0 0.0
        %1326 = vmatmul.mubr.f32.gmra.mrb[0].mxu0 %v710
        %v1327 = vpop.f32.mrb[0].mxu0
        %v1328 = vadd.f32 0.0, %v1327
        %v1329 = vpop.f32.mrb[0].mxu0
        %v1330 = vadd.f32 0.0, %v1329
        %1331 = vmatprep.mubr.f32.mxu0 0.0
        %1332 = vmatmul.mubr.f32.gmra.mrb[0].mxu0 %v713
        %v1333 = vpop.f32.mrb[0].mxu0
        %v1334 = vadd.f32 0.0, %v1333
        %v1335 = vpop.f32.mrb[0].mxu0
        %v1336 = vadd.f32 0.0, %v1335
        %1337 = vdwg.mxu0
        %1338 = vmatprep.subr.mxu0 %v589
        %1339 = vmatpush1.msra.mxu0 %v588
        %1340 = vmatprep.subr.mxu0 %v605
        %1341 = vmatpush1.msra.mxu0 %v604
        %1342 = vmatprep.subr.mxu0 %v621
        %1343 = vmatpush1.msra.mxu0 %v620
        %1344 = vmatprep.subr.mxu0 %v637
        %1345 = vmatpush1.msra.mxu0 %v636
        %1346 = vmatprep.subr.mxu0 0.0
        %1347 = vmatpush1.msra.mxu0 0.0
        %1348 = vmatprep.subr.mxu0 0.0
        %1349 = vmatpush1.msra.mxu0 0.0
        %1350 = vmatprep.subr.mxu0 0.0
        %1351 = vmatpush1.msra.mxu0 0.0
        %1352 = vmatprep.subr.mxu0 0.0
        %1353 = vmatpush1.msra.mxu0 0.0
        %1354 = vmatprep.subr.mxu0 0.0
        %1355 = vmatpush1.msra.mxu0 0.0
        %1356 = vmatprep.subr.mxu0 0.0
        %1357 = vmatpush1.msra.mxu0 0.0
        %1358 = vmatprep.subr.mxu0 0.0
        %1359 = vmatpush1.msra.mxu0 0.0
        %1360 = vmatprep.subr.mxu0 0.0
        %1361 = vmatpush1.msra.mxu0 0.0
        %1362 = vmatprep.subr.mxu0 0.0
        %1363 = vmatpush1.msra.mxu0 0.0
        %1364 = vmatprep.subr.mxu0 0.0
        %1365 = vmatpush1.msra.mxu0 0.0
        %1366 = vmatprep.subr.mxu0 0.0
        %1367 = vmatpush1.msra.mxu0 0.0
        %1368 = vmatprep.subr.mxu0 0.0
        %1369 = vmatpush1.msra.mxu0 0.0
        %1370 = vmatprep.subr.mxu0 0.0
        %1371 = vmatpush1.msra.mxu0 0.0
        %1372 = vmatprep.subr.mxu0 0.0
        %1373 = vmatpush1.msra.mxu0 0.0
        %1374 = vmatprep.subr.mxu0 0.0
        %1375 = vmatpush1.msra.mxu0 0.0
        %1376 = vmatprep.subr.mxu0 0.0
        %1377 = vmatpush1.msra.mxu0 0.0
        %1378 = vmatprep.subr.mxu0 0.0
        %1379 = vmatpush1.msra.mxu0 0.0
        %1380 = vmatprep.subr.mxu0 0.0
        %1381 = vmatpush1.msra.mxu0 0.0
        %1382 = vmatprep.subr.mxu0 0.0
        %1383 = vmatpush1.msra.mxu0 0.0
        %1384 = vmatprep.subr.mxu0 0.0
        %1385 = vmatpush1.msra.mxu0 0.0
        %1386 = vmatprep.subr.mxu0 0.0
        %1387 = vmatpush1.msra.mxu0 0.0
        %1388 = vmatprep.subr.mxu0 0.0
        %1389 = vmatpush1.msra.mxu0 0.0
        %1390 = vmatprep.subr.mxu0 0.0
        %1391 = vmatpush1.msra.mxu0 0.0
        %1392 = vmatprep.subr.mxu0 0.0
        %1393 = vmatpush1.msra.mxu0 0.0
        %1394 = vmatprep.subr.mxu0 0.0
        %1395 = vmatpush1.msra.mxu0 0.0
        %1396 = vmatprep.subr.mxu0 0.0
        %1397 = vmatpush1.msra.mxu0 0.0
        %1398 = vmatprep.subr.mxu0 0.0
        %1399 = vmatpush1.msra.mxu0 0.0
        %1400 = vmatprep.subr.mxu0 0.0
        %1401 = vmatpush1.msra.mxu0 0.0
        %1402 = vmatprep.mubr.f32.mxu0 0.0
        %1403 = vmatmul.mubr.f32.gmra.mrb[0].mxu0 %v704
        %v1404 = vpop.f32.mrb[0].mxu0
        %v1405 = vadd.f32 0.0, %v1404
        %v1406 = vpop.f32.mrb[0].mxu0
        %v1407 = vadd.f32 0.0, %v1406
        %1408 = vmatprep.mubr.f32.mxu0 0.0
        %1409 = vmatmul.mubr.f32.gmra.mrb[0].mxu0 %v707
        %v1410 = vpop.f32.mrb[0].mxu0
        %v1411 = vadd.f32 0.0, %v1410
        %v1412 = vpop.f32.mrb[0].mxu0
        %v1413 = vadd.f32 0.0, %v1412
        %1414 = vmatprep.mubr.f32.mxu0 0.0
        %1415 = vmatmul.mubr.f32.gmra.mrb[0].mxu0 %v710
        %v1416 = vpop.f32.mrb[0].mxu0
        %v1417 = vadd.f32 0.0, %v1416
        %v1418 = vpop.f32.mrb[0].mxu0
        %v1419 = vadd.f32 0.0, %v1418
        %1420 = vmatprep.mubr.f32.mxu0 0.0
        %1421 = vmatmul.mubr.f32.gmra.mrb[0].mxu0 %v713
        %v1422 = vpop.f32.mrb[0].mxu0
        %v1423 = vadd.f32 0.0, %v1422
        %v1424 = vpop.f32.mrb[0].mxu0
        %v1425 = vadd.f32 0.0, %v1424
        %1426 = vdwg.mxu0
        %v1428 = vsel %vm702, %v570, 0
        %v1431 = vsel %vm702, %v571, 0
        %v1434 = vsel %vm702, %v572, 0
        %v1437 = vsel %vm702, %v573, 0
        %1439 = vmatprep.subr.mxu0 %v639
        %1440 = vmatpush1.msra.mxu0 %v638
        %1441 = vmatprep.subr.mxu0 %v655
        %1442 = vmatpush1.msra.mxu0 %v654
        %1443 = vmatprep.subr.mxu0 %v671
        %1444 = vmatpush1.msra.mxu0 %v670
        %1445 = vmatprep.subr.mxu0 %v687
        %1446 = vmatpush1.msra.mxu0 %v686
        %1447 = vmatprep.subr.mxu0 0.0
        %1448 = vmatpush1.msra.mxu0 0.0
        %1449 = vmatprep.subr.mxu0 0.0
        %1450 = vmatpush1.msra.mxu0 0.0
        %1451 = vmatprep.subr.mxu0 0.0
        %1452 = vmatpush1.msra.mxu0 0.0
        %1453 = vmatprep.subr.mxu0 0.0
        %1454 = vmatpush1.msra.mxu0 0.0
        %1455 = vmatprep.subr.mxu0 0.0
        %1456 = vmatpush1.msra.mxu0 0.0
        %1457 = vmatprep.subr.mxu0 0.0
        %1458 = vmatpush1.msra.mxu0 0.0
        %1459 = vmatprep.subr.mxu0 0.0
        %1460 = vmatpush1.msra.mxu0 0.0
        %1461 = vmatprep.subr.mxu0 0.0
        %1462 = vmatpush1.msra.mxu0 0.0
        %1463 = vmatprep.subr.mxu0 0.0
        %1464 = vmatpush1.msra.mxu0 0.0
        %1465 = vmatprep.subr.mxu0 0.0
        %1466 = vmatpush1.msra.mxu0 0.0
        %1467 = vmatprep.subr.mxu0 0.0
        %1468 = vmatpush1.msra.mxu0 0.0
        %1469 = vmatprep.subr.mxu0 0.0
        %1470 = vmatpush1.msra.mxu0 0.0
        %1471 = vmatprep.subr.mxu0 0.0
        %1472 = vmatpush1.msra.mxu0 0.0
        %1473 = vmatprep.subr.mxu0 0.0
        %1474 = vmatpush1.msra.mxu0 0.0
        %1475 = vmatprep.subr.mxu0 0.0
        %1476 = vmatpush1.msra.mxu0 0.0
        %1477 = vmatprep.subr.mxu0 0.0
        %1478 = vmatpush1.msra.mxu0 0.0
        %1479 = vmatprep.subr.mxu0 0.0
        %1480 = vmatpush1.msra.mxu0 0.0
        %1481 = vmatprep.subr.mxu0 0.0
        %1482 = vmatpush1.msra.mxu0 0.0
        %1483 = vmatprep.subr.mxu0 0.0
        %1484 = vmatpush1.msra.mxu0 0.0
        %1485 = vmatprep.subr.mxu0 0.0
        %1486 = vmatpush1.msra.mxu0 0.0
        %1487 = vmatprep.subr.mxu0 0.0
        %1488 = vmatpush1.msra.mxu0 0.0
        %1489 = vmatprep.subr.mxu0 0.0
        %1490 = vmatpush1.msra.mxu0 0.0
        %1491 = vmatprep.subr.mxu0 0.0
        %1492 = vmatpush1.msra.mxu0 0.0
        %1493 = vmatprep.subr.mxu0 0.0
        %1494 = vmatpush1.msra.mxu0 0.0
        %1495 = vmatprep.subr.mxu0 0.0
        %1496 = vmatpush1.msra.mxu0 0.0
        %1497 = vmatprep.subr.mxu0 0.0
        %1498 = vmatpush1.msra.mxu0 0.0
        %1499 = vmatprep.subr.mxu0 0.0
        %1500 = vmatpush1.msra.mxu0 0.0
        %1501 = vmatprep.subr.mxu0 0.0
        %1502 = vmatpush1.msra.mxu0 0.0
        %1503 = vmatprep.mubr.f32.mxu0 0.0
        %1504 = vmatmul.mubr.f32.gmra.mrb[0].mxu0 %v1428
        %v1505 = vpop.f32.mrb[0].mxu0
        %v1506 = vadd.f32 0.0, %v1505
        %v1507 = vpop.f32.mrb[0].mxu0
        %v1508 = vadd.f32 0.0, %v1507
        %1509 = vmatprep.mubr.f32.mxu0 0.0
        %1510 = vmatmul.mubr.f32.gmra.mrb[0].mxu0 %v1431
        %v1511 = vpop.f32.mrb[0].mxu0
        %v1512 = vadd.f32 0.0, %v1511
        %v1513 = vpop.f32.mrb[0].mxu0
        %v1514 = vadd.f32 0.0, %v1513
        %1515 = vmatprep.mubr.f32.mxu0 0.0
        %1516 = vmatmul.mubr.f32.gmra.mrb[0].mxu0 %v1434
        %v1517 = vpop.f32.mrb[0].mxu0
        %v1518 = vadd.f32 0.0, %v1517
        %v1519 = vpop.f32.mrb[0].mxu0
        %v1520 = vadd.f32 0.0, %v1519
        %1521 = vmatprep.mubr.f32.mxu0 0.0
        %1522 = vmatmul.mubr.f32.gmra.mrb[0].mxu0 %v1437
        %v1523 = vpop.f32.mrb[0].mxu0
        %v1524 = vadd.f32 0.0, %v1523
        %v1525 = vpop.f32.mrb[0].mxu0
        %v1526 = vadd.f32 0.0, %v1525
        %1527 = vdwg.mxu0
        %1528 = vmatprep.subr.mxu0 %v641
        %1529 = vmatpush1.msra.mxu0 %v640
        %1530 = vmatprep.subr.mxu0 %v657
        %1531 = vmatpush1.msra.mxu0 %v656
        %1532 = vmatprep.subr.mxu0 %v673
        %1533 = vmatpush1.msra.mxu0 %v672
        %1534 = vmatprep.subr.mxu0 %v689
        %1535 = vmatpush1.msra.mxu0 %v688
        %1536 = vmatprep.subr.mxu0 0.0
        %1537 = vmatpush1.msra.mxu0 0.0
        %1538 = vmatprep.subr.mxu0 0.0
        %1539 = vmatpush1.msra.mxu0 0.0
        %1540 = vmatprep.subr.mxu0 0.0
        %1541 = vmatpush1.msra.mxu0 0.0
        %1542 = vmatprep.subr.mxu0 0.0
        %1543 = vmatpush1.msra.mxu0 0.0
        %1544 = vmatprep.subr.mxu0 0.0
        %1545 = vmatpush1.msra.mxu0 0.0
        %1546 = vmatprep.subr.mxu0 0.0
        %1547 = vmatpush1.msra.mxu0 0.0
        %1548 = vmatprep.subr.mxu0 0.0
        %1549 = vmatpush1.msra.mxu0 0.0
        %1550 = vmatprep.subr.mxu0 0.0
        %1551 = vmatpush1.msra.mxu0 0.0
        %1552 = vmatprep.subr.mxu0 0.0
        %1553 = vmatpush1.msra.mxu0 0.0
        %1554 = vmatprep.subr.mxu0 0.0
        %1555 = vmatpush1.msra.mxu0 0.0
        %1556 = vmatprep.subr.mxu0 0.0
        %1557 = vmatpush1.msra.mxu0 0.0
        %1558 = vmatprep.subr.mxu0 0.0
        %1559 = vmatpush1.msra.mxu0 0.0
        %1560 = vmatprep.subr.mxu0 0.0
        %1561 = vmatpush1.msra.mxu0 0.0
        %1562 = vmatprep.subr.mxu0 0.0
        %1563 = vmatpush1.msra.mxu0 0.0
        %1564 = vmatprep.subr.mxu0 0.0
        %1565 = vmatpush1.msra.mxu0 0.0
        %1566 = vmatprep.subr.mxu0 0.0
        %1567 = vmatpush1.msra.mxu0 0.0
        %1568 = vmatprep.subr.mxu0 0.0
        %1569 = vmatpush1.msra.mxu0 0.0
        %1570 = vmatprep.subr.mxu0 0.0
        %1571 = vmatpush1.msra.mxu0 0.0
        %1572 = vmatprep.subr.mxu0 0.0
        %1573 = vmatpush1.msra.mxu0 0.0
        %1574 = vmatprep.subr.mxu0 0.0
        %1575 = vmatpush1.msra.mxu0 0.0
        %1576 = vmatprep.subr.mxu0 0.0
        %1577 = vmatpush1.msra.mxu0 0.0
        %1578 = vmatprep.subr.mxu0 0.0
        %1579 = vmatpush1.msra.mxu0 0.0
        %1580 = vmatprep.subr.mxu0 0.0
        %1581 = vmatpush1.msra.mxu0 0.0
        %1582 = vmatprep.subr.mxu0 0.0
        %1583 = vmatpush1.msra.mxu0 0.0
        %1584 = vmatprep.subr.mxu0 0.0
        %1585 = vmatpush1.msra.mxu0 0.0
        %1586 = vmatprep.subr.mxu0 0.0
        %1587 = vmatpush1.msra.mxu0 0.0
        %1588 = vmatprep.subr.mxu0 0.0
        %1589 = vmatpush1.msra.mxu0 0.0
        %1590 = vmatprep.subr.mxu0 0.0
        %1591 = vmatpush1.msra.mxu0 0.0
        %1592 = vmatprep.mubr.f32.mxu0 0.0
        %1593 = vmatmul.mubr.f32.gmra.mrb[0].mxu0 %v1428
        %v1594 = vpop.f32.mrb[0].mxu0
        %v1595 = vadd.f32 0.0, %v1594
        %v1596 = vpop.f32.mrb[0].mxu0
        %v1597 = vadd.f32 0.0, %v1596
        %1598 = vmatprep.mubr.f32.mxu0 0.0
        %1599 = vmatmul.mubr.f32.gmra.mrb[0].mxu0 %v1431
        %v1600 = vpop.f32.mrb[0].mxu0
        %v1601 = vadd.f32 0.0, %v1600
        %v1602 = vpop.f32.mrb[0].mxu0
        %v1603 = vadd.f32 0.0, %v1602
        %1604 = vmatprep.mubr.f32.mxu0 0.0
        %1605 = vmatmul.mubr.f32.gmra.mrb[0].mxu0 %v1434
        %v1606 = vpop.f32.mrb[0].mxu0
        %v1607 = vadd.f32 0.0, %v1606
        %v1608 = vpop.f32.mrb[0].mxu0
        %v1609 = vadd.f32 0.0, %v1608
        %1610 = vmatprep.mubr.f32.mxu0 0.0
        %1611 = vmatmul.mubr.f32.gmra.mrb[0].mxu0 %v1437
        %v1612 = vpop.f32.mrb[0].mxu0
        %v1613 = vadd.f32 0.0, %v1612
        %v1614 = vpop.f32.mrb[0].mxu0
        %v1615 = vadd.f32 0.0, %v1614
        %1616 = vdwg.mxu0
        %1617 = vmatprep.subr.mxu0 %v643
        %1618 = vmatpush1.msra.mxu0 %v642
        %1619 = vmatprep.subr.mxu0 %v659
        %1620 = vmatpush1.msra.mxu0 %v658
        %1621 = vmatprep.subr.mxu0 %v675
        %1622 = vmatpush1.msra.mxu0 %v674
        %1623 = vmatprep.subr.mxu0 %v691
        %1624 = vmatpush1.msra.mxu0 %v690
        %1625 = vmatprep.subr.mxu0 0.0
        %1626 = vmatpush1.msra.mxu0 0.0
        %1627 = vmatprep.subr.mxu0 0.0
        %1628 = vmatpush1.msra.mxu0 0.0
        %1629 = vmatprep.subr.mxu0 0.0
        %1630 = vmatpush1.msra.mxu0 0.0
        %1631 = vmatprep.subr.mxu0 0.0
        %1632 = vmatpush1.msra.mxu0 0.0
        %1633 = vmatprep.subr.mxu0 0.0
        %1634 = vmatpush1.msra.mxu0 0.0
        %1635 = vmatprep.subr.mxu0 0.0
        %1636 = vmatpush1.msra.mxu0 0.0
        %1637 = vmatprep.subr.mxu0 0.0
        %1638 = vmatpush1.msra.mxu0 0.0
        %1639 = vmatprep.subr.mxu0 0.0
        %1640 = vmatpush1.msra.mxu0 0.0
        %1641 = vmatprep.subr.mxu0 0.0
        %1642 = vmatpush1.msra.mxu0 0.0
        %1643 = vmatprep.subr.mxu0 0.0
        %1644 = vmatpush1.msra.mxu0 0.0
        %1645 = vmatprep.subr.mxu0 0.0
        %1646 = vmatpush1.msra.mxu0 0.0
        %1647 = vmatprep.subr.mxu0 0.0
        %1648 = vmatpush1.msra.mxu0 0.0
        %1649 = vmatprep.subr.mxu0 0.0
        %1650 = vmatpush1.msra.mxu0 0.0
        %1651 = vmatprep.subr.mxu0 0.0
        %1652 = vmatpush1.msra.mxu0 0.0
        %1653 = vmatprep.subr.mxu0 0.0
        %1654 = vmatpush1.msra.mxu0 0.0
        %1655 = vmatprep.subr.mxu0 0.0
        %1656 = vmatpush1.msra.mxu0 0.0
        %1657 = vmatprep.subr.mxu0 0.0
        %1658 = vmatpush1.msra.mxu0 0.0
        %1659 = vmatprep.subr.mxu0 0.0
        %1660 = vmatpush1.msra.mxu0 0.0
        %1661 = vmatprep.subr.mxu0 0.0
        %1662 = vmatpush1.msra.mxu0 0.0
        %1663 = vmatprep.subr.mxu0 0.0
        %1664 = vmatpush1.msra.mxu0 0.0
        %1665 = vmatprep.subr.mxu0 0.0
        %1666 = vmatpush1.msra.mxu0 0.0
        %1667 = vmatprep.subr.mxu0 0.0
        %1668 = vmatpush1.msra.mxu0 0.0
        %1669 = vmatprep.subr.mxu0 0.0
        %1670 = vmatpush1.msra.mxu0 0.0
        %1671 = vmatprep.subr.mxu0 0.0
        %1672 = vmatpush1.msra.mxu0 0.0
        %1673 = vmatprep.subr.mxu0 0.0
        %1674 = vmatpush1.msra.mxu0 0.0
        %1675 = vmatprep.subr.mxu0 0.0
        %1676 = vmatpush1.msra.mxu0 0.0
        %1677 = vmatprep.subr.mxu0 0.0
        %1678 = vmatpush1.msra.mxu0 0.0
        %1679 = vmatprep.subr.mxu0 0.0
        %1680 = vmatpush1.msra.mxu0 0.0
        %1681 = vmatprep.mubr.f32.mxu0 0.0
        %1682 = vmatmul.mubr.f32.gmra.mrb[0].mxu0 %v1428
        %v1683 = vpop.f32.mrb[0].mxu0
        %v1684 = vadd.f32 0.0, %v1683
        %v1685 = vpop.f32.mrb[0].mxu0
        %v1686 = vadd.f32 0.0, %v1685
        %1687 = vmatprep.mubr.f32.mxu0 0.0
        %1688 = vmatmul.mubr.f32.gmra.mrb[0].mxu0 %v1431
        %v1689 = vpop.f32.mrb[0].mxu0
        %v1690 = vadd.f32 0.0, %v1689
        %v1691 = vpop.f32.mrb[0].mxu0
        %v1692 = vadd.f32 0.0, %v1691
        %1693 = vmatprep.mubr.f32.mxu0 0.0
        %1694 = vmatmul.mubr.f32.gmra.mrb[0].mxu0 %v1434
        %v1695 = vpop.f32.mrb[0].mxu0
        %v1696 = vadd.f32 0.0, %v1695
        %v1697 = vpop.f32.mrb[0].mxu0
        %v1698 = vadd.f32 0.0, %v1697
        %1699 = vmatprep.mubr.f32.mxu0 0.0
        %1700 = vmatmul.mubr.f32.gmra.mrb[0].mxu0 %v1437
        %v1701 = vpop.f32.mrb[0].mxu0
        %v1702 = vadd.f32 0.0, %v1701
        %v1703 = vpop.f32.mrb[0].mxu0
        %v1704 = vadd.f32 0.0, %v1703
        %1705 = vdwg.mxu0
        %1706 = vmatprep.subr.mxu0 %v645
        %1707 = vmatpush1.msra.mxu0 %v644
        %1708 = vmatprep.subr.mxu0 %v661
        %1709 = vmatpush1.msra.mxu0 %v660
        %1710 = vmatprep.subr.mxu0 %v677
        %1711 = vmatpush1.msra.mxu0 %v676
        %1712 = vmatprep.subr.mxu0 %v693
        %1713 = vmatpush1.msra.mxu0 %v692
        %1714 = vmatprep.subr.mxu0 0.0
        %1715 = vmatpush1.msra.mxu0 0.0
        %1716 = vmatprep.subr.mxu0 0.0
        %1717 = vmatpush1.msra.mxu0 0.0
        %1718 = vmatprep.subr.mxu0 0.0
        %1719 = vmatpush1.msra.mxu0 0.0
        %1720 = vmatprep.subr.mxu0 0.0
        %1721 = vmatpush1.msra.mxu0 0.0
        %1722 = vmatprep.subr.mxu0 0.0
        %1723 = vmatpush1.msra.mxu0 0.0
        %1724 = vmatprep.subr.mxu0 0.0
        %1725 = vmatpush1.msra.mxu0 0.0
        %1726 = vmatprep.subr.mxu0 0.0
        %1727 = vmatpush1.msra.mxu0 0.0
        %1728 = vmatprep.subr.mxu0 0.0
        %1729 = vmatpush1.msra.mxu0 0.0
        %1730 = vmatprep.subr.mxu0 0.0
        %1731 = vmatpush1.msra.mxu0 0.0
        %1732 = vmatprep.subr.mxu0 0.0
        %1733 = vmatpush1.msra.mxu0 0.0
        %1734 = vmatprep.subr.mxu0 0.0
        %1735 = vmatpush1.msra.mxu0 0.0
        %1736 = vmatprep.subr.mxu0 0.0
        %1737 = vmatpush1.msra.mxu0 0.0
        %1738 = vmatprep.subr.mxu0 0.0
        %1739 = vmatpush1.msra.mxu0 0.0
        %1740 = vmatprep.subr.mxu0 0.0
        %1741 = vmatpush1.msra.mxu0 0.0
        %1742 = vmatprep.subr.mxu0 0.0
        %1743 = vmatpush1.msra.mxu0 0.0
        %1744 = vmatprep.subr.mxu0 0.0
        %1745 = vmatpush1.msra.mxu0 0.0
        %1746 = vmatprep.subr.mxu0 0.0
        %1747 = vmatpush1.msra.mxu0 0.0
        %1748 = vmatprep.subr.mxu0 0.0
        %1749 = vmatpush1.msra.mxu0 0.0
        %1750 = vmatprep.subr.mxu0 0.0
        %1751 = vmatpush1.msra.mxu0 0.0
        %1752 = vmatprep.subr.mxu0 0.0
        %1753 = vmatpush1.msra.mxu0 0.0
        %1754 = vmatprep.subr.mxu0 0.0
        %1755 = vmatpush1.msra.mxu0 0.0
        %1756 = vmatprep.subr.mxu0 0.0
        %1757 = vmatpush1.msra.mxu0 0.0
        %1758 = vmatprep.subr.mxu0 0.0
        %1759 = vmatpush1.msra.mxu0 0.0
        %1760 = vmatprep.subr.mxu0 0.0
        %1761 = vmatpush1.msra.mxu0 0.0
        %1762 = vmatprep.subr.mxu0 0.0
        %1763 = vmatpush1.msra.mxu0 0.0
        %1764 = vmatprep.subr.mxu0 0.0
        %1765 = vmatpush1.msra.mxu0 0.0
        %1766 = vmatprep.subr.mxu0 0.0
        %1767 = vmatpush1.msra.mxu0 0.0
        %1768 = vmatprep.subr.mxu0 0.0
        %1769 = vmatpush1.msra.mxu0 0.0
        %1770 = vmatprep.mubr.f32.mxu0 0.0
        %1771 = vmatmul.mubr.f32.gmra.mrb[0].mxu0 %v1428
        %v1772 = vpop.f32.mrb[0].mxu0
        %v1773 = vadd.f32 0.0, %v1772
        %v1774 = vpop.f32.mrb[0].mxu0
        %v1775 = vadd.f32 0.0, %v1774
        %1776 = vmatprep.mubr.f32.mxu0 0.0
        %1777 = vmatmul.mubr.f32.gmra.mrb[0].mxu0 %v1431
        %v1778 = vpop.f32.mrb[0].mxu0
        %v1779 = vadd.f32 0.0, %v1778
        %v1780 = vpop.f32.mrb[0].mxu0
        %v1781 = vadd.f32 0.0, %v1780
        %1782 = vmatprep.mubr.f32.mxu0 0.0
        %1783 = vmatmul.mubr.f32.gmra.mrb[0].mxu0 %v1434
        %v1784 = vpop.f32.mrb[0].mxu0
        %v1785 = vadd.f32 0.0, %v1784
        %v1786 = vpop.f32.mrb[0].mxu0
        %v1787 = vadd.f32 0.0, %v1786
        %1788 = vmatprep.mubr.f32.mxu0 0.0
        %1789 = vmatmul.mubr.f32.gmra.mrb[0].mxu0 %v1437
        %v1790 = vpop.f32.mrb[0].mxu0
        %v1791 = vadd.f32 0.0, %v1790
        %v1792 = vpop.f32.mrb[0].mxu0
        %v1793 = vadd.f32 0.0, %v1792
        %1794 = vdwg.mxu0
        %1795 = vmatprep.subr.mxu0 %v647
        %1796 = vmatpush1.msra.mxu0 %v646
        %1797 = vmatprep.subr.mxu0 %v663
        %1798 = vmatpush1.msra.mxu0 %v662
        %1799 = vmatprep.subr.mxu0 %v679
        %1800 = vmatpush1.msra.mxu0 %v678
        %1801 = vmatprep.subr.mxu0 %v695
        %1802 = vmatpush1.msra.mxu0 %v694
        %1803 = vmatprep.subr.mxu0 0.0
        %1804 = vmatpush1.msra.mxu0 0.0
        %1805 = vmatprep.subr.mxu0 0.0
        %1806 = vmatpush1.msra.mxu0 0.0
        %1807 = vmatprep.subr.mxu0 0.0
        %1808 = vmatpush1.msra.mxu0 0.0
        %1809 = vmatprep.subr.mxu0 0.0
        %1810 = vmatpush1.msra.mxu0 0.0
        %1811 = vmatprep.subr.mxu0 0.0
        %1812 = vmatpush1.msra.mxu0 0.0
        %1813 = vmatprep.subr.mxu0 0.0
        %1814 = vmatpush1.msra.mxu0 0.0
        %1815 = vmatprep.subr.mxu0 0.0
        %1816 = vmatpush1.msra.mxu0 0.0
        %1817 = vmatprep.subr.mxu0 0.0
        %1818 = vmatpush1.msra.mxu0 0.0
        %1819 = vmatprep.subr.mxu0 0.0
        %1820 = vmatpush1.msra.mxu0 0.0
        %1821 = vmatprep.subr.mxu0 0.0
        %1822 = vmatpush1.msra.mxu0 0.0
        %1823 = vmatprep.subr.mxu0 0.0
        %1824 = vmatpush1.msra.mxu0 0.0
        %1825 = vmatprep.subr.mxu0 0.0
        %1826 = vmatpush1.msra.mxu0 0.0
        %1827 = vmatprep.subr.mxu0 0.0
        %1828 = vmatpush1.msra.mxu0 0.0
        %1829 = vmatprep.subr.mxu0 0.0
        %1830 = vmatpush1.msra.mxu0 0.0
        %1831 = vmatprep.subr.mxu0 0.0
        %1832 = vmatpush1.msra.mxu0 0.0
        %1833 = vmatprep.subr.mxu0 0.0
        %1834 = vmatpush1.msra.mxu0 0.0
        %1835 = vmatprep.subr.mxu0 0.0
        %1836 = vmatpush1.msra.mxu0 0.0
        %1837 = vmatprep.subr.mxu0 0.0
        %1838 = vmatpush1.msra.mxu0 0.0
        %1839 = vmatprep.subr.mxu0 0.0
        %1840 = vmatpush1.msra.mxu0 0.0
        %1841 = vmatprep.subr.mxu0 0.0
        %1842 = vmatpush1.msra.mxu0 0.0
        %1843 = vmatprep.subr.mxu0 0.0
        %1844 = vmatpush1.msra.mxu0 0.0
        %1845 = vmatprep.subr.mxu0 0.0
        %1846 = vmatpush1.msra.mxu0 0.0
        %1847 = vmatprep.subr.mxu0 0.0
        %1848 = vmatpush1.msra.mxu0 0.0
        %1849 = vmatprep.subr.mxu0 0.0
        %1850 = vmatpush1.msra.mxu0 0.0
        %1851 = vmatprep.subr.mxu0 0.0
        %1852 = vmatpush1.msra.mxu0 0.0
        %1853 = vmatprep.subr.mxu0 0.0
        %1854 = vmatpush1.msra.mxu0 0.0
        %1855 = vmatprep.subr.mxu0 0.0
        %1856 = vmatpush1.msra.mxu0 0.0
        %1857 = vmatprep.subr.mxu0 0.0
        %1858 = vmatpush1.msra.mxu0 0.0
        %1859 = vmatprep.mubr.f32.mxu0 0.0
        %1860 = vmatmul.mubr.f32.gmra.mrb[0].mxu0 %v1428
        %v1861 = vpop.f32.mrb[0].mxu0
        %v1862 = vadd.f32 0.0, %v1861
        %v1863 = vpop.f32.mrb[0].mxu0
        %v1864 = vadd.f32 0.0, %v1863
        %1865 = vmatprep.mubr.f32.mxu0 0.0
        %1866 = vmatmul.mubr.f32.gmra.mrb[0].mxu0 %v1431
        %v1867 = vpop.f32.mrb[0].mxu0
        %v1868 = vadd.f32 0.0, %v1867
        %v1869 = vpop.f32.mrb[0].mxu0
        %v1870 = vadd.f32 0.0, %v1869
        %1871 = vmatprep.mubr.f32.mxu0 0.0
        %1872 = vmatmul.mubr.f32.gmra.mrb[0].mxu0 %v1434
        %v1873 = vpop.f32.mrb[0].mxu0
        %v1874 = vadd.f32 0.0, %v1873
        %v1875 = vpop.f32.mrb[0].mxu0
        %v1876 = vadd.f32 0.0, %v1875
        %1877 = vmatprep.mubr.f32.mxu0 0.0
        %1878 = vmatmul.mubr.f32.gmra.mrb[0].mxu0 %v1437
        %v1879 = vpop.f32.mrb[0].mxu0
        %v1880 = vadd.f32 0.0, %v1879
        %v1881 = vpop.f32.mrb[0].mxu0
        %v1882 = vadd.f32 0.0, %v1881
        %1883 = vdwg.mxu0
        %1884 = vmatprep.subr.mxu0 %v649
        %1885 = vmatpush1.msra.mxu0 %v648
        %1886 = vmatprep.subr.mxu0 %v665
        %1887 = vmatpush1.msra.mxu0 %v664
        %1888 = vmatprep.subr.mxu0 %v681
        %1889 = vmatpush1.msra.mxu0 %v680
        %1890 = vmatprep.subr.mxu0 %v697
        %1891 = vmatpush1.msra.mxu0 %v696
        %1892 = vmatprep.subr.mxu0 0.0
        %1893 = vmatpush1.msra.mxu0 0.0
        %1894 = vmatprep.subr.mxu0 0.0
        %1895 = vmatpush1.msra.mxu0 0.0
        %1896 = vmatprep.subr.mxu0 0.0
        %1897 = vmatpush1.msra.mxu0 0.0
        %1898 = vmatprep.subr.mxu0 0.0
        %1899 = vmatpush1.msra.mxu0 0.0
        %1900 = vmatprep.subr.mxu0 0.0
        %1901 = vmatpush1.msra.mxu0 0.0
        %1902 = vmatprep.subr.mxu0 0.0
        %1903 = vmatpush1.msra.mxu0 0.0
        %1904 = vmatprep.subr.mxu0 0.0
        %1905 = vmatpush1.msra.mxu0 0.0
        %1906 = vmatprep.subr.mxu0 0.0
        %1907 = vmatpush1.msra.mxu0 0.0
        %1908 = vmatprep.subr.mxu0 0.0
        %1909 = vmatpush1.msra.mxu0 0.0
        %1910 = vmatprep.subr.mxu0 0.0
        %1911 = vmatpush1.msra.mxu0 0.0
        %1912 = vmatprep.subr.mxu0 0.0
        %1913 = vmatpush1.msra.mxu0 0.0
        %1914 = vmatprep.subr.mxu0 0.0
        %1915 = vmatpush1.msra.mxu0 0.0
        %1916 = vmatprep.subr.mxu0 0.0
        %1917 = vmatpush1.msra.mxu0 0.0
        %1918 = vmatprep.subr.mxu0 0.0
        %1919 = vmatpush1.msra.mxu0 0.0
        %1920 = vmatprep.subr.mxu0 0.0
        %1921 = vmatpush1.msra.mxu0 0.0
        %1922 = vmatprep.subr.mxu0 0.0
        %1923 = vmatpush1.msra.mxu0 0.0
        %1924 = vmatprep.subr.mxu0 0.0
        %1925 = vmatpush1.msra.mxu0 0.0
        %1926 = vmatprep.subr.mxu0 0.0
        %1927 = vmatpush1.msra.mxu0 0.0
        %1928 = vmatprep.subr.mxu0 0.0
        %1929 = vmatpush1.msra.mxu0 0.0
        %1930 = vmatprep.subr.mxu0 0.0
        %1931 = vmatpush1.msra.mxu0 0.0
        %1932 = vmatprep.subr.mxu0 0.0
        %1933 = vmatpush1.msra.mxu0 0.0
        %1934 = vmatprep.subr.mxu0 0.0
        %1935 = vmatpush1.msra.mxu0 0.0
        %1936 = vmatprep.subr.mxu0 0.0
        %1937 = vmatpush1.msra.mxu0 0.0
        %1938 = vmatprep.subr.mxu0 0.0
        %1939 = vmatpush1.msra.mxu0 0.0
        %1940 = vmatprep.subr.mxu0 0.0
        %1941 = vmatpush1.msra.mxu0 0.0
        %1942 = vmatprep.subr.mxu0 0.0
        %1943 = vmatpush1.msra.mxu0 0.0
        %1944 = vmatprep.subr.mxu0 0.0
        %1945 = vmatpush1.msra.mxu0 0.0
        %1946 = vmatprep.subr.mxu0 0.0
        %1947 = vmatpush1.msra.mxu0 0.0
        %1948 = vmatprep.mubr.f32.mxu0 0.0
        %1949 = vmatmul.mubr.f32.gmra.mrb[0].mxu0 %v1428
        %v1950 = vpop.f32.mrb[0].mxu0
        %v1951 = vadd.f32 0.0, %v1950
        %v1952 = vpop.f32.mrb[0].mxu0
        %v1953 = vadd.f32 0.0, %v1952
        %1954 = vmatprep.mubr.f32.mxu0 0.0
        %1955 = vmatmul.mubr.f32.gmra.mrb[0].mxu0 %v1431
        %v1956 = vpop.f32.mrb[0].mxu0
        %v1957 = vadd.f32 0.0, %v1956
        %v1958 = vpop.f32.mrb[0].mxu0
        %v1959 = vadd.f32 0.0, %v1958
        %1960 = vmatprep.mubr.f32.mxu0 0.0
        %1961 = vmatmul.mubr.f32.gmra.mrb[0].mxu0 %v1434
        %v1962 = vpop.f32.mrb[0].mxu0
        %v1963 = vadd.f32 0.0, %v1962
        %v1964 = vpop.f32.mrb[0].mxu0
        %v1965 = vadd.f32 0.0, %v1964
        %1966 = vmatprep.mubr.f32.mxu0 0.0
        %1967 = vmatmul.mubr.f32.gmra.mrb[0].mxu0 %v1437
        %v1968 = vpop.f32.mrb[0].mxu0
        %v1969 = vadd.f32 0.0, %v1968
        %v1970 = vpop.f32.mrb[0].mxu0
        %v1971 = vadd.f32 0.0, %v1970
        %1972 = vdwg.mxu0
        %1973 = vmatprep.subr.mxu0 %v651
        %1974 = vmatpush1.msra.mxu0 %v650
        %1975 = vmatprep.subr.mxu0 %v667
        %1976 = vmatpush1.msra.mxu0 %v666
        %1977 = vmatprep.subr.mxu0 %v683
        %1978 = vmatpush1.msra.mxu0 %v682
        %1979 = vmatprep.subr.mxu0 %v699
        %1980 = vmatpush1.msra.mxu0 %v698
        %1981 = vmatprep.subr.mxu0 0.0
        %1982 = vmatpush1.msra.mxu0 0.0
        %1983 = vmatprep.subr.mxu0 0.0
        %1984 = vmatpush1.msra.mxu0 0.0
        %1985 = vmatprep.subr.mxu0 0.0
        %1986 = vmatpush1.msra.mxu0 0.0
        %1987 = vmatprep.subr.mxu0 0.0
        %1988 = vmatpush1.msra.mxu0 0.0
        %1989 = vmatprep.subr.mxu0 0.0
        %1990 = vmatpush1.msra.mxu0 0.0
        %1991 = vmatprep.subr.mxu0 0.0
        %1992 = vmatpush1.msra.mxu0 0.0
        %1993 = vmatprep.subr.mxu0 0.0
        %1994 = vmatpush1.msra.mxu0 0.0
        %1995 = vmatprep.subr.mxu0 0.0
        %1996 = vmatpush1.msra.mxu0 0.0
        %1997 = vmatprep.subr.mxu0 0.0
        %1998 = vmatpush1.msra.mxu0 0.0
        %1999 = vmatprep.subr.mxu0 0.0
        %2000 = vmatpush1.msra.mxu0 0.0
        %2001 = vmatprep.subr.mxu0 0.0
        %2002 = vmatpush1.msra.mxu0 0.0
        %2003 = vmatprep.subr.mxu0 0.0
        %2004 = vmatpush1.msra.mxu0 0.0
        %2005 = vmatprep.subr.mxu0 0.0
        %2006 = vmatpush1.msra.mxu0 0.0
        %2007 = vmatprep.subr.mxu0 0.0
        %2008 = vmatpush1.msra.mxu0 0.0
        %2009 = vmatprep.subr.mxu0 0.0
        %2010 = vmatpush1.msra.mxu0 0.0
        %2011 = vmatprep.subr.mxu0 0.0
        %2012 = vmatpush1.msra.mxu0 0.0
        %2013 = vmatprep.subr.mxu0 0.0
        %2014 = vmatpush1.msra.mxu0 0.0
        %2015 = vmatprep.subr.mxu0 0.0
        %2016 = vmatpush1.msra.mxu0 0.0
        %2017 = vmatprep.subr.mxu0 0.0
        %2018 = vmatpush1.msra.mxu0 0.0
        %2019 = vmatprep.subr.mxu0 0.0
        %2020 = vmatpush1.msra.mxu0 0.0
        %2021 = vmatprep.subr.mxu0 0.0
        %2022 = vmatpush1.msra.mxu0 0.0
        %2023 = vmatprep.subr.mxu0 0.0
        %2024 = vmatpush1.msra.mxu0 0.0
        %2025 = vmatprep.subr.mxu0 0.0
        %2026 = vmatpush1.msra.mxu0 0.0
        %2027 = vmatprep.subr.mxu0 0.0
        %2028 = vmatpush1.msra.mxu0 0.0
        %2029 = vmatprep.subr.mxu0 0.0
        %2030 = vmatpush1.msra.mxu0 0.0
        %2031 = vmatprep.subr.mxu0 0.0
        %2032 = vmatpush1.msra.mxu0 0.0
        %2033 = vmatprep.subr.mxu0 0.0
        %2034 = vmatpush1.msra.mxu0 0.0
        %2035 = vmatprep.subr.mxu0 0.0
        %2036 = vmatpush1.msra.mxu0 0.0
        %2037 = vmatprep.mubr.f32.mxu0 0.0
        %2038 = vmatmul.mubr.f32.gmra.mrb[0].mxu0 %v1428
        %v2039 = vpop.f32.mrb[0].mxu0
        %v2040 = vadd.f32 0.0, %v2039
        %v2041 = vpop.f32.mrb[0].mxu0
        %v2042 = vadd.f32 0.0, %v2041
        %2043 = vmatprep.mubr.f32.mxu0 0.0
        %2044 = vmatmul.mubr.f32.gmra.mrb[0].mxu0 %v1431
        %v2045 = vpop.f32.mrb[0].mxu0
        %v2046 = vadd.f32 0.0, %v2045
        %v2047 = vpop.f32.mrb[0].mxu0
        %v2048 = vadd.f32 0.0, %v2047
        %2049 = vmatprep.mubr.f32.mxu0 0.0
        %2050 = vmatmul.mubr.f32.gmra.mrb[0].mxu0 %v1434
        %v2051 = vpop.f32.mrb[0].mxu0
        %v2052 = vadd.f32 0.0, %v2051
        %v2053 = vpop.f32.mrb[0].mxu0
        %v2054 = vadd.f32 0.0, %v2053
        %2055 = vmatprep.mubr.f32.mxu0 0.0
        %2056 = vmatmul.mubr.f32.gmra.mrb[0].mxu0 %v1437
        %v2057 = vpop.f32.mrb[0].mxu0
        %v2058 = vadd.f32 0.0, %v2057
        %v2059 = vpop.f32.mrb[0].mxu0
        %v2060 = vadd.f32 0.0, %v2059
        %2061 = vdwg.mxu0
        %2062 = vmatprep.subr.mxu0 %v653
        %2063 = vmatpush1.msra.mxu0 %v652
        %2064 = vmatprep.subr.mxu0 %v669
        %2065 = vmatpush1.msra.mxu0 %v668
        %2066 = vmatprep.subr.mxu0 %v685
        %2067 = vmatpush1.msra.mxu0 %v684
        %2068 = vmatprep.subr.mxu0 %v701
        %2069 = vmatpush1.msra.mxu0 %v700
        %2070 = vmatprep.subr.mxu0 0.0
        %2071 = vmatpush1.msra.mxu0 0.0
        %2072 = vmatprep.subr.mxu0 0.0
        %2073 = vmatpush1.msra.mxu0 0.0
        %2074 = vmatprep.subr.mxu0 0.0
        %2075 = vmatpush1.msra.mxu0 0.0
        %2076 = vmatprep.subr.mxu0 0.0
        %2077 = vmatpush1.msra.mxu0 0.0
        %2078 = vmatprep.subr.mxu0 0.0
        %2079 = vmatpush1.msra.mxu0 0.0
        %2080 = vmatprep.subr.mxu0 0.0
        %2081 = vmatpush1.msra.mxu0 0.0
        %2082 = vmatprep.subr.mxu0 0.0
        %2083 = vmatpush1.msra.mxu0 0.0
        %2084 = vmatprep.subr.mxu0 0.0
        %2085 = vmatpush1.msra.mxu0 0.0
        %2086 = vmatprep.subr.mxu0 0.0
        %2087 = vmatpush1.msra.mxu0 0.0
        %2088 = vmatprep.subr.mxu0 0.0
        %2089 = vmatpush1.msra.mxu0 0.0
        %2090 = vmatprep.subr.mxu0 0.0
        %2091 = vmatpush1.msra.mxu0 0.0
        %2092 = vmatprep.subr.mxu0 0.0
        %2093 = vmatpush1.msra.mxu0 0.0
        %2094 = vmatprep.subr.mxu0 0.0
        %2095 = vmatpush1.msra.mxu0 0.0
        %2096 = vmatprep.subr.mxu0 0.0
        %2097 = vmatpush1.msra.mxu0 0.0
        %2098 = vmatprep.subr.mxu0 0.0
        %2099 = vmatpush1.msra.mxu0 0.0
        %2100 = vmatprep.subr.mxu0 0.0
        %2101 = vmatpush1.msra.mxu0 0.0
        %2102 = vmatprep.subr.mxu0 0.0
        %2103 = vmatpush1.msra.mxu0 0.0
        %2104 = vmatprep.subr.mxu0 0.0
        %2105 = vmatpush1.msra.mxu0 0.0
        %2106 = vmatprep.subr.mxu0 0.0
        %2107 = vmatpush1.msra.mxu0 0.0
        %2108 = vmatprep.subr.mxu0 0.0
        %2109 = vmatpush1.msra.mxu0 0.0
        %2110 = vmatprep.subr.mxu0 0.0
        %2111 = vmatpush1.msra.mxu0 0.0
        %2112 = vmatprep.subr.mxu0 0.0
        %2113 = vmatpush1.msra.mxu0 0.0
        %2114 = vmatprep.subr.mxu0 0.0
        %2115 = vmatpush1.msra.mxu0 0.0
        %2116 = vmatprep.subr.mxu0 0.0
        %2117 = vmatpush1.msra.mxu0 0.0
        %2118 = vmatprep.subr.mxu0 0.0
        %2119 = vmatpush1.msra.mxu0 0.0
        %2120 = vmatprep.subr.mxu0 0.0
        %2121 = vmatpush1.msra.mxu0 0.0
        %2122 = vmatprep.subr.mxu0 0.0
        %2123 = vmatpush1.msra.mxu0 0.0
        %2124 = vmatprep.subr.mxu0 0.0
        %2125 = vmatpush1.msra.mxu0 0.0
        %2126 = vmatprep.mubr.f32.mxu0 0.0
        %2127 = vmatmul.mubr.f32.gmra.mrb[0].mxu0 %v1428
        %v2128 = vpop.f32.mrb[0].mxu0
        %v2129 = vadd.f32 0.0, %v2128
        %v2130 = vpop.f32.mrb[0].mxu0
        %v2131 = vadd.f32 0.0, %v2130
        %2132 = vmatprep.mubr.f32.mxu0 0.0
        %2133 = vmatmul.mubr.f32.gmra.mrb[0].mxu0 %v1431
        %v2134 = vpop.f32.mrb[0].mxu0
        %v2135 = vadd.f32 0.0, %v2134
        %v2136 = vpop.f32.mrb[0].mxu0
        %v2137 = vadd.f32 0.0, %v2136
        %2138 = vmatprep.mubr.f32.mxu0 0.0
        %2139 = vmatmul.mubr.f32.gmra.mrb[0].mxu0 %v1434
        %v2140 = vpop.f32.mrb[0].mxu0
        %v2141 = vadd.f32 0.0, %v2140
        %v2142 = vpop.f32.mrb[0].mxu0
        %v2143 = vadd.f32 0.0, %v2142
        %2144 = vmatprep.mubr.f32.mxu0 0.0
        %2145 = vmatmul.mubr.f32.gmra.mrb[0].mxu0 %v1437
        %v2146 = vpop.f32.mrb[0].mxu0
        %v2147 = vadd.f32 0.0, %v2146
        %v2148 = vpop.f32.mrb[0].mxu0
        %v2149 = vadd.f32 0.0, %v2148
        %2150 = vdwg.mxu0
        %v2151 = vsub.f32 %v782, %v1506
        %v2152 = vsub.f32 %v784, %v1508
        %v2153 = vsub.f32 %v871, %v1595
        %v2154 = vsub.f32 %v873, %v1597
        %v2155 = vsub.f32 %v960, %v1684
        %v2156 = vsub.f32 %v962, %v1686
        %v2157 = vsub.f32 %v1049, %v1773
        %v2158 = vsub.f32 %v1051, %v1775
        %v2159 = vsub.f32 %v1138, %v1862
        %v2160 = vsub.f32 %v1140, %v1864
        %v2161 = vsub.f32 %v1227, %v1951
        %v2162 = vsub.f32 %v1229, %v1953
        %v2163 = vsub.f32 %v1316, %v2040
        %v2164 = vsub.f32 %v1318, %v2042
        %v2165 = vsub.f32 %v1405, %v2129
        %v2166 = vsub.f32 %v1407, %v2131
        %v2167 = vsub.f32 %v788, %v1512
        %v2168 = vsub.f32 %v790, %v1514
        %v2169 = vsub.f32 %v877, %v1601
        %v2170 = vsub.f32 %v879, %v1603
        %v2171 = vsub.f32 %v966, %v1690
        %v2172 = vsub.f32 %v968, %v1692
        %v2173 = vsub.f32 %v1055, %v1779
        %v2174 = vsub.f32 %v1057, %v1781
        %v2175 = vsub.f32 %v1144, %v1868
        %v2176 = vsub.f32 %v1146, %v1870
        %v2177 = vsub.f32 %v1233, %v1957
        %v2178 = vsub.f32 %v1235, %v1959
        %v2179 = vsub.f32 %v1322, %v2046
        %v2180 = vsub.f32 %v1324, %v2048
        %v2181 = vsub.f32 %v1411, %v2135
        %v2182 = vsub.f32 %v1413, %v2137
        %v2183 = vsub.f32 %v794, %v1518
        %v2184 = vsub.f32 %v796, %v1520
        %v2185 = vsub.f32 %v883, %v1607
        %v2186 = vsub.f32 %v885, %v1609
        %v2187 = vsub.f32 %v972, %v1696
        %v2188 = vsub.f32 %v974, %v1698
        %v2189 = vsub.f32 %v1061, %v1785
        %v2190 = vsub.f32 %v1063, %v1787
        %v2191 = vsub.f32 %v1150, %v1874
        %v2192 = vsub.f32 %v1152, %v1876
        %v2193 = vsub.f32 %v1239, %v1963
        %v2194 = vsub.f32 %v1241, %v1965
        %v2195 = vsub.f32 %v1328, %v2052
        %v2196 = vsub.f32 %v1330, %v2054
        %v2197 = vsub.f32 %v1417, %v2141
        %v2198 = vsub.f32 %v1419, %v2143
        %v2199 = vsub.f32 %v800, %v1524
        %v2200 = vsub.f32 %v802, %v1526
        %v2201 = vsub.f32 %v889, %v1613
        %v2202 = vsub.f32 %v891, %v1615
        %v2203 = vsub.f32 %v978, %v1702
        %v2204 = vsub.f32 %v980, %v1704
        %v2205 = vsub.f32 %v1067, %v1791
        %v2206 = vsub.f32 %v1069, %v1793
        %v2207 = vsub.f32 %v1156, %v1880
        %v2208 = vsub.f32 %v1158, %v1882
        %v2209 = vsub.f32 %v1245, %v1969
        %v2210 = vsub.f32 %v1247, %v1971
        %v2211 = vsub.f32 %v1334, %v2058
        %v2212 = vsub.f32 %v1336, %v2060
        %v2213 = vsub.f32 %v1423, %v2147
        %v2214 = vsub.f32 %v1425, %v2149
        %2215 = vst [vmem:[%s555] sm:$0xff] %v2151
        %2216 = vst [vmem:[%s555 + $0x8] sm:$0xff] %v2152
        %2217 = vst [vmem:[%s555 + $0x10] sm:$0xff] %v2153
        %2218 = vst [vmem:[%s555 + $0x18] sm:$0xff] %v2154
        %2219 = vst [vmem:[%s555 + $0x20] sm:$0xff] %v2155
        %2220 = vst [vmem:[%s555 + $0x28] sm:$0xff] %v2156
        %2221 = vst [vmem:[%s555 + $0x30] sm:$0xff] %v2157
        %2222 = vst [vmem:[%s555 + $0x38] sm:$0xff] %v2158
        %2223 = vst [vmem:[%s555 + $0x40] sm:$0xff] %v2159
        %2224 = vst [vmem:[%s555 + $0x48] sm:$0xff] %v2160
        %2225 = vst [vmem:[%s555 + $0x50] sm:$0xff] %v2161
        %2226 = vst [vmem:[%s555 + $0x58] sm:$0xff] %v2162
        %2227 = vst [vmem:[%s555 + $0x60] sm:$0xff] %v2163
        %2228 = vst [vmem:[%s555 + $0x68] sm:$0xff] %v2164
        %2229 = vst [vmem:[%s555 + $0x70] sm:$0xff] %v2165
        %2230 = vst [vmem:[%s555 + $0x78] sm:$0xff] %v2166
        %2231 = vst [vmem:[%s555 + $0x80] sm:$0xff] %v2167
        %2232 = vst [vmem:[%s555 + $0x88] sm:$0xff] %v2168
        %2233 = vst [vmem:[%s555 + $0x90] sm:$0xff] %v2169
        %2234 = vst [vmem:[%s555 + $0x98] sm:$0xff] %v2170
        %2235 = vst [vmem:[%s555 + $0xa0] sm:$0xff] %v2171
        %2236 = vst [vmem:[%s555 + $0xa8] sm:$0xff] %v2172
        %2237 = vst [vmem:[%s555 + $0xb0] sm:$0xff] %v2173
        %2238 = vst [vmem:[%s555 + $0xb8] sm:$0xff] %v2174
        %2239 = vst [vmem:[%s555 + $0xc0] sm:$0xff] %v2175
        %2240 = vst [vmem:[%s555 + $0xc8] sm:$0xff] %v2176
        %2241 = vst [vmem:[%s555 + $0xd0] sm:$0xff] %v2177
        %2242 = vst [vmem:[%s555 + $0xd8] sm:$0xff] %v2178
        %2243 = vst [vmem:[%s555 + $0xe0] sm:$0xff] %v2179
        %2244 = vst [vmem:[%s555 + $0xe8] sm:$0xff] %v2180
        %2245 = vst [vmem:[%s555 + $0xf0] sm:$0xff] %v2181
        %2246 = vst [vmem:[%s555 + $0xf8] sm:$0xff] %v2182
        %2247 = vst [vmem:[%s555 + $0x100] sm:$0xff] %v2183
        %2248 = vst [vmem:[%s555 + $0x108] sm:$0xff] %v2184
        %2249 = vst [vmem:[%s555 + $0x110] sm:$0xff] %v2185
        %2250 = vst [vmem:[%s555 + $0x118] sm:$0xff] %v2186
        %2251 = vst [vmem:[%s555 + $0x120] sm:$0xff] %v2187
        %2252 = vst [vmem:[%s555 + $0x128] sm:$0xff] %v2188
        %2253 = vst [vmem:[%s555 + $0x130] sm:$0xff] %v2189
        %2254 = vst [vmem:[%s555 + $0x138] sm:$0xff] %v2190
        %2255 = vst [vmem:[%s555 + $0x140] sm:$0xff] %v2191
        %2256 = vst [vmem:[%s555 + $0x148] sm:$0xff] %v2192
        %2257 = vst [vmem:[%s555 + $0x150] sm:$0xff] %v2193
        %2258 = vst [vmem:[%s555 + $0x158] sm:$0xff] %v2194
        %2259 = vst [vmem:[%s555 + $0x160] sm:$0xff] %v2195
        %2260 = vst [vmem:[%s555 + $0x168] sm:$0xff] %v2196
        %2261 = vst [vmem:[%s555 + $0x170] sm:$0xff] %v2197
        %2262 = vst [vmem:[%s555 + $0x178] sm:$0xff] %v2198
        %2263 = vst [vmem:[%s555 + $0x180] sm:$0xff] %v2199
        %2264 = vst [vmem:[%s555 + $0x188] sm:$0xff] %v2200
        %2265 = vst [vmem:[%s555 + $0x190] sm:$0xff] %v2201
        %2266 = vst [vmem:[%s555 + $0x198] sm:$0xff] %v2202
        %2267 = vst [vmem:[%s555 + $0x1a0] sm:$0xff] %v2203
        %2268 = vst [vmem:[%s555 + $0x1a8] sm:$0xff] %v2204
        %2269 = vst [vmem:[%s555 + $0x1b0] sm:$0xff] %v2205
        %2270 = vst [vmem:[%s555 + $0x1b8] sm:$0xff] %v2206
        %2271 = vst [vmem:[%s555 + $0x1c0] sm:$0xff] %v2207
        %2272 = vst [vmem:[%s555 + $0x1c8] sm:$0xff] %v2208
        %2273 = vst [vmem:[%s555 + $0x1d0] sm:$0xff] %v2209
        %2274 = vst [vmem:[%s555 + $0x1d8] sm:$0xff] %v2210
        %2275 = vst [vmem:[%s555 + $0x1e0] sm:$0xff] %v2211
        %2276 = vst [vmem:[%s555 + $0x1e8] sm:$0xff] %v2212
        %2277 = vst [vmem:[%s555 + $0x1f0] sm:$0xff] %v2213
        %2278 = vst [vmem:[%s555 + $0x1f8] sm:$0xff] %v2214
        %2279 = vmatprep.subr.mxu0 %v639
        %2280 = vmatpush1.msra.mxu0 %v638
        %2281 = vmatprep.subr.mxu0 %v655
        %2282 = vmatpush1.msra.mxu0 %v654
        %2283 = vmatprep.subr.mxu0 %v671
        %2284 = vmatpush1.msra.mxu0 %v670
        %2285 = vmatprep.subr.mxu0 %v687
        %2286 = vmatpush1.msra.mxu0 %v686
        %2287 = vmatprep.subr.mxu0 0.0
        %2288 = vmatpush1.msra.mxu0 0.0
        %2289 = vmatprep.subr.mxu0 0.0
        %2290 = vmatpush1.msra.mxu0 0.0
        %2291 = vmatprep.subr.mxu0 0.0
        %2292 = vmatpush1.msra.mxu0 0.0
        %2293 = vmatprep.subr.mxu0 0.0
        %2294 = vmatpush1.msra.mxu0 0.0
        %2295 = vmatprep.subr.mxu0 0.0
        %2296 = vmatpush1.msra.mxu0 0.0
        %2297 = vmatprep.subr.mxu0 0.0
        %2298 = vmatpush1.msra.mxu0 0.0
        %2299 = vmatprep.subr.mxu0 0.0
        %2300 = vmatpush1.msra.mxu0 0.0
        %2301 = vmatprep.subr.mxu0 0.0
        %2302 = vmatpush1.msra.mxu0 0.0
        %2303 = vmatprep.subr.mxu0 0.0
        %2304 = vmatpush1.msra.mxu0 0.0
        %2305 = vmatprep.subr.mxu0 0.0
        %2306 = vmatpush1.msra.mxu0 0.0
        %2307 = vmatprep.subr.mxu0 0.0
        %2308 = vmatpush1.msra.mxu0 0.0
        %2309 = vmatprep.subr.mxu0 0.0
        %2310 = vmatpush1.msra.mxu0 0.0
        %2311 = vmatprep.subr.mxu0 0.0
        %2312 = vmatpush1.msra.mxu0 0.0
        %2313 = vmatprep.subr.mxu0 0.0
        %2314 = vmatpush1.msra.mxu0 0.0
        %2315 = vmatprep.subr.mxu0 0.0
        %2316 = vmatpush1.msra.mxu0 0.0
        %2317 = vmatprep.subr.mxu0 0.0
        %2318 = vmatpush1.msra.mxu0 0.0
        %2319 = vmatprep.subr.mxu0 0.0
        %2320 = vmatpush1.msra.mxu0 0.0
        %2321 = vmatprep.subr.mxu0 0.0
        %2322 = vmatpush1.msra.mxu0 0.0
        %2323 = vmatprep.subr.mxu0 0.0
        %2324 = vmatpush1.msra.mxu0 0.0
        %2325 = vmatprep.subr.mxu0 0.0
        %2326 = vmatpush1.msra.mxu0 0.0
        %2327 = vmatprep.subr.mxu0 0.0
        %2328 = vmatpush1.msra.mxu0 0.0
        %2329 = vmatprep.subr.mxu0 0.0
        %2330 = vmatpush1.msra.mxu0 0.0
        %2331 = vmatprep.subr.mxu0 0.0
        %2332 = vmatpush1.msra.mxu0 0.0
        %2333 = vmatprep.subr.mxu0 0.0
        %2334 = vmatpush1.msra.mxu0 0.0
        %2335 = vmatprep.subr.mxu0 0.0
        %2336 = vmatpush1.msra.mxu0 0.0
        %2337 = vmatprep.subr.mxu0 0.0
        %2338 = vmatpush1.msra.mxu0 0.0
        %2339 = vmatprep.subr.mxu0 0.0
        %2340 = vmatpush1.msra.mxu0 0.0
        %2341 = vmatprep.subr.mxu0 0.0
        %2342 = vmatpush1.msra.mxu0 0.0
        %2343 = vmatprep.mubr.f32.mxu0 0.0
        %2344 = vmatmul.mubr.f32.gmra.mrb[0].mxu0 %v704
        %v2345 = vpop.f32.mrb[0].mxu0
        %v2346 = vadd.f32 0.0, %v2345
        %v2347 = vpop.f32.mrb[0].mxu0
        %v2348 = vadd.f32 0.0, %v2347
        %2349 = vmatprep.mubr.f32.mxu0 0.0
        %2350 = vmatmul.mubr.f32.gmra.mrb[0].mxu0 %v707
        %v2351 = vpop.f32.mrb[0].mxu0
        %v2352 = vadd.f32 0.0, %v2351
        %v2353 = vpop.f32.mrb[0].mxu0
        %v2354 = vadd.f32 0.0, %v2353
        %2355 = vmatprep.mubr.f32.mxu0 0.0
        %2356 = vmatmul.mubr.f32.gmra.mrb[0].mxu0 %v710
        %v2357 = vpop.f32.mrb[0].mxu0
        %v2358 = vadd.f32 0.0, %v2357
        %v2359 = vpop.f32.mrb[0].mxu0
        %v2360 = vadd.f32 0.0, %v2359
        %2361 = vmatprep.mubr.f32.mxu0 0.0
        %2362 = vmatmul.mubr.f32.gmra.mrb[0].mxu0 %v713
        %v2363 = vpop.f32.mrb[0].mxu0
        %v2364 = vadd.f32 0.0, %v2363
        %v2365 = vpop.f32.mrb[0].mxu0
        %v2366 = vadd.f32 0.0, %v2365
        %2367 = vdwg.mxu0
        %2368 = vmatprep.subr.mxu0 %v641
        %2369 = vmatpush1.msra.mxu0 %v640
        %2370 = vmatprep.subr.mxu0 %v657
        %2371 = vmatpush1.msra.mxu0 %v656
        %2372 = vmatprep.subr.mxu0 %v673
        %2373 = vmatpush1.msra.mxu0 %v672
        %2374 = vmatprep.subr.mxu0 %v689
        %2375 = vmatpush1.msra.mxu0 %v688
        %2376 = vmatprep.subr.mxu0 0.0
        %2377 = vmatpush1.msra.mxu0 0.0
        %2378 = vmatprep.subr.mxu0 0.0
        %2379 = vmatpush1.msra.mxu0 0.0
        %2380 = vmatprep.subr.mxu0 0.0
        %2381 = vmatpush1.msra.mxu0 0.0
        %2382 = vmatprep.subr.mxu0 0.0
        %2383 = vmatpush1.msra.mxu0 0.0
        %2384 = vmatprep.subr.mxu0 0.0
        %2385 = vmatpush1.msra.mxu0 0.0
        %2386 = vmatprep.subr.mxu0 0.0
        %2387 = vmatpush1.msra.mxu0 0.0
        %2388 = vmatprep.subr.mxu0 0.0
        %2389 = vmatpush1.msra.mxu0 0.0
        %2390 = vmatprep.subr.mxu0 0.0
        %2391 = vmatpush1.msra.mxu0 0.0
        %2392 = vmatprep.subr.mxu0 0.0
        %2393 = vmatpush1.msra.mxu0 0.0
        %2394 = vmatprep.subr.mxu0 0.0
        %2395 = vmatpush1.msra.mxu0 0.0
        %2396 = vmatprep.subr.mxu0 0.0
        %2397 = vmatpush1.msra.mxu0 0.0
        %2398 = vmatprep.subr.mxu0 0.0
        %2399 = vmatpush1.msra.mxu0 0.0
        %2400 = vmatprep.subr.mxu0 0.0
        %2401 = vmatpush1.msra.mxu0 0.0
        %2402 = vmatprep.subr.mxu0 0.0
        %2403 = vmatpush1.msra.mxu0 0.0
        %2404 = vmatprep.subr.mxu0 0.0
        %2405 = vmatpush1.msra.mxu0 0.0
        %2406 = vmatprep.subr.mxu0 0.0
        %2407 = vmatpush1.msra.mxu0 0.0
        %2408 = vmatprep.subr.mxu0 0.0
        %2409 = vmatpush1.msra.mxu0 0.0
        %2410 = vmatprep.subr.mxu0 0.0
        %2411 = vmatpush1.msra.mxu0 0.0
        %2412 = vmatprep.subr.mxu0 0.0
        %2413 = vmatpush1.msra.mxu0 0.0
        %2414 = vmatprep.subr.mxu0 0.0
        %2415 = vmatpush1.msra.mxu0 0.0
        %2416 = vmatprep.subr.mxu0 0.0
        %2417 = vmatpush1.msra.mxu0 0.0
        %2418 = vmatprep.subr.mxu0 0.0
        %2419 = vmatpush1.msra.mxu0 0.0
        %2420 = vmatprep.subr.mxu0 0.0
        %2421 = vmatpush1.msra.mxu0 0.0
        %2422 = vmatprep.subr.mxu0 0.0
        %2423 = vmatpush1.msra.mxu0 0.0
        %2424 = vmatprep.subr.mxu0 0.0
        %2425 = vmatpush1.msra.mxu0 0.0
        %2426 = vmatprep.subr.mxu0 0.0
        %2427 = vmatpush1.msra.mxu0 0.0
        %2428 = vmatprep.subr.mxu0 0.0
        %2429 = vmatpush1.msra.mxu0 0.0
        %2430 = vmatprep.subr.mxu0 0.0
        %2431 = vmatpush1.msra.mxu0 0.0
        %2432 = vmatprep.mubr.f32.mxu0 0.0
        %2433 = vmatmul.mubr.f32.gmra.mrb[0].mxu0 %v704
        %v2434 = vpop.f32.mrb[0].mxu0
        %v2435 = vadd.f32 0.0, %v2434
        %v2436 = vpop.f32.mrb[0].mxu0
        %v2437 = vadd.f32 0.0, %v2436
        %2438 = vmatprep.mubr.f32.mxu0 0.0
        %2439 = vmatmul.mubr.f32.gmra.mrb[0].mxu0 %v707
        %v2440 = vpop.f32.mrb[0].mxu0
        %v2441 = vadd.f32 0.0, %v2440
        %v2442 = vpop.f32.mrb[0].mxu0
        %v2443 = vadd.f32 0.0, %v2442
        %2444 = vmatprep.mubr.f32.mxu0 0.0
        %2445 = vmatmul.mubr.f32.gmra.mrb[0].mxu0 %v710
        %v2446 = vpop.f32.mrb[0].mxu0
        %v2447 = vadd.f32 0.0, %v2446
        %v2448 = vpop.f32.mrb[0].mxu0
        %v2449 = vadd.f32 0.0, %v2448
        %2450 = vmatprep.mubr.f32.mxu0 0.0
        %2451 = vmatmul.mubr.f32.gmra.mrb[0].mxu0 %v713
        %v2452 = vpop.f32.mrb[0].mxu0
        %v2453 = vadd.f32 0.0, %v2452
        %v2454 = vpop.f32.mrb[0].mxu0
        %v2455 = vadd.f32 0.0, %v2454
        %2456 = vdwg.mxu0
        %2457 = vmatprep.subr.mxu0 %v643
        %2458 = vmatpush1.msra.mxu0 %v642
        %2459 = vmatprep.subr.mxu0 %v659
        %2460 = vmatpush1.msra.mxu0 %v658
        %2461 = vmatprep.subr.mxu0 %v675
        %2462 = vmatpush1.msra.mxu0 %v674
        %2463 = vmatprep.subr.mxu0 %v691
        %2464 = vmatpush1.msra.mxu0 %v690
        %2465 = vmatprep.subr.mxu0 0.0
        %2466 = vmatpush1.msra.mxu0 0.0
        %2467 = vmatprep.subr.mxu0 0.0
        %2468 = vmatpush1.msra.mxu0 0.0
        %2469 = vmatprep.subr.mxu0 0.0
        %2470 = vmatpush1.msra.mxu0 0.0
        %2471 = vmatprep.subr.mxu0 0.0
        %2472 = vmatpush1.msra.mxu0 0.0
        %2473 = vmatprep.subr.mxu0 0.0
        %2474 = vmatpush1.msra.mxu0 0.0
        %2475 = vmatprep.subr.mxu0 0.0
        %2476 = vmatpush1.msra.mxu0 0.0
        %2477 = vmatprep.subr.mxu0 0.0
        %2478 = vmatpush1.msra.mxu0 0.0
        %2479 = vmatprep.subr.mxu0 0.0
        %2480 = vmatpush1.msra.mxu0 0.0
        %2481 = vmatprep.subr.mxu0 0.0
        %2482 = vmatpush1.msra.mxu0 0.0
        %2483 = vmatprep.subr.mxu0 0.0
        %2484 = vmatpush1.msra.mxu0 0.0
        %2485 = vmatprep.subr.mxu0 0.0
        %2486 = vmatpush1.msra.mxu0 0.0
        %2487 = vmatprep.subr.mxu0 0.0
        %2488 = vmatpush1.msra.mxu0 0.0
        %2489 = vmatprep.subr.mxu0 0.0
        %2490 = vmatpush1.msra.mxu0 0.0
        %2491 = vmatprep.subr.mxu0 0.0
        %2492 = vmatpush1.msra.mxu0 0.0
        %2493 = vmatprep.subr.mxu0 0.0
        %2494 = vmatpush1.msra.mxu0 0.0
        %2495 = vmatprep.subr.mxu0 0.0
        %2496 = vmatpush1.msra.mxu0 0.0
        %2497 = vmatprep.subr.mxu0 0.0
        %2498 = vmatpush1.msra.mxu0 0.0
        %2499 = vmatprep.subr.mxu0 0.0
        %2500 = vmatpush1.msra.mxu0 0.0
        %2501 = vmatprep.subr.mxu0 0.0
        %2502 = vmatpush1.msra.mxu0 0.0
        %2503 = vmatprep.subr.mxu0 0.0
        %2504 = vmatpush1.msra.mxu0 0.0
        %2505 = vmatprep.subr.mxu0 0.0
        %2506 = vmatpush1.msra.mxu0 0.0
        %2507 = vmatprep.subr.mxu0 0.0
        %2508 = vmatpush1.msra.mxu0 0.0
        %2509 = vmatprep.subr.mxu0 0.0
        %2510 = vmatpush1.msra.mxu0 0.0
        %2511 = vmatprep.subr.mxu0 0.0
        %2512 = vmatpush1.msra.mxu0 0.0
        %2513 = vmatprep.subr.mxu0 0.0
        %2514 = vmatpush1.msra.mxu0 0.0
        %2515 = vmatprep.subr.mxu0 0.0
        %2516 = vmatpush1.msra.mxu0 0.0
        %2517 = vmatprep.subr.mxu0 0.0
        %2518 = vmatpush1.msra.mxu0 0.0
        %2519 = vmatprep.subr.mxu0 0.0
        %2520 = vmatpush1.msra.mxu0 0.0
        %2521 = vmatprep.mubr.f32.mxu0 0.0
        %2522 = vmatmul.mubr.f32.gmra.mrb[0].mxu0 %v704
        %v2523 = vpop.f32.mrb[0].mxu0
        %v2524 = vadd.f32 0.0, %v2523
        %v2525 = vpop.f32.mrb[0].mxu0
        %v2526 = vadd.f32 0.0, %v2525
        %2527 = vmatprep.mubr.f32.mxu0 0.0
        %2528 = vmatmul.mubr.f32.gmra.mrb[0].mxu0 %v707
        %v2529 = vpop.f32.mrb[0].mxu0
        %v2530 = vadd.f32 0.0, %v2529
        %v2531 = vpop.f32.mrb[0].mxu0
        %v2532 = vadd.f32 0.0, %v2531
        %2533 = vmatprep.mubr.f32.mxu0 0.0
        %2534 = vmatmul.mubr.f32.gmra.mrb[0].mxu0 %v710
        %v2535 = vpop.f32.mrb[0].mxu0
        %v2536 = vadd.f32 0.0, %v2535
        %v2537 = vpop.f32.mrb[0].mxu0
        %v2538 = vadd.f32 0.0, %v2537
        %2539 = vmatprep.mubr.f32.mxu0 0.0
        %2540 = vmatmul.mubr.f32.gmra.mrb[0].mxu0 %v713
        %v2541 = vpop.f32.mrb[0].mxu0
        %v2542 = vadd.f32 0.0, %v2541
        %v2543 = vpop.f32.mrb[0].mxu0
        %v2544 = vadd.f32 0.0, %v2543
        %2545 = vdwg.mxu0
        %2546 = vmatprep.subr.mxu0 %v645
        %2547 = vmatpush1.msra.mxu0 %v644
        %2548 = vmatprep.subr.mxu0 %v661
        %2549 = vmatpush1.msra.mxu0 %v660
        %2550 = vmatprep.subr.mxu0 %v677
        %2551 = vmatpush1.msra.mxu0 %v676
        %2552 = vmatprep.subr.mxu0 %v693
        %2553 = vmatpush1.msra.mxu0 %v692
        %2554 = vmatprep.subr.mxu0 0.0
        %2555 = vmatpush1.msra.mxu0 0.0
        %2556 = vmatprep.subr.mxu0 0.0
        %2557 = vmatpush1.msra.mxu0 0.0
        %2558 = vmatprep.subr.mxu0 0.0
        %2559 = vmatpush1.msra.mxu0 0.0
        %2560 = vmatprep.subr.mxu0 0.0
        %2561 = vmatpush1.msra.mxu0 0.0
        %2562 = vmatprep.subr.mxu0 0.0
        %2563 = vmatpush1.msra.mxu0 0.0
        %2564 = vmatprep.subr.mxu0 0.0
        %2565 = vmatpush1.msra.mxu0 0.0
        %2566 = vmatprep.subr.mxu0 0.0
        %2567 = vmatpush1.msra.mxu0 0.0
        %2568 = vmatprep.subr.mxu0 0.0
        %2569 = vmatpush1.msra.mxu0 0.0
        %2570 = vmatprep.subr.mxu0 0.0
        %2571 = vmatpush1.msra.mxu0 0.0
        %2572 = vmatprep.subr.mxu0 0.0
        %2573 = vmatpush1.msra.mxu0 0.0
        %2574 = vmatprep.subr.mxu0 0.0
        %2575 = vmatpush1.msra.mxu0 0.0
        %2576 = vmatprep.subr.mxu0 0.0
        %2577 = vmatpush1.msra.mxu0 0.0
        %2578 = vmatprep.subr.mxu0 0.0
        %2579 = vmatpush1.msra.mxu0 0.0
        %2580 = vmatprep.subr.mxu0 0.0
        %2581 = vmatpush1.msra.mxu0 0.0
        %2582 = vmatprep.subr.mxu0 0.0
        %2583 = vmatpush1.msra.mxu0 0.0
        %2584 = vmatprep.subr.mxu0 0.0
        %2585 = vmatpush1.msra.mxu0 0.0
        %2586 = vmatprep.subr.mxu0 0.0
        %2587 = vmatpush1.msra.mxu0 0.0
        %2588 = vmatprep.subr.mxu0 0.0
        %2589 = vmatpush1.msra.mxu0 0.0
        %2590 = vmatprep.subr.mxu0 0.0
        %2591 = vmatpush1.msra.mxu0 0.0
        %2592 = vmatprep.subr.mxu0 0.0
        %2593 = vmatpush1.msra.mxu0 0.0
        %2594 = vmatprep.subr.mxu0 0.0
        %2595 = vmatpush1.msra.mxu0 0.0
        %2596 = vmatprep.subr.mxu0 0.0
        %2597 = vmatpush1.msra.mxu0 0.0
        %2598 = vmatprep.subr.mxu0 0.0
        %2599 = vmatpush1.msra.mxu0 0.0
        %2600 = vmatprep.subr.mxu0 0.0
        %2601 = vmatpush1.msra.mxu0 0.0
        %2602 = vmatprep.subr.mxu0 0.0
        %2603 = vmatpush1.msra.mxu0 0.0
        %2604 = vmatprep.subr.mxu0 0.0
        %2605 = vmatpush1.msra.mxu0 0.0
        %2606 = vmatprep.subr.mxu0 0.0
        %2607 = vmatpush1.msra.mxu0 0.0
        %2608 = vmatprep.subr.mxu0 0.0
        %2609 = vmatpush1.msra.mxu0 0.0
        %2610 = vmatprep.mubr.f32.mxu0 0.0
        %2611 = vmatmul.mubr.f32.gmra.mrb[0].mxu0 %v704
        %v2612 = vpop.f32.mrb[0].mxu0
        %v2613 = vadd.f32 0.0, %v2612
        %v2614 = vpop.f32.mrb[0].mxu0
        %v2615 = vadd.f32 0.0, %v2614
        %2616 = vmatprep.mubr.f32.mxu0 0.0
        %2617 = vmatmul.mubr.f32.gmra.mrb[0].mxu0 %v707
        %v2618 = vpop.f32.mrb[0].mxu0
        %v2619 = vadd.f32 0.0, %v2618
        %v2620 = vpop.f32.mrb[0].mxu0
        %v2621 = vadd.f32 0.0, %v2620
        %2622 = vmatprep.mubr.f32.mxu0 0.0
        %2623 = vmatmul.mubr.f32.gmra.mrb[0].mxu0 %v710
        %v2624 = vpop.f32.mrb[0].mxu0
        %v2625 = vadd.f32 0.0, %v2624
        %v2626 = vpop.f32.mrb[0].mxu0
        %v2627 = vadd.f32 0.0, %v2626
        %2628 = vmatprep.mubr.f32.mxu0 0.0
        %2629 = vmatmul.mubr.f32.gmra.mrb[0].mxu0 %v713
        %v2630 = vpop.f32.mrb[0].mxu0
        %v2631 = vadd.f32 0.0, %v2630
        %v2632 = vpop.f32.mrb[0].mxu0
        %v2633 = vadd.f32 0.0, %v2632
        %2634 = vdwg.mxu0
        %2635 = vmatprep.subr.mxu0 %v647
        %2636 = vmatpush1.msra.mxu0 %v646
        %2637 = vmatprep.subr.mxu0 %v663
        %2638 = vmatpush1.msra.mxu0 %v662
        %2639 = vmatprep.subr.mxu0 %v679
        %2640 = vmatpush1.msra.mxu0 %v678
        %2641 = vmatprep.subr.mxu0 %v695
        %2642 = vmatpush1.msra.mxu0 %v694
        %2643 = vmatprep.subr.mxu0 0.0
        %2644 = vmatpush1.msra.mxu0 0.0
        %2645 = vmatprep.subr.mxu0 0.0
        %2646 = vmatpush1.msra.mxu0 0.0
        %2647 = vmatprep.subr.mxu0 0.0
        %2648 = vmatpush1.msra.mxu0 0.0
        %2649 = vmatprep.subr.mxu0 0.0
        %2650 = vmatpush1.msra.mxu0 0.0
        %2651 = vmatprep.subr.mxu0 0.0
        %2652 = vmatpush1.msra.mxu0 0.0
        %2653 = vmatprep.subr.mxu0 0.0
        %2654 = vmatpush1.msra.mxu0 0.0
        %2655 = vmatprep.subr.mxu0 0.0
        %2656 = vmatpush1.msra.mxu0 0.0
        %2657 = vmatprep.subr.mxu0 0.0
        %2658 = vmatpush1.msra.mxu0 0.0
        %2659 = vmatprep.subr.mxu0 0.0
        %2660 = vmatpush1.msra.mxu0 0.0
        %2661 = vmatprep.subr.mxu0 0.0
        %2662 = vmatpush1.msra.mxu0 0.0
        %2663 = vmatprep.subr.mxu0 0.0
        %2664 = vmatpush1.msra.mxu0 0.0
        %2665 = vmatprep.subr.mxu0 0.0
        %2666 = vmatpush1.msra.mxu0 0.0
        %2667 = vmatprep.subr.mxu0 0.0
        %2668 = vmatpush1.msra.mxu0 0.0
        %2669 = vmatprep.subr.mxu0 0.0
        %2670 = vmatpush1.msra.mxu0 0.0
        %2671 = vmatprep.subr.mxu0 0.0
        %2672 = vmatpush1.msra.mxu0 0.0
        %2673 = vmatprep.subr.mxu0 0.0
        %2674 = vmatpush1.msra.mxu0 0.0
        %2675 = vmatprep.subr.mxu0 0.0
        %2676 = vmatpush1.msra.mxu0 0.0
        %2677 = vmatprep.subr.mxu0 0.0
        %2678 = vmatpush1.msra.mxu0 0.0
        %2679 = vmatprep.subr.mxu0 0.0
        %2680 = vmatpush1.msra.mxu0 0.0
        %2681 = vmatprep.subr.mxu0 0.0
        %2682 = vmatpush1.msra.mxu0 0.0
        %2683 = vmatprep.subr.mxu0 0.0
        %2684 = vmatpush1.msra.mxu0 0.0
        %2685 = vmatprep.subr.mxu0 0.0
        %2686 = vmatpush1.msra.mxu0 0.0
        %2687 = vmatprep.subr.mxu0 0.0
        %2688 = vmatpush1.msra.mxu0 0.0
        %2689 = vmatprep.subr.mxu0 0.0
        %2690 = vmatpush1.msra.mxu0 0.0
        %2691 = vmatprep.subr.mxu0 0.0
        %2692 = vmatpush1.msra.mxu0 0.0
        %2693 = vmatprep.subr.mxu0 0.0
        %2694 = vmatpush1.msra.mxu0 0.0
        %2695 = vmatprep.subr.mxu0 0.0
        %2696 = vmatpush1.msra.mxu0 0.0
        %2697 = vmatprep.subr.mxu0 0.0
        %2698 = vmatpush1.msra.mxu0 0.0
        %2699 = vmatprep.mubr.f32.mxu0 0.0
        %2700 = vmatmul.mubr.f32.gmra.mrb[0].mxu0 %v704
        %v2701 = vpop.f32.mrb[0].mxu0
        %v2702 = vadd.f32 0.0, %v2701
        %v2703 = vpop.f32.mrb[0].mxu0
        %v2704 = vadd.f32 0.0, %v2703
        %2705 = vmatprep.mubr.f32.mxu0 0.0
        %2706 = vmatmul.mubr.f32.gmra.mrb[0].mxu0 %v707
        %v2707 = vpop.f32.mrb[0].mxu0
        %v2708 = vadd.f32 0.0, %v2707
        %v2709 = vpop.f32.mrb[0].mxu0
        %v2710 = vadd.f32 0.0, %v2709
        %2711 = vmatprep.mubr.f32.mxu0 0.0
        %2712 = vmatmul.mubr.f32.gmra.mrb[0].mxu0 %v710
        %v2713 = vpop.f32.mrb[0].mxu0
        %v2714 = vadd.f32 0.0, %v2713
        %v2715 = vpop.f32.mrb[0].mxu0
        %v2716 = vadd.f32 0.0, %v2715
        %2717 = vmatprep.mubr.f32.mxu0 0.0
        %2718 = vmatmul.mubr.f32.gmra.mrb[0].mxu0 %v713
        %v2719 = vpop.f32.mrb[0].mxu0
        %v2720 = vadd.f32 0.0, %v2719
        %v2721 = vpop.f32.mrb[0].mxu0
        %v2722 = vadd.f32 0.0, %v2721
        %2723 = vdwg.mxu0
        %2724 = vmatprep.subr.mxu0 %v649
        %2725 = vmatpush1.msra.mxu0 %v648
        %2726 = vmatprep.subr.mxu0 %v665
        %2727 = vmatpush1.msra.mxu0 %v664
        %2728 = vmatprep.subr.mxu0 %v681
        %2729 = vmatpush1.msra.mxu0 %v680
        %2730 = vmatprep.subr.mxu0 %v697
        %2731 = vmatpush1.msra.mxu0 %v696
        %2732 = vmatprep.subr.mxu0 0.0
        %2733 = vmatpush1.msra.mxu0 0.0
        %2734 = vmatprep.subr.mxu0 0.0
        %2735 = vmatpush1.msra.mxu0 0.0
        %2736 = vmatprep.subr.mxu0 0.0
        %2737 = vmatpush1.msra.mxu0 0.0
        %2738 = vmatprep.subr.mxu0 0.0
        %2739 = vmatpush1.msra.mxu0 0.0
        %2740 = vmatprep.subr.mxu0 0.0
        %2741 = vmatpush1.msra.mxu0 0.0
        %2742 = vmatprep.subr.mxu0 0.0
        %2743 = vmatpush1.msra.mxu0 0.0
        %2744 = vmatprep.subr.mxu0 0.0
        %2745 = vmatpush1.msra.mxu0 0.0
        %2746 = vmatprep.subr.mxu0 0.0
        %2747 = vmatpush1.msra.mxu0 0.0
        %2748 = vmatprep.subr.mxu0 0.0
        %2749 = vmatpush1.msra.mxu0 0.0
        %2750 = vmatprep.subr.mxu0 0.0
        %2751 = vmatpush1.msra.mxu0 0.0
        %2752 = vmatprep.subr.mxu0 0.0
        %2753 = vmatpush1.msra.mxu0 0.0
        %2754 = vmatprep.subr.mxu0 0.0
        %2755 = vmatpush1.msra.mxu0 0.0
        %2756 = vmatprep.subr.mxu0 0.0
        %2757 = vmatpush1.msra.mxu0 0.0
        %2758 = vmatprep.subr.mxu0 0.0
        %2759 = vmatpush1.msra.mxu0 0.0
        %2760 = vmatprep.subr.mxu0 0.0
        %2761 = vmatpush1.msra.mxu0 0.0
        %2762 = vmatprep.subr.mxu0 0.0
        %2763 = vmatpush1.msra.mxu0 0.0
        %2764 = vmatprep.subr.mxu0 0.0
        %2765 = vmatpush1.msra.mxu0 0.0
        %2766 = vmatprep.subr.mxu0 0.0
        %2767 = vmatpush1.msra.mxu0 0.0
        %2768 = vmatprep.subr.mxu0 0.0
        %2769 = vmatpush1.msra.mxu0 0.0
        %2770 = vmatprep.subr.mxu0 0.0
        %2771 = vmatpush1.msra.mxu0 0.0
        %2772 = vmatprep.subr.mxu0 0.0
        %2773 = vmatpush1.msra.mxu0 0.0
        %2774 = vmatprep.subr.mxu0 0.0
        %2775 = vmatpush1.msra.mxu0 0.0
        %2776 = vmatprep.subr.mxu0 0.0
        %2777 = vmatpush1.msra.mxu0 0.0
        %2778 = vmatprep.subr.mxu0 0.0
        %2779 = vmatpush1.msra.mxu0 0.0
        %2780 = vmatprep.subr.mxu0 0.0
        %2781 = vmatpush1.msra.mxu0 0.0
        %2782 = vmatprep.subr.mxu0 0.0
        %2783 = vmatpush1.msra.mxu0 0.0
        %2784 = vmatprep.subr.mxu0 0.0
        %2785 = vmatpush1.msra.mxu0 0.0
        %2786 = vmatprep.subr.mxu0 0.0
        %2787 = vmatpush1.msra.mxu0 0.0
        %2788 = vmatprep.mubr.f32.mxu0 0.0
        %2789 = vmatmul.mubr.f32.gmra.mrb[0].mxu0 %v704
        %v2790 = vpop.f32.mrb[0].mxu0
        %v2791 = vadd.f32 0.0, %v2790
        %v2792 = vpop.f32.mrb[0].mxu0
        %v2793 = vadd.f32 0.0, %v2792
        %2794 = vmatprep.mubr.f32.mxu0 0.0
        %2795 = vmatmul.mubr.f32.gmra.mrb[0].mxu0 %v707
        %v2796 = vpop.f32.mrb[0].mxu0
        %v2797 = vadd.f32 0.0, %v2796
        %v2798 = vpop.f32.mrb[0].mxu0
        %v2799 = vadd.f32 0.0, %v2798
        %2800 = vmatprep.mubr.f32.mxu0 0.0
        %2801 = vmatmul.mubr.f32.gmra.mrb[0].mxu0 %v710
        %v2802 = vpop.f32.mrb[0].mxu0
        %v2803 = vadd.f32 0.0, %v2802
        %v2804 = vpop.f32.mrb[0].mxu0
        %v2805 = vadd.f32 0.0, %v2804
        %2806 = vmatprep.mubr.f32.mxu0 0.0
        %2807 = vmatmul.mubr.f32.gmra.mrb[0].mxu0 %v713
        %v2808 = vpop.f32.mrb[0].mxu0
        %v2809 = vadd.f32 0.0, %v2808
        %v2810 = vpop.f32.mrb[0].mxu0
        %v2811 = vadd.f32 0.0, %v2810
        %2812 = vdwg.mxu0
        %2813 = vmatprep.subr.mxu0 %v651
        %2814 = vmatpush1.msra.mxu0 %v650
        %2815 = vmatprep.subr.mxu0 %v667
        %2816 = vmatpush1.msra.mxu0 %v666
        %2817 = vmatprep.subr.mxu0 %v683
        %2818 = vmatpush1.msra.mxu0 %v682
        %2819 = vmatprep.subr.mxu0 %v699
        %2820 = vmatpush1.msra.mxu0 %v698
        %2821 = vmatprep.subr.mxu0 0.0
        %2822 = vmatpush1.msra.mxu0 0.0
        %2823 = vmatprep.subr.mxu0 0.0
        %2824 = vmatpush1.msra.mxu0 0.0
        %2825 = vmatprep.subr.mxu0 0.0
        %2826 = vmatpush1.msra.mxu0 0.0
        %2827 = vmatprep.subr.mxu0 0.0
        %2828 = vmatpush1.msra.mxu0 0.0
        %2829 = vmatprep.subr.mxu0 0.0
        %2830 = vmatpush1.msra.mxu0 0.0
        %2831 = vmatprep.subr.mxu0 0.0
        %2832 = vmatpush1.msra.mxu0 0.0
        %2833 = vmatprep.subr.mxu0 0.0
        %2834 = vmatpush1.msra.mxu0 0.0
        %2835 = vmatprep.subr.mxu0 0.0
        %2836 = vmatpush1.msra.mxu0 0.0
        %2837 = vmatprep.subr.mxu0 0.0
        %2838 = vmatpush1.msra.mxu0 0.0
        %2839 = vmatprep.subr.mxu0 0.0
        %2840 = vmatpush1.msra.mxu0 0.0
        %2841 = vmatprep.subr.mxu0 0.0
        %2842 = vmatpush1.msra.mxu0 0.0
        %2843 = vmatprep.subr.mxu0 0.0
        %2844 = vmatpush1.msra.mxu0 0.0
        %2845 = vmatprep.subr.mxu0 0.0
        %2846 = vmatpush1.msra.mxu0 0.0
        %2847 = vmatprep.subr.mxu0 0.0
        %2848 = vmatpush1.msra.mxu0 0.0
        %2849 = vmatprep.subr.mxu0 0.0
        %2850 = vmatpush1.msra.mxu0 0.0
        %2851 = vmatprep.subr.mxu0 0.0
        %2852 = vmatpush1.msra.mxu0 0.0
        %2853 = vmatprep.subr.mxu0 0.0
        %2854 = vmatpush1.msra.mxu0 0.0
        %2855 = vmatprep.subr.mxu0 0.0
        %2856 = vmatpush1.msra.mxu0 0.0
        %2857 = vmatprep.subr.mxu0 0.0
        %2858 = vmatpush1.msra.mxu0 0.0
        %2859 = vmatprep.subr.mxu0 0.0
        %2860 = vmatpush1.msra.mxu0 0.0
        %2861 = vmatprep.subr.mxu0 0.0
        %2862 = vmatpush1.msra.mxu0 0.0
        %2863 = vmatprep.subr.mxu0 0.0
        %2864 = vmatpush1.msra.mxu0 0.0
        %2865 = vmatprep.subr.mxu0 0.0
        %2866 = vmatpush1.msra.mxu0 0.0
        %2867 = vmatprep.subr.mxu0 0.0
        %2868 = vmatpush1.msra.mxu0 0.0
        %2869 = vmatprep.subr.mxu0 0.0
        %2870 = vmatpush1.msra.mxu0 0.0
        %2871 = vmatprep.subr.mxu0 0.0
        %2872 = vmatpush1.msra.mxu0 0.0
        %2873 = vmatprep.subr.mxu0 0.0
        %2874 = vmatpush1.msra.mxu0 0.0
        %2875 = vmatprep.subr.mxu0 0.0
        %2876 = vmatpush1.msra.mxu0 0.0
        %2877 = vmatprep.mubr.f32.mxu0 0.0
        %2878 = vmatmul.mubr.f32.gmra.mrb[0].mxu0 %v704
        %v2879 = vpop.f32.mrb[0].mxu0
        %v2880 = vadd.f32 0.0, %v2879
        %v2881 = vpop.f32.mrb[0].mxu0
        %v2882 = vadd.f32 0.0, %v2881
        %2883 = vmatprep.mubr.f32.mxu0 0.0
        %2884 = vmatmul.mubr.f32.gmra.mrb[0].mxu0 %v707
        %v2885 = vpop.f32.mrb[0].mxu0
        %v2886 = vadd.f32 0.0, %v2885
        %v2887 = vpop.f32.mrb[0].mxu0
        %v2888 = vadd.f32 0.0, %v2887
        %2889 = vmatprep.mubr.f32.mxu0 0.0
        %2890 = vmatmul.mubr.f32.gmra.mrb[0].mxu0 %v710
        %v2891 = vpop.f32.mrb[0].mxu0
        %v2892 = vadd.f32 0.0, %v2891
        %v2893 = vpop.f32.mrb[0].mxu0
        %v2894 = vadd.f32 0.0, %v2893
        %2895 = vmatprep.mubr.f32.mxu0 0.0
        %2896 = vmatmul.mubr.f32.gmra.mrb[0].mxu0 %v713
        %v2897 = vpop.f32.mrb[0].mxu0
        %v2898 = vadd.f32 0.0, %v2897
        %v2899 = vpop.f32.mrb[0].mxu0
        %v2900 = vadd.f32 0.0, %v2899
        %2901 = vdwg.mxu0
        %2902 = vmatprep.subr.mxu0 %v653
        %2903 = vmatpush1.msra.mxu0 %v652
        %2904 = vmatprep.subr.mxu0 %v669
        %2905 = vmatpush1.msra.mxu0 %v668
        %2906 = vmatprep.subr.mxu0 %v685
        %2907 = vmatpush1.msra.mxu0 %v684
        %2908 = vmatprep.subr.mxu0 %v701
        %2909 = vmatpush1.msra.mxu0 %v700
        %2910 = vmatprep.subr.mxu0 0.0
        %2911 = vmatpush1.msra.mxu0 0.0
        %2912 = vmatprep.subr.mxu0 0.0
        %2913 = vmatpush1.msra.mxu0 0.0
        %2914 = vmatprep.subr.mxu0 0.0
        %2915 = vmatpush1.msra.mxu0 0.0
        %2916 = vmatprep.subr.mxu0 0.0
        %2917 = vmatpush1.msra.mxu0 0.0
        %2918 = vmatprep.subr.mxu0 0.0
        %2919 = vmatpush1.msra.mxu0 0.0
        %2920 = vmatprep.subr.mxu0 0.0
        %2921 = vmatpush1.msra.mxu0 0.0
        %2922 = vmatprep.subr.mxu0 0.0
        %2923 = vmatpush1.msra.mxu0 0.0
        %2924 = vmatprep.subr.mxu0 0.0
        %2925 = vmatpush1.msra.mxu0 0.0
        %2926 = vmatprep.subr.mxu0 0.0
        %2927 = vmatpush1.msra.mxu0 0.0
        %2928 = vmatprep.subr.mxu0 0.0
        %2929 = vmatpush1.msra.mxu0 0.0
        %2930 = vmatprep.subr.mxu0 0.0
        %2931 = vmatpush1.msra.mxu0 0.0
        %2932 = vmatprep.subr.mxu0 0.0
        %2933 = vmatpush1.msra.mxu0 0.0
        %2934 = vmatprep.subr.mxu0 0.0
        %2935 = vmatpush1.msra.mxu0 0.0
        %2936 = vmatprep.subr.mxu0 0.0
        %2937 = vmatpush1.msra.mxu0 0.0
        %2938 = vmatprep.subr.mxu0 0.0
        %2939 = vmatpush1.msra.mxu0 0.0
        %2940 = vmatprep.subr.mxu0 0.0
        %2941 = vmatpush1.msra.mxu0 0.0
        %2942 = vmatprep.subr.mxu0 0.0
        %2943 = vmatpush1.msra.mxu0 0.0
        %2944 = vmatprep.subr.mxu0 0.0
        %2945 = vmatpush1.msra.mxu0 0.0
        %2946 = vmatprep.subr.mxu0 0.0
        %2947 = vmatpush1.msra.mxu0 0.0
        %2948 = vmatprep.subr.mxu0 0.0
        %2949 = vmatpush1.msra.mxu0 0.0
        %2950 = vmatprep.subr.mxu0 0.0
        %2951 = vmatpush1.msra.mxu0 0.0
        %2952 = vmatprep.subr.mxu0 0.0
        %2953 = vmatpush1.msra.mxu0 0.0
        %2954 = vmatprep.subr.mxu0 0.0
        %2955 = vmatpush1.msra.mxu0 0.0
        %2956 = vmatprep.subr.mxu0 0.0
        %2957 = vmatpush1.msra.mxu0 0.0
        %2958 = vmatprep.subr.mxu0 0.0
        %2959 = vmatpush1.msra.mxu0 0.0
        %2960 = vmatprep.subr.mxu0 0.0
        %2961 = vmatpush1.msra.mxu0 0.0
        %2962 = vmatprep.subr.mxu0 0.0
        %2963 = vmatpush1.msra.mxu0 0.0
        %2964 = vmatprep.subr.mxu0 0.0
        %2965 = vmatpush1.msra.mxu0 0.0
        %2966 = vmatprep.mubr.f32.mxu0 0.0
        %2967 = vmatmul.mubr.f32.gmra.mrb[0].mxu0 %v704
        %v2968 = vpop.f32.mrb[0].mxu0
        %v2969 = vadd.f32 0.0, %v2968
        %v2970 = vpop.f32.mrb[0].mxu0
        %v2971 = vadd.f32 0.0, %v2970
        %2972 = vmatprep.mubr.f32.mxu0 0.0
        %2973 = vmatmul.mubr.f32.gmra.mrb[0].mxu0 %v707
        %v2974 = vpop.f32.mrb[0].mxu0
        %v2975 = vadd.f32 0.0, %v2974
        %v2976 = vpop.f32.mrb[0].mxu0
        %v2977 = vadd.f32 0.0, %v2976
        %2978 = vmatprep.mubr.f32.mxu0 0.0
        %2979 = vmatmul.mubr.f32.gmra.mrb[0].mxu0 %v710
        %v2980 = vpop.f32.mrb[0].mxu0
        %v2981 = vadd.f32 0.0, %v2980
        %v2982 = vpop.f32.mrb[0].mxu0
        %v2983 = vadd.f32 0.0, %v2982
        %2984 = vmatprep.mubr.f32.mxu0 0.0
        %2985 = vmatmul.mubr.f32.gmra.mrb[0].mxu0 %v713
        %v2986 = vpop.f32.mrb[0].mxu0
        %v2987 = vadd.f32 0.0, %v2986
        %v2988 = vpop.f32.mrb[0].mxu0
        %v2989 = vadd.f32 0.0, %v2988
        %2990 = vdwg.mxu0
        %2991 = vmatprep.subr.mxu0 %v575
        %2992 = vmatpush1.msra.mxu0 %v574
        %2993 = vmatprep.subr.mxu0 %v591
        %2994 = vmatpush1.msra.mxu0 %v590
        %2995 = vmatprep.subr.mxu0 %v607
        %2996 = vmatpush1.msra.mxu0 %v606
        %2997 = vmatprep.subr.mxu0 %v623
        %2998 = vmatpush1.msra.mxu0 %v622
        %2999 = vmatprep.subr.mxu0 0.0
        %3000 = vmatpush1.msra.mxu0 0.0
        %3001 = vmatprep.subr.mxu0 0.0
        %3002 = vmatpush1.msra.mxu0 0.0
        %3003 = vmatprep.subr.mxu0 0.0
        %3004 = vmatpush1.msra.mxu0 0.0
        %3005 = vmatprep.subr.mxu0 0.0
        %3006 = vmatpush1.msra.mxu0 0.0
        %3007 = vmatprep.subr.mxu0 0.0
        %3008 = vmatpush1.msra.mxu0 0.0
        %3009 = vmatprep.subr.mxu0 0.0
        %3010 = vmatpush1.msra.mxu0 0.0
        %3011 = vmatprep.subr.mxu0 0.0
        %3012 = vmatpush1.msra.mxu0 0.0
        %3013 = vmatprep.subr.mxu0 0.0
        %3014 = vmatpush1.msra.mxu0 0.0
        %3015 = vmatprep.subr.mxu0 0.0
        %3016 = vmatpush1.msra.mxu0 0.0
        %3017 = vmatprep.subr.mxu0 0.0
        %3018 = vmatpush1.msra.mxu0 0.0
        %3019 = vmatprep.subr.mxu0 0.0
        %3020 = vmatpush1.msra.mxu0 0.0
        %3021 = vmatprep.subr.mxu0 0.0
        %3022 = vmatpush1.msra.mxu0 0.0
        %3023 = vmatprep.subr.mxu0 0.0
        %3024 = vmatpush1.msra.mxu0 0.0
        %3025 = vmatprep.subr.mxu0 0.0
        %3026 = vmatpush1.msra.mxu0 0.0
        %3027 = vmatprep.subr.mxu0 0.0
        %3028 = vmatpush1.msra.mxu0 0.0
        %3029 = vmatprep.subr.mxu0 0.0
        %3030 = vmatpush1.msra.mxu0 0.0
        %3031 = vmatprep.subr.mxu0 0.0
        %3032 = vmatpush1.msra.mxu0 0.0
        %3033 = vmatprep.subr.mxu0 0.0
        %3034 = vmatpush1.msra.mxu0 0.0
        %3035 = vmatprep.subr.mxu0 0.0
        %3036 = vmatpush1.msra.mxu0 0.0
        %3037 = vmatprep.subr.mxu0 0.0
        %3038 = vmatpush1.msra.mxu0 0.0
        %3039 = vmatprep.subr.mxu0 0.0
        %3040 = vmatpush1.msra.mxu0 0.0
        %3041 = vmatprep.subr.mxu0 0.0
        %3042 = vmatpush1.msra.mxu0 0.0
        %3043 = vmatprep.subr.mxu0 0.0
        %3044 = vmatpush1.msra.mxu0 0.0
        %3045 = vmatprep.subr.mxu0 0.0
        %3046 = vmatpush1.msra.mxu0 0.0
        %3047 = vmatprep.subr.mxu0 0.0
        %3048 = vmatpush1.msra.mxu0 0.0
        %3049 = vmatprep.subr.mxu0 0.0
        %3050 = vmatpush1.msra.mxu0 0.0
        %3051 = vmatprep.subr.mxu0 0.0
        %3052 = vmatpush1.msra.mxu0 0.0
        %3053 = vmatprep.subr.mxu0 0.0
        %3054 = vmatpush1.msra.mxu0 0.0
        %3055 = vmatprep.mubr.f32.mxu0 0.0
        %3056 = vmatmul.mubr.f32.gmra.mrb[0].mxu0 %v1428
        %v3057 = vpop.f32.mrb[0].mxu0
        %v3058 = vadd.f32 %v2346, %v3057
        %v3059 = vpop.f32.mrb[0].mxu0
        %v3060 = vadd.f32 %v2348, %v3059
        %3061 = vmatprep.mubr.f32.mxu0 0.0
        %3062 = vmatmul.mubr.f32.gmra.mrb[0].mxu0 %v1431
        %v3063 = vpop.f32.mrb[0].mxu0
        %v3064 = vadd.f32 %v2352, %v3063
        %v3065 = vpop.f32.mrb[0].mxu0
        %v3066 = vadd.f32 %v2354, %v3065
        %3067 = vmatprep.mubr.f32.mxu0 0.0
        %3068 = vmatmul.mubr.f32.gmra.mrb[0].mxu0 %v1434
        %v3069 = vpop.f32.mrb[0].mxu0
        %v3070 = vadd.f32 %v2358, %v3069
        %v3071 = vpop.f32.mrb[0].mxu0
        %v3072 = vadd.f32 %v2360, %v3071
        %3073 = vmatprep.mubr.f32.mxu0 0.0
        %3074 = vmatmul.mubr.f32.gmra.mrb[0].mxu0 %v1437
        %v3075 = vpop.f32.mrb[0].mxu0
        %v3076 = vadd.f32 %v2364, %v3075
        %v3077 = vpop.f32.mrb[0].mxu0
        %v3078 = vadd.f32 %v2366, %v3077
        %3079 = vdwg.mxu0
        %3080 = vmatprep.subr.mxu0 %v577
        %3081 = vmatpush1.msra.mxu0 %v576
        %3082 = vmatprep.subr.mxu0 %v593
        %3083 = vmatpush1.msra.mxu0 %v592
        %3084 = vmatprep.subr.mxu0 %v609
        %3085 = vmatpush1.msra.mxu0 %v608
        %3086 = vmatprep.subr.mxu0 %v625
        %3087 = vmatpush1.msra.mxu0 %v624
        %3088 = vmatprep.subr.mxu0 0.0
        %3089 = vmatpush1.msra.mxu0 0.0
        %3090 = vmatprep.subr.mxu0 0.0
        %3091 = vmatpush1.msra.mxu0 0.0
        %3092 = vmatprep.subr.mxu0 0.0
        %3093 = vmatpush1.msra.mxu0 0.0
        %3094 = vmatprep.subr.mxu0 0.0
        %3095 = vmatpush1.msra.mxu0 0.0
        %3096 = vmatprep.subr.mxu0 0.0
        %3097 = vmatpush1.msra.mxu0 0.0
        %3098 = vmatprep.subr.mxu0 0.0
        %3099 = vmatpush1.msra.mxu0 0.0
        %3100 = vmatprep.subr.mxu0 0.0
        %3101 = vmatpush1.msra.mxu0 0.0
        %3102 = vmatprep.subr.mxu0 0.0
        %3103 = vmatpush1.msra.mxu0 0.0
        %3104 = vmatprep.subr.mxu0 0.0
        %3105 = vmatpush1.msra.mxu0 0.0
        %3106 = vmatprep.subr.mxu0 0.0
        %3107 = vmatpush1.msra.mxu0 0.0
        %3108 = vmatprep.subr.mxu0 0.0
        %3109 = vmatpush1.msra.mxu0 0.0
        %3110 = vmatprep.subr.mxu0 0.0
        %3111 = vmatpush1.msra.mxu0 0.0
        %3112 = vmatprep.subr.mxu0 0.0
        %3113 = vmatpush1.msra.mxu0 0.0
        %3114 = vmatprep.subr.mxu0 0.0
        %3115 = vmatpush1.msra.mxu0 0.0
        %3116 = vmatprep.subr.mxu0 0.0
        %3117 = vmatpush1.msra.mxu0 0.0
        %3118 = vmatprep.subr.mxu0 0.0
        %3119 = vmatpush1.msra.mxu0 0.0
        %3120 = vmatprep.subr.mxu0 0.0
        %3121 = vmatpush1.msra.mxu0 0.0
        %3122 = vmatprep.subr.mxu0 0.0
        %3123 = vmatpush1.msra.mxu0 0.0
        %3124 = vmatprep.subr.mxu0 0.0
        %3125 = vmatpush1.msra.mxu0 0.0
        %3126 = vmatprep.subr.mxu0 0.0
        %3127 = vmatpush1.msra.mxu0 0.0
        %3128 = vmatprep.subr.mxu0 0.0
        %3129 = vmatpush1.msra.mxu0 0.0
        %3130 = vmatprep.subr.mxu0 0.0
        %3131 = vmatpush1.msra.mxu0 0.0
        %3132 = vmatprep.subr.mxu0 0.0
        %3133 = vmatpush1.msra.mxu0 0.0
        %3134 = vmatprep.subr.mxu0 0.0
        %3135 = vmatpush1.msra.mxu0 0.0
        %3136 = vmatprep.subr.mxu0 0.0
        %3137 = vmatpush1.msra.mxu0 0.0
        %3138 = vmatprep.subr.mxu0 0.0
        %3139 = vmatpush1.msra.mxu0 0.0
        %3140 = vmatprep.subr.mxu0 0.0
        %3141 = vmatpush1.msra.mxu0 0.0
        %3142 = vmatprep.subr.mxu0 0.0
        %3143 = vmatpush1.msra.mxu0 0.0
        %3144 = vmatprep.mubr.f32.mxu0 0.0
        %3145 = vmatmul.mubr.f32.gmra.mrb[0].mxu0 %v1428
        %v3146 = vpop.f32.mrb[0].mxu0
        %v3147 = vadd.f32 %v2435, %v3146
        %v3148 = vpop.f32.mrb[0].mxu0
        %v3149 = vadd.f32 %v2437, %v3148
        %3150 = vmatprep.mubr.f32.mxu0 0.0
        %3151 = vmatmul.mubr.f32.gmra.mrb[0].mxu0 %v1431
        %v3152 = vpop.f32.mrb[0].mxu0
        %v3153 = vadd.f32 %v2441, %v3152
        %v3154 = vpop.f32.mrb[0].mxu0
        %v3155 = vadd.f32 %v2443, %v3154
        %3156 = vmatprep.mubr.f32.mxu0 0.0
        %3157 = vmatmul.mubr.f32.gmra.mrb[0].mxu0 %v1434
        %v3158 = vpop.f32.mrb[0].mxu0
        %v3159 = vadd.f32 %v2447, %v3158
        %v3160 = vpop.f32.mrb[0].mxu0
        %v3161 = vadd.f32 %v2449, %v3160
        %3162 = vmatprep.mubr.f32.mxu0 0.0
        %3163 = vmatmul.mubr.f32.gmra.mrb[0].mxu0 %v1437
        %v3164 = vpop.f32.mrb[0].mxu0
        %v3165 = vadd.f32 %v2453, %v3164
        %v3166 = vpop.f32.mrb[0].mxu0
        %v3167 = vadd.f32 %v2455, %v3166
        %3168 = vdwg.mxu0
        %3169 = vmatprep.subr.mxu0 %v579
        %3170 = vmatpush1.msra.mxu0 %v578
        %3171 = vmatprep.subr.mxu0 %v595
        %3172 = vmatpush1.msra.mxu0 %v594
        %3173 = vmatprep.subr.mxu0 %v611
        %3174 = vmatpush1.msra.mxu0 %v610
        %3175 = vmatprep.subr.mxu0 %v627
        %3176 = vmatpush1.msra.mxu0 %v626
        %3177 = vmatprep.subr.mxu0 0.0
        %3178 = vmatpush1.msra.mxu0 0.0
        %3179 = vmatprep.subr.mxu0 0.0
        %3180 = vmatpush1.msra.mxu0 0.0
        %3181 = vmatprep.subr.mxu0 0.0
        %3182 = vmatpush1.msra.mxu0 0.0
        %3183 = vmatprep.subr.mxu0 0.0
        %3184 = vmatpush1.msra.mxu0 0.0
        %3185 = vmatprep.subr.mxu0 0.0
        %3186 = vmatpush1.msra.mxu0 0.0
        %3187 = vmatprep.subr.mxu0 0.0
        %3188 = vmatpush1.msra.mxu0 0.0
        %3189 = vmatprep.subr.mxu0 0.0
        %3190 = vmatpush1.msra.mxu0 0.0
        %3191 = vmatprep.subr.mxu0 0.0
        %3192 = vmatpush1.msra.mxu0 0.0
        %3193 = vmatprep.subr.mxu0 0.0
        %3194 = vmatpush1.msra.mxu0 0.0
        %3195 = vmatprep.subr.mxu0 0.0
        %3196 = vmatpush1.msra.mxu0 0.0
        %3197 = vmatprep.subr.mxu0 0.0
        %3198 = vmatpush1.msra.mxu0 0.0
        %3199 = vmatprep.subr.mxu0 0.0
        %3200 = vmatpush1.msra.mxu0 0.0
        %3201 = vmatprep.subr.mxu0 0.0
        %3202 = vmatpush1.msra.mxu0 0.0
        %3203 = vmatprep.subr.mxu0 0.0
        %3204 = vmatpush1.msra.mxu0 0.0
        %3205 = vmatprep.subr.mxu0 0.0
        %3206 = vmatpush1.msra.mxu0 0.0
        %3207 = vmatprep.subr.mxu0 0.0
        %3208 = vmatpush1.msra.mxu0 0.0
        %3209 = vmatprep.subr.mxu0 0.0
        %3210 = vmatpush1.msra.mxu0 0.0
        %3211 = vmatprep.subr.mxu0 0.0
        %3212 = vmatpush1.msra.mxu0 0.0
        %3213 = vmatprep.subr.mxu0 0.0
        %3214 = vmatpush1.msra.mxu0 0.0
        %3215 = vmatprep.subr.mxu0 0.0
        %3216 = vmatpush1.msra.mxu0 0.0
        %3217 = vmatprep.subr.mxu0 0.0
        %3218 = vmatpush1.msra.mxu0 0.0
        %3219 = vmatprep.subr.mxu0 0.0
        %3220 = vmatpush1.msra.mxu0 0.0
        %3221 = vmatprep.subr.mxu0 0.0
        %3222 = vmatpush1.msra.mxu0 0.0
        %3223 = vmatprep.subr.mxu0 0.0
        %3224 = vmatpush1.msra.mxu0 0.0
        %3225 = vmatprep.subr.mxu0 0.0
        %3226 = vmatpush1.msra.mxu0 0.0
        %3227 = vmatprep.subr.mxu0 0.0
        %3228 = vmatpush1.msra.mxu0 0.0
        %3229 = vmatprep.subr.mxu0 0.0
        %3230 = vmatpush1.msra.mxu0 0.0
        %3231 = vmatprep.subr.mxu0 0.0
        %3232 = vmatpush1.msra.mxu0 0.0
        %3233 = vmatprep.mubr.f32.mxu0 0.0
        %3234 = vmatmul.mubr.f32.gmra.mrb[0].mxu0 %v1428
        %v3235 = vpop.f32.mrb[0].mxu0
        %v3236 = vadd.f32 %v2524, %v3235
        %v3237 = vpop.f32.mrb[0].mxu0
        %v3238 = vadd.f32 %v2526, %v3237
        %3239 = vmatprep.mubr.f32.mxu0 0.0
        %3240 = vmatmul.mubr.f32.gmra.mrb[0].mxu0 %v1431
        %v3241 = vpop.f32.mrb[0].mxu0
        %v3242 = vadd.f32 %v2530, %v3241
        %v3243 = vpop.f32.mrb[0].mxu0
        %v3244 = vadd.f32 %v2532, %v3243
        %3245 = vmatprep.mubr.f32.mxu0 0.0
        %3246 = vmatmul.mubr.f32.gmra.mrb[0].mxu0 %v1434
        %v3247 = vpop.f32.mrb[0].mxu0
        %v3248 = vadd.f32 %v2536, %v3247
        %v3249 = vpop.f32.mrb[0].mxu0
        %v3250 = vadd.f32 %v2538, %v3249
        %3251 = vmatprep.mubr.f32.mxu0 0.0
        %3252 = vmatmul.mubr.f32.gmra.mrb[0].mxu0 %v1437
        %v3253 = vpop.f32.mrb[0].mxu0
        %v3254 = vadd.f32 %v2542, %v3253
        %v3255 = vpop.f32.mrb[0].mxu0
        %v3256 = vadd.f32 %v2544, %v3255
        %3257 = vdwg.mxu0
        %3258 = vmatprep.subr.mxu0 %v581
        %3259 = vmatpush1.msra.mxu0 %v580
        %3260 = vmatprep.subr.mxu0 %v597
        %3261 = vmatpush1.msra.mxu0 %v596
        %3262 = vmatprep.subr.mxu0 %v613
        %3263 = vmatpush1.msra.mxu0 %v612
        %3264 = vmatprep.subr.mxu0 %v629
        %3265 = vmatpush1.msra.mxu0 %v628
        %3266 = vmatprep.subr.mxu0 0.0
        %3267 = vmatpush1.msra.mxu0 0.0
        %3268 = vmatprep.subr.mxu0 0.0
        %3269 = vmatpush1.msra.mxu0 0.0
        %3270 = vmatprep.subr.mxu0 0.0
        %3271 = vmatpush1.msra.mxu0 0.0
        %3272 = vmatprep.subr.mxu0 0.0
        %3273 = vmatpush1.msra.mxu0 0.0
        %3274 = vmatprep.subr.mxu0 0.0
        %3275 = vmatpush1.msra.mxu0 0.0
        %3276 = vmatprep.subr.mxu0 0.0
        %3277 = vmatpush1.msra.mxu0 0.0
        %3278 = vmatprep.subr.mxu0 0.0
        %3279 = vmatpush1.msra.mxu0 0.0
        %3280 = vmatprep.subr.mxu0 0.0
        %3281 = vmatpush1.msra.mxu0 0.0
        %3282 = vmatprep.subr.mxu0 0.0
        %3283 = vmatpush1.msra.mxu0 0.0
        %3284 = vmatprep.subr.mxu0 0.0
        %3285 = vmatpush1.msra.mxu0 0.0
        %3286 = vmatprep.subr.mxu0 0.0
        %3287 = vmatpush1.msra.mxu0 0.0
        %3288 = vmatprep.subr.mxu0 0.0
        %3289 = vmatpush1.msra.mxu0 0.0
        %3290 = vmatprep.subr.mxu0 0.0
        %3291 = vmatpush1.msra.mxu0 0.0
        %3292 = vmatprep.subr.mxu0 0.0
        %3293 = vmatpush1.msra.mxu0 0.0
        %3294 = vmatprep.subr.mxu0 0.0
        %3295 = vmatpush1.msra.mxu0 0.0
        %3296 = vmatprep.subr.mxu0 0.0
        %3297 = vmatpush1.msra.mxu0 0.0
        %3298 = vmatprep.subr.mxu0 0.0
        %3299 = vmatpush1.msra.mxu0 0.0
        %3300 = vmatprep.subr.mxu0 0.0
        %3301 = vmatpush1.msra.mxu0 0.0
        %3302 = vmatprep.subr.mxu0 0.0
        %3303 = vmatpush1.msra.mxu0 0.0
        %3304 = vmatprep.subr.mxu0 0.0
        %3305 = vmatpush1.msra.mxu0 0.0
        %3306 = vmatprep.subr.mxu0 0.0
        %3307 = vmatpush1.msra.mxu0 0.0
        %3308 = vmatprep.subr.mxu0 0.0
        %3309 = vmatpush1.msra.mxu0 0.0
        %3310 = vmatprep.subr.mxu0 0.0
        %3311 = vmatpush1.msra.mxu0 0.0
        %3312 = vmatprep.subr.mxu0 0.0
        %3313 = vmatpush1.msra.mxu0 0.0
        %3314 = vmatprep.subr.mxu0 0.0
        %3315 = vmatpush1.msra.mxu0 0.0
        %3316 = vmatprep.subr.mxu0 0.0
        %3317 = vmatpush1.msra.mxu0 0.0
        %3318 = vmatprep.subr.mxu0 0.0
        %3319 = vmatpush1.msra.mxu0 0.0
        %3320 = vmatprep.subr.mxu0 0.0
        %3321 = vmatpush1.msra.mxu0 0.0
        %3322 = vmatprep.mubr.f32.mxu0 0.0
        %3323 = vmatmul.mubr.f32.gmra.mrb[0].mxu0 %v1428
        %v3324 = vpop.f32.mrb[0].mxu0
        %v3325 = vadd.f32 %v2613, %v3324
        %v3326 = vpop.f32.mrb[0].mxu0
        %v3327 = vadd.f32 %v2615, %v3326
        %3328 = vmatprep.mubr.f32.mxu0 0.0
        %3329 = vmatmul.mubr.f32.gmra.mrb[0].mxu0 %v1431
        %v3330 = vpop.f32.mrb[0].mxu0
        %v3331 = vadd.f32 %v2619, %v3330
        %v3332 = vpop.f32.mrb[0].mxu0
        %v3333 = vadd.f32 %v2621, %v3332
        %3334 = vmatprep.mubr.f32.mxu0 0.0
        %3335 = vmatmul.mubr.f32.gmra.mrb[0].mxu0 %v1434
        %v3336 = vpop.f32.mrb[0].mxu0
        %v3337 = vadd.f32 %v2625, %v3336
        %v3338 = vpop.f32.mrb[0].mxu0
        %v3339 = vadd.f32 %v2627, %v3338
        %3340 = vmatprep.mubr.f32.mxu0 0.0
        %3341 = vmatmul.mubr.f32.gmra.mrb[0].mxu0 %v1437
        %v3342 = vpop.f32.mrb[0].mxu0
        %v3343 = vadd.f32 %v2631, %v3342
        %v3344 = vpop.f32.mrb[0].mxu0
        %v3345 = vadd.f32 %v2633, %v3344
        %3346 = vdwg.mxu0
        %3347 = vmatprep.subr.mxu0 %v583
        %3348 = vmatpush1.msra.mxu0 %v582
        %3349 = vmatprep.subr.mxu0 %v599
        %3350 = vmatpush1.msra.mxu0 %v598
        %3351 = vmatprep.subr.mxu0 %v615
        %3352 = vmatpush1.msra.mxu0 %v614
        %3353 = vmatprep.subr.mxu0 %v631
        %3354 = vmatpush1.msra.mxu0 %v630
        %3355 = vmatprep.subr.mxu0 0.0
        %3356 = vmatpush1.msra.mxu0 0.0
        %3357 = vmatprep.subr.mxu0 0.0
        %3358 = vmatpush1.msra.mxu0 0.0
        %3359 = vmatprep.subr.mxu0 0.0
        %3360 = vmatpush1.msra.mxu0 0.0
        %3361 = vmatprep.subr.mxu0 0.0
        %3362 = vmatpush1.msra.mxu0 0.0
        %3363 = vmatprep.subr.mxu0 0.0
        %3364 = vmatpush1.msra.mxu0 0.0
        %3365 = vmatprep.subr.mxu0 0.0
        %3366 = vmatpush1.msra.mxu0 0.0
        %3367 = vmatprep.subr.mxu0 0.0
        %3368 = vmatpush1.msra.mxu0 0.0
        %3369 = vmatprep.subr.mxu0 0.0
        %3370 = vmatpush1.msra.mxu0 0.0
        %3371 = vmatprep.subr.mxu0 0.0
        %3372 = vmatpush1.msra.mxu0 0.0
        %3373 = vmatprep.subr.mxu0 0.0
        %3374 = vmatpush1.msra.mxu0 0.0
        %3375 = vmatprep.subr.mxu0 0.0
        %3376 = vmatpush1.msra.mxu0 0.0
        %3377 = vmatprep.subr.mxu0 0.0
        %3378 = vmatpush1.msra.mxu0 0.0
        %3379 = vmatprep.subr.mxu0 0.0
        %3380 = vmatpush1.msra.mxu0 0.0
        %3381 = vmatprep.subr.mxu0 0.0
        %3382 = vmatpush1.msra.mxu0 0.0
        %3383 = vmatprep.subr.mxu0 0.0
        %3384 = vmatpush1.msra.mxu0 0.0
        %3385 = vmatprep.subr.mxu0 0.0
        %3386 = vmatpush1.msra.mxu0 0.0
        %3387 = vmatprep.subr.mxu0 0.0
        %3388 = vmatpush1.msra.mxu0 0.0
        %3389 = vmatprep.subr.mxu0 0.0
        %3390 = vmatpush1.msra.mxu0 0.0
        %3391 = vmatprep.subr.mxu0 0.0
        %3392 = vmatpush1.msra.mxu0 0.0
        %3393 = vmatprep.subr.mxu0 0.0
        %3394 = vmatpush1.msra.mxu0 0.0
        %3395 = vmatprep.subr.mxu0 0.0
        %3396 = vmatpush1.msra.mxu0 0.0
        %3397 = vmatprep.subr.mxu0 0.0
        %3398 = vmatpush1.msra.mxu0 0.0
        %3399 = vmatprep.subr.mxu0 0.0
        %3400 = vmatpush1.msra.mxu0 0.0
        %3401 = vmatprep.subr.mxu0 0.0
        %3402 = vmatpush1.msra.mxu0 0.0
        %3403 = vmatprep.subr.mxu0 0.0
        %3404 = vmatpush1.msra.mxu0 0.0
        %3405 = vmatprep.subr.mxu0 0.0
        %3406 = vmatpush1.msra.mxu0 0.0
        %3407 = vmatprep.subr.mxu0 0.0
        %3408 = vmatpush1.msra.mxu0 0.0
        %3409 = vmatprep.subr.mxu0 0.0
        %3410 = vmatpush1.msra.mxu0 0.0
        %3411 = vmatprep.mubr.f32.mxu0 0.0
        %3412 = vmatmul.mubr.f32.gmra.mrb[0].mxu0 %v1428
        %v3413 = vpop.f32.mrb[0].mxu0
        %v3414 = vadd.f32 %v2702, %v3413
        %v3415 = vpop.f32.mrb[0].mxu0
        %v3416 = vadd.f32 %v2704, %v3415
        %3417 = vmatprep.mubr.f32.mxu0 0.0
        %3418 = vmatmul.mubr.f32.gmra.mrb[0].mxu0 %v1431
        %v3419 = vpop.f32.mrb[0].mxu0
        %v3420 = vadd.f32 %v2708, %v3419
        %v3421 = vpop.f32.mrb[0].mxu0
        %v3422 = vadd.f32 %v2710, %v3421
        %3423 = vmatprep.mubr.f32.mxu0 0.0
        %3424 = vmatmul.mubr.f32.gmra.mrb[0].mxu0 %v1434
        %v3425 = vpop.f32.mrb[0].mxu0
        %v3426 = vadd.f32 %v2714, %v3425
        %v3427 = vpop.f32.mrb[0].mxu0
        %v3428 = vadd.f32 %v2716, %v3427
        %3429 = vmatprep.mubr.f32.mxu0 0.0
        %3430 = vmatmul.mubr.f32.gmra.mrb[0].mxu0 %v1437
        %v3431 = vpop.f32.mrb[0].mxu0
        %v3432 = vadd.f32 %v2720, %v3431
        %v3433 = vpop.f32.mrb[0].mxu0
        %v3434 = vadd.f32 %v2722, %v3433
        %3435 = vdwg.mxu0
        %3436 = vmatprep.subr.mxu0 %v585
        %3437 = vmatpush1.msra.mxu0 %v584
        %3438 = vmatprep.subr.mxu0 %v601
        %3439 = vmatpush1.msra.mxu0 %v600
        %3440 = vmatprep.subr.mxu0 %v617
        %3441 = vmatpush1.msra.mxu0 %v616
        %3442 = vmatprep.subr.mxu0 %v633
        %3443 = vmatpush1.msra.mxu0 %v632
        %3444 = vmatprep.subr.mxu0 0.0
        %3445 = vmatpush1.msra.mxu0 0.0
        %3446 = vmatprep.subr.mxu0 0.0
        %3447 = vmatpush1.msra.mxu0 0.0
        %3448 = vmatprep.subr.mxu0 0.0
        %3449 = vmatpush1.msra.mxu0 0.0
        %3450 = vmatprep.subr.mxu0 0.0
        %3451 = vmatpush1.msra.mxu0 0.0
        %3452 = vmatprep.subr.mxu0 0.0
        %3453 = vmatpush1.msra.mxu0 0.0
        %3454 = vmatprep.subr.mxu0 0.0
        %3455 = vmatpush1.msra.mxu0 0.0
        %3456 = vmatprep.subr.mxu0 0.0
        %3457 = vmatpush1.msra.mxu0 0.0
        %3458 = vmatprep.subr.mxu0 0.0
        %3459 = vmatpush1.msra.mxu0 0.0
        %3460 = vmatprep.subr.mxu0 0.0
        %3461 = vmatpush1.msra.mxu0 0.0
        %3462 = vmatprep.subr.mxu0 0.0
        %3463 = vmatpush1.msra.mxu0 0.0
        %3464 = vmatprep.subr.mxu0 0.0
        %3465 = vmatpush1.msra.mxu0 0.0
        %3466 = vmatprep.subr.mxu0 0.0
        %3467 = vmatpush1.msra.mxu0 0.0
        %3468 = vmatprep.subr.mxu0 0.0
        %3469 = vmatpush1.msra.mxu0 0.0
        %3470 = vmatprep.subr.mxu0 0.0
        %3471 = vmatpush1.msra.mxu0 0.0
        %3472 = vmatprep.subr.mxu0 0.0
        %3473 = vmatpush1.msra.mxu0 0.0
        %3474 = vmatprep.subr.mxu0 0.0
        %3475 = vmatpush1.msra.mxu0 0.0
        %3476 = vmatprep.subr.mxu0 0.0
        %3477 = vmatpush1.msra.mxu0 0.0
        %3478 = vmatprep.subr.mxu0 0.0
        %3479 = vmatpush1.msra.mxu0 0.0
        %3480 = vmatprep.subr.mxu0 0.0
        %3481 = vmatpush1.msra.mxu0 0.0
        %3482 = vmatprep.subr.mxu0 0.0
        %3483 = vmatpush1.msra.mxu0 0.0
        %3484 = vmatprep.subr.mxu0 0.0
        %3485 = vmatpush1.msra.mxu0 0.0
        %3486 = vmatprep.subr.mxu0 0.0
        %3487 = vmatpush1.msra.mxu0 0.0
        %3488 = vmatprep.subr.mxu0 0.0
        %3489 = vmatpush1.msra.mxu0 0.0
        %3490 = vmatprep.subr.mxu0 0.0
        %3491 = vmatpush1.msra.mxu0 0.0
        %3492 = vmatprep.subr.mxu0 0.0
        %3493 = vmatpush1.msra.mxu0 0.0
        %3494 = vmatprep.subr.mxu0 0.0
        %3495 = vmatpush1.msra.mxu0 0.0
        %3496 = vmatprep.subr.mxu0 0.0
        %3497 = vmatpush1.msra.mxu0 0.0
        %3498 = vmatprep.subr.mxu0 0.0
        %3499 = vmatpush1.msra.mxu0 0.0
        %3500 = vmatprep.mubr.f32.mxu0 0.0
        %3501 = vmatmul.mubr.f32.gmra.mrb[0].mxu0 %v1428
        %v3502 = vpop.f32.mrb[0].mxu0
        %v3503 = vadd.f32 %v2791, %v3502
        %v3504 = vpop.f32.mrb[0].mxu0
        %v3505 = vadd.f32 %v2793, %v3504
        %3506 = vmatprep.mubr.f32.mxu0 0.0
        %3507 = vmatmul.mubr.f32.gmra.mrb[0].mxu0 %v1431
        %v3508 = vpop.f32.mrb[0].mxu0
        %v3509 = vadd.f32 %v2797, %v3508
        %v3510 = vpop.f32.mrb[0].mxu0
        %v3511 = vadd.f32 %v2799, %v3510
        %3512 = vmatprep.mubr.f32.mxu0 0.0
        %3513 = vmatmul.mubr.f32.gmra.mrb[0].mxu0 %v1434
        %v3514 = vpop.f32.mrb[0].mxu0
        %v3515 = vadd.f32 %v2803, %v3514
        %v3516 = vpop.f32.mrb[0].mxu0
        %v3517 = vadd.f32 %v2805, %v3516
        %3518 = vmatprep.mubr.f32.mxu0 0.0
        %3519 = vmatmul.mubr.f32.gmra.mrb[0].mxu0 %v1437
        %v3520 = vpop.f32.mrb[0].mxu0
        %v3521 = vadd.f32 %v2809, %v3520
        %v3522 = vpop.f32.mrb[0].mxu0
        %v3523 = vadd.f32 %v2811, %v3522
        %3524 = vdwg.mxu0
        %3525 = vmatprep.subr.mxu0 %v587
        %3526 = vmatpush1.msra.mxu0 %v586
        %3527 = vmatprep.subr.mxu0 %v603
        %3528 = vmatpush1.msra.mxu0 %v602
        %3529 = vmatprep.subr.mxu0 %v619
        %3530 = vmatpush1.msra.mxu0 %v618
        %3531 = vmatprep.subr.mxu0 %v635
        %3532 = vmatpush1.msra.mxu0 %v634
        %3533 = vmatprep.subr.mxu0 0.0
        %3534 = vmatpush1.msra.mxu0 0.0
        %3535 = vmatprep.subr.mxu0 0.0
        %3536 = vmatpush1.msra.mxu0 0.0
        %3537 = vmatprep.subr.mxu0 0.0
        %3538 = vmatpush1.msra.mxu0 0.0
        %3539 = vmatprep.subr.mxu0 0.0
        %3540 = vmatpush1.msra.mxu0 0.0
        %3541 = vmatprep.subr.mxu0 0.0
        %3542 = vmatpush1.msra.mxu0 0.0
        %3543 = vmatprep.subr.mxu0 0.0
        %3544 = vmatpush1.msra.mxu0 0.0
        %3545 = vmatprep.subr.mxu0 0.0
        %3546 = vmatpush1.msra.mxu0 0.0
        %3547 = vmatprep.subr.mxu0 0.0
        %3548 = vmatpush1.msra.mxu0 0.0
        %3549 = vmatprep.subr.mxu0 0.0
        %3550 = vmatpush1.msra.mxu0 0.0
        %3551 = vmatprep.subr.mxu0 0.0
        %3552 = vmatpush1.msra.mxu0 0.0
        %3553 = vmatprep.subr.mxu0 0.0
        %3554 = vmatpush1.msra.mxu0 0.0
        %3555 = vmatprep.subr.mxu0 0.0
        %3556 = vmatpush1.msra.mxu0 0.0
        %3557 = vmatprep.subr.mxu0 0.0
        %3558 = vmatpush1.msra.mxu0 0.0
        %3559 = vmatprep.subr.mxu0 0.0
        %3560 = vmatpush1.msra.mxu0 0.0
        %3561 = vmatprep.subr.mxu0 0.0
        %3562 = vmatpush1.msra.mxu0 0.0
        %3563 = vmatprep.subr.mxu0 0.0
        %3564 = vmatpush1.msra.mxu0 0.0
        %3565 = vmatprep.subr.mxu0 0.0
        %3566 = vmatpush1.msra.mxu0 0.0
        %3567 = vmatprep.subr.mxu0 0.0
        %3568 = vmatpush1.msra.mxu0 0.0
        %3569 = vmatprep.subr.mxu0 0.0
        %3570 = vmatpush1.msra.mxu0 0.0
        %3571 = vmatprep.subr.mxu0 0.0
        %3572 = vmatpush1.msra.mxu0 0.0
        %3573 = vmatprep.subr.mxu0 0.0
        %3574 = vmatpush1.msra.mxu0 0.0
        %3575 = vmatprep.subr.mxu0 0.0
        %3576 = vmatpush1.msra.mxu0 0.0
        %3577 = vmatprep.subr.mxu0 0.0
        %3578 = vmatpush1.msra.mxu0 0.0
        %3579 = vmatprep.subr.mxu0 0.0
        %3580 = vmatpush1.msra.mxu0 0.0
        %3581 = vmatprep.subr.mxu0 0.0
        %3582 = vmatpush1.msra.mxu0 0.0
        %3583 = vmatprep.subr.mxu0 0.0
        %3584 = vmatpush1.msra.mxu0 0.0
        %3585 = vmatprep.subr.mxu0 0.0
        %3586 = vmatpush1.msra.mxu0 0.0
        %3587 = vmatprep.subr.mxu0 0.0
        %3588 = vmatpush1.msra.mxu0 0.0
        %3589 = vmatprep.mubr.f32.mxu0 0.0
        %3590 = vmatmul.mubr.f32.gmra.mrb[0].mxu0 %v1428
        %v3591 = vpop.f32.mrb[0].mxu0
        %v3592 = vadd.f32 %v2880, %v3591
        %v3593 = vpop.f32.mrb[0].mxu0
        %v3594 = vadd.f32 %v2882, %v3593
        %3595 = vmatprep.mubr.f32.mxu0 0.0
        %3596 = vmatmul.mubr.f32.gmra.mrb[0].mxu0 %v1431
        %v3597 = vpop.f32.mrb[0].mxu0
        %v3598 = vadd.f32 %v2886, %v3597
        %v3599 = vpop.f32.mrb[0].mxu0
        %v3600 = vadd.f32 %v2888, %v3599
        %3601 = vmatprep.mubr.f32.mxu0 0.0
        %3602 = vmatmul.mubr.f32.gmra.mrb[0].mxu0 %v1434
        %v3603 = vpop.f32.mrb[0].mxu0
        %v3604 = vadd.f32 %v2892, %v3603
        %v3605 = vpop.f32.mrb[0].mxu0
        %v3606 = vadd.f32 %v2894, %v3605
        %3607 = vmatprep.mubr.f32.mxu0 0.0
        %3608 = vmatmul.mubr.f32.gmra.mrb[0].mxu0 %v1437
        %v3609 = vpop.f32.mrb[0].mxu0
        %v3610 = vadd.f32 %v2898, %v3609
        %v3611 = vpop.f32.mrb[0].mxu0
        %v3612 = vadd.f32 %v2900, %v3611
        %3613 = vdwg.mxu0
        %3614 = vmatprep.subr.mxu0 %v589
        %3615 = vmatpush1.msra.mxu0 %v588
        %3616 = vmatprep.subr.mxu0 %v605
        %3617 = vmatpush1.msra.mxu0 %v604
        %3618 = vmatprep.subr.mxu0 %v621
        %3619 = vmatpush1.msra.mxu0 %v620
        %3620 = vmatprep.subr.mxu0 %v637
        %3621 = vmatpush1.msra.mxu0 %v636
        %3622 = vmatprep.subr.mxu0 0.0
        %3623 = vmatpush1.msra.mxu0 0.0
        %3624 = vmatprep.subr.mxu0 0.0
        %3625 = vmatpush1.msra.mxu0 0.0
        %3626 = vmatprep.subr.mxu0 0.0
        %3627 = vmatpush1.msra.mxu0 0.0
        %3628 = vmatprep.subr.mxu0 0.0
        %3629 = vmatpush1.msra.mxu0 0.0
        %3630 = vmatprep.subr.mxu0 0.0
        %3631 = vmatpush1.msra.mxu0 0.0
        %3632 = vmatprep.subr.mxu0 0.0
        %3633 = vmatpush1.msra.mxu0 0.0
        %3634 = vmatprep.subr.mxu0 0.0
        %3635 = vmatpush1.msra.mxu0 0.0
        %3636 = vmatprep.subr.mxu0 0.0
        %3637 = vmatpush1.msra.mxu0 0.0
        %3638 = vmatprep.subr.mxu0 0.0
        %3639 = vmatpush1.msra.mxu0 0.0
        %3640 = vmatprep.subr.mxu0 0.0
        %3641 = vmatpush1.msra.mxu0 0.0
        %3642 = vmatprep.subr.mxu0 0.0
        %3643 = vmatpush1.msra.mxu0 0.0
        %3644 = vmatprep.subr.mxu0 0.0
        %3645 = vmatpush1.msra.mxu0 0.0
        %3646 = vmatprep.subr.mxu0 0.0
        %3647 = vmatpush1.msra.mxu0 0.0
        %3648 = vmatprep.subr.mxu0 0.0
        %3649 = vmatpush1.msra.mxu0 0.0
        %3650 = vmatprep.subr.mxu0 0.0
        %3651 = vmatpush1.msra.mxu0 0.0
        %3652 = vmatprep.subr.mxu0 0.0
        %3653 = vmatpush1.msra.mxu0 0.0
        %3654 = vmatprep.subr.mxu0 0.0
        %3655 = vmatpush1.msra.mxu0 0.0
        %3656 = vmatprep.subr.mxu0 0.0
        %3657 = vmatpush1.msra.mxu0 0.0
        %3658 = vmatprep.subr.mxu0 0.0
        %3659 = vmatpush1.msra.mxu0 0.0
        %3660 = vmatprep.subr.mxu0 0.0
        %3661 = vmatpush1.msra.mxu0 0.0
        %3662 = vmatprep.subr.mxu0 0.0
        %3663 = vmatpush1.msra.mxu0 0.0
        %3664 = vmatprep.subr.mxu0 0.0
        %3665 = vmatpush1.msra.mxu0 0.0
        %3666 = vmatprep.subr.mxu0 0.0
        %3667 = vmatpush1.msra.mxu0 0.0
        %3668 = vmatprep.subr.mxu0 0.0
        %3669 = vmatpush1.msra.mxu0 0.0
        %3670 = vmatprep.subr.mxu0 0.0
        %3671 = vmatpush1.msra.mxu0 0.0
        %3672 = vmatprep.subr.mxu0 0.0
        %3673 = vmatpush1.msra.mxu0 0.0
        %3674 = vmatprep.subr.mxu0 0.0
        %3675 = vmatpush1.msra.mxu0 0.0
        %3676 = vmatprep.subr.mxu0 0.0
        %3677 = vmatpush1.msra.mxu0 0.0
        %3678 = vmatprep.mubr.f32.mxu0 0.0
        %3679 = vmatmul.mubr.f32.gmra.mrb[0].mxu0 %v1428
        %v3680 = vpop.f32.mrb[0].mxu0
        %v3681 = vadd.f32 %v2969, %v3680
        %v3682 = vpop.f32.mrb[0].mxu0
        %v3683 = vadd.f32 %v2971, %v3682
        %3684 = vmatprep.mubr.f32.mxu0 0.0
        %3685 = vmatmul.mubr.f32.gmra.mrb[0].mxu0 %v1431
        %v3686 = vpop.f32.mrb[0].mxu0
        %v3687 = vadd.f32 %v2975, %v3686
        %v3688 = vpop.f32.mrb[0].mxu0
        %v3689 = vadd.f32 %v2977, %v3688
        %3690 = vmatprep.mubr.f32.mxu0 0.0
        %3691 = vmatmul.mubr.f32.gmra.mrb[0].mxu0 %v1434
        %v3692 = vpop.f32.mrb[0].mxu0
        %v3693 = vadd.f32 %v2981, %v3692
        %v3694 = vpop.f32.mrb[0].mxu0
        %v3695 = vadd.f32 %v2983, %v3694
        %3696 = vmatprep.mubr.f32.mxu0 0.0
        %3697 = vmatmul.mubr.f32.gmra.mrb[0].mxu0 %v1437
        %v3698 = vpop.f32.mrb[0].mxu0
        %v3699 = vadd.f32 %v2987, %v3698
        %v3700 = vpop.f32.mrb[0].mxu0
        %v3701 = vadd.f32 %v2989, %v3700
        %3702 = vdwg.mxu0
        %3703 = vst [vmem:[%s561] sm:$0xff] %v3058
        %3704 = vst [vmem:[%s561 + $0x8] sm:$0xff] %v3060
        %3705 = vst [vmem:[%s561 + $0x10] sm:$0xff] %v3147
        %3706 = vst [vmem:[%s561 + $0x18] sm:$0xff] %v3149
        %3707 = vst [vmem:[%s561 + $0x20] sm:$0xff] %v3236
        %3708 = vst [vmem:[%s561 + $0x28] sm:$0xff] %v3238
        %3709 = vst [vmem:[%s561 + $0x30] sm:$0xff] %v3325
        %3710 = vst [vmem:[%s561 + $0x38] sm:$0xff] %v3327
        %3711 = vst [vmem:[%s561 + $0x40] sm:$0xff] %v3414
        %3712 = vst [vmem:[%s561 + $0x48] sm:$0xff] %v3416
        %3713 = vst [vmem:[%s561 + $0x50] sm:$0xff] %v3503
        %3714 = vst [vmem:[%s561 + $0x58] sm:$0xff] %v3505
        %3715 = vst [vmem:[%s561 + $0x60] sm:$0xff] %v3592
        %3716 = vst [vmem:[%s561 + $0x68] sm:$0xff] %v3594
        %3717 = vst [vmem:[%s561 + $0x70] sm:$0xff] %v3681
        %3718 = vst [vmem:[%s561 + $0x78] sm:$0xff] %v3683
        %3719 = vst [vmem:[%s561 + $0x80] sm:$0xff] %v3064
        %3720 = vst [vmem:[%s561 + $0x88] sm:$0xff] %v3066
        %3721 = vst [vmem:[%s561 + $0x90] sm:$0xff] %v3153
        %3722 = vst [vmem:[%s561 + $0x98] sm:$0xff] %v3155
        %3723 = vst [vmem:[%s561 + $0xa0] sm:$0xff] %v3242
        %3724 = vst [vmem:[%s561 + $0xa8] sm:$0xff] %v3244
        %3725 = vst [vmem:[%s561 + $0xb0] sm:$0xff] %v3331
        %3726 = vst [vmem:[%s561 + $0xb8] sm:$0xff] %v3333
        %3727 = vst [vmem:[%s561 + $0xc0] sm:$0xff] %v3420
        %3728 = vst [vmem:[%s561 + $0xc8] sm:$0xff] %v3422
        %3729 = vst [vmem:[%s561 + $0xd0] sm:$0xff] %v3509
        %3730 = vst [vmem:[%s561 + $0xd8] sm:$0xff] %v3511
        %3731 = vst [vmem:[%s561 + $0xe0] sm:$0xff] %v3598
        %3732 = vst [vmem:[%s561 + $0xe8] sm:$0xff] %v3600
        %3733 = vst [vmem:[%s561 + $0xf0] sm:$0xff] %v3687
        %3734 = vst [vmem:[%s561 + $0xf8] sm:$0xff] %v3689
        %3735 = vst [vmem:[%s561 + $0x100] sm:$0xff] %v3070
        %3736 = vst [vmem:[%s561 + $0x108] sm:$0xff] %v3072
        %3737 = vst [vmem:[%s561 + $0x110] sm:$0xff] %v3159
        %3738 = vst [vmem:[%s561 + $0x118] sm:$0xff] %v3161
        %3739 = vst [vmem:[%s561 + $0x120] sm:$0xff] %v3248
        %3740 = vst [vmem:[%s561 + $0x128] sm:$0xff] %v3250
        %3741 = vst [vmem:[%s561 + $0x130] sm:$0xff] %v3337
        %3742 = vst [vmem:[%s561 + $0x138] sm:$0xff] %v3339
        %3743 = vst [vmem:[%s561 + $0x140] sm:$0xff] %v3426
        %3744 = vst [vmem:[%s561 + $0x148] sm:$0xff] %v3428
        %3745 = vst [vmem:[%s561 + $0x150] sm:$0xff] %v3515
        %3746 = vst [vmem:[%s561 + $0x158] sm:$0xff] %v3517
        %3747 = vst [vmem:[%s561 + $0x160] sm:$0xff] %v3604
        %3748 = vst [vmem:[%s561 + $0x168] sm:$0xff] %v3606
        %3749 = vst [vmem:[%s561 + $0x170] sm:$0xff] %v3693
        %3750 = vst [vmem:[%s561 + $0x178] sm:$0xff] %v3695
        %3751 = vst [vmem:[%s561 + $0x180] sm:$0xff] %v3076
        %3752 = vst [vmem:[%s561 + $0x188] sm:$0xff] %v3078
        %3753 = vst [vmem:[%s561 + $0x190] sm:$0xff] %v3165
        %3754 = vst [vmem:[%s561 + $0x198] sm:$0xff] %v3167
        %3755 = vst [vmem:[%s561 + $0x1a0] sm:$0xff] %v3254
        %3756 = vst [vmem:[%s561 + $0x1a8] sm:$0xff] %v3256
        %3757 = vst [vmem:[%s561 + $0x1b0] sm:$0xff] %v3343
        %3758 = vst [vmem:[%s561 + $0x1b8] sm:$0xff] %v3345
        %3759 = vst [vmem:[%s561 + $0x1c0] sm:$0xff] %v3432
        %3760 = vst [vmem:[%s561 + $0x1c8] sm:$0xff] %v3434
        %3761 = vst [vmem:[%s561 + $0x1d0] sm:$0xff] %v3521
        %3762 = vst [vmem:[%s561 + $0x1d8] sm:$0xff] %v3523
        %3763 = vst [vmem:[%s561 + $0x1e0] sm:$0xff] %v3610
        %3764 = vst [vmem:[%s561 + $0x1e8] sm:$0xff] %v3612
        %3765 = vst [vmem:[%s561 + $0x1f0] sm:$0xff] %v3699
        %3766 = vst [vmem:[%s561 + $0x1f8] sm:$0xff] %v3701
        %s3767 = sand.u32 %s137, 1
        %s3768 = sand.u32 %s137, 1
        %s3769 = smul.addr %s3768, 512
        %s3770 = scalar_lea.vmem [#allocation4], %s3769
        %s3771 = sand.u32 %s165, 1
        %s3772 = sand.u32 %s165, 1
        %s3773 = smul.addr %s3772, 512
        %s3774 = scalar_lea.vmem [#allocation5], %s3773
        // Predicated region
        $region83: #{_lambda_.1} parent=73 // pred_check
          %p3775 = pneg %p147
        $region84: #{_lambda_.1} parent=73 // pred_check_branch
          %3777 = sbr.rel (%p3775) target = $region86
        $region85: #{_lambda_.1} parent=73 // pred_region
          %s3778 = smul.u32 16, %s22
          %s3779 = smul.addr %s21, 128
          %s3780 = sadd.s32 %s3778, %s3779
          %s3781 = smul.addr %s3780, 8
          %s3782 = scalar_lea.vmem %s4, %s3781
          // Predicated region
          $region87: #{_lambda_.1} parent=85 // pred_check
            _
          $region88: #{_lambda_.1} parent=85 // pred_check_branch
            %3784 = sbr.rel (0) target = $region90
          $region89: #{_lambda_.1} parent=85 // pred_region
            // Predicated region
            $region91: #{_lambda_.1} parent=89 // pred_check
              _
            $region92: #{_lambda_.1} parent=89 // pred_check_branch
              %3786 = sbr.rel (0) target = $region94
            $region93: #{_lambda_.1} parent=89 // pred_region
              loop: start=0, step=1, limit=1
              $region95: #{_lambda_.1} parent=93 // loop_pre_header
                _
              $region96: #{_lambda_.1} parent=93 // loop_header
                %s3788 = sphi 0, %s3792
                %p3789 = scmp.ge.s32.totalorder %s3788, 1
                %s3793 = sphi %s3770, %s3770
                %s3794 = sphi %s3782, %s3782
              $region97: #{_lambda_.1} parent=93 // loop_header_branch
                %3791 = sbr.rel (%p3789) target = $region101
              $region98: #{_lambda_.1} parent=93 // loop_body
                %v3795 = vld [vmem:[%s3793] sm:$0xff]
                %3796 = vst [vmem:[%s3794] sm:$0xff] %v3795
                %v3797 = vld [vmem:[%s3793 + $0x8] sm:$0xff]
                %3798 = vst [vmem:[%s3794 + $0x8] sm:$0xff] %v3797
                %v3799 = vld [vmem:[%s3793 + $0x10] sm:$0xff]
                %3800 = vst [vmem:[%s3794 + $0x10] sm:$0xff] %v3799
                %v3801 = vld [vmem:[%s3793 + $0x18] sm:$0xff]
                %3802 = vst [vmem:[%s3794 + $0x18] sm:$0xff] %v3801
                %v3803 = vld [vmem:[%s3793 + $0x20] sm:$0xff]
                %3804 = vst [vmem:[%s3794 + $0x20] sm:$0xff] %v3803
                %v3805 = vld [vmem:[%s3793 + $0x28] sm:$0xff]
                %3806 = vst [vmem:[%s3794 + $0x28] sm:$0xff] %v3805
                %v3807 = vld [vmem:[%s3793 + $0x30] sm:$0xff]
                %3808 = vst [vmem:[%s3794 + $0x30] sm:$0xff] %v3807
                %v3809 = vld [vmem:[%s3793 + $0x38] sm:$0xff]
                %3810 = vst [vmem:[%s3794 + $0x38] sm:$0xff] %v3809
                %v3811 = vld [vmem:[%s3793 + $0x40] sm:$0xff]
                %3812 = vst [vmem:[%s3794 + $0x40] sm:$0xff] %v3811
                %v3813 = vld [vmem:[%s3793 + $0x48] sm:$0xff]
                %3814 = vst [vmem:[%s3794 + $0x48] sm:$0xff] %v3813
                %v3815 = vld [vmem:[%s3793 + $0x50] sm:$0xff]
                %3816 = vst [vmem:[%s3794 + $0x50] sm:$0xff] %v3815
                %v3817 = vld [vmem:[%s3793 + $0x58] sm:$0xff]
                %3818 = vst [vmem:[%s3794 + $0x58] sm:$0xff] %v3817
                %v3819 = vld [vmem:[%s3793 + $0x60] sm:$0xff]
                %3820 = vst [vmem:[%s3794 + $0x60] sm:$0xff] %v3819
                %v3821 = vld [vmem:[%s3793 + $0x68] sm:$0xff]
                %3822 = vst [vmem:[%s3794 + $0x68] sm:$0xff] %v3821
                %v3823 = vld [vmem:[%s3793 + $0x70] sm:$0xff]
                %3824 = vst [vmem:[%s3794 + $0x70] sm:$0xff] %v3823
                %v3825 = vld [vmem:[%s3793 + $0x78] sm:$0xff]
                %3826 = vst [vmem:[%s3794 + $0x78] sm:$0xff] %v3825
                %v3827 = vld [vmem:[%s3793 + $0x80] sm:$0xff]
                %3828 = vst [vmem:[%s3794 + $0x100] sm:$0xff] %v3827
                %v3829 = vld [vmem:[%s3793 + $0x88] sm:$0xff]
                %3830 = vst [vmem:[%s3794 + $0x108] sm:$0xff] %v3829
                %v3831 = vld [vmem:[%s3793 + $0x90] sm:$0xff]
                %3832 = vst [vmem:[%s3794 + $0x110] sm:$0xff] %v3831
                %v3833 = vld [vmem:[%s3793 + $0x98] sm:$0xff]
                %3834 = vst [vmem:[%s3794 + $0x118] sm:$0xff] %v3833
                %v3835 = vld [vmem:[%s3793 + $0xa0] sm:$0xff]
                %3836 = vst [vmem:[%s3794 + $0x120] sm:$0xff] %v3835
                %v3837 = vld [vmem:[%s3793 + $0xa8] sm:$0xff]
                %3838 = vst [vmem:[%s3794 + $0x128] sm:$0xff] %v3837
                %v3839 = vld [vmem:[%s3793 + $0xb0] sm:$0xff]
                %3840 = vst [vmem:[%s3794 + $0x130] sm:$0xff] %v3839
                %v3841 = vld [vmem:[%s3793 + $0xb8] sm:$0xff]
                %3842 = vst [vmem:[%s3794 + $0x138] sm:$0xff] %v3841
                %v3843 = vld [vmem:[%s3793 + $0xc0] sm:$0xff]
                %3844 = vst [vmem:[%s3794 + $0x140] sm:$0xff] %v3843
                %v3845 = vld [vmem:[%s3793 + $0xc8] sm:$0xff]
                %3846 = vst [vmem:[%s3794 + $0x148] sm:$0xff] %v3845
                %v3847 = vld [vmem:[%s3793 + $0xd0] sm:$0xff]
                %3848 = vst [vmem:[%s3794 + $0x150] sm:$0xff] %v3847
                %v3849 = vld [vmem:[%s3793 + $0xd8] sm:$0xff]
                %3850 = vst [vmem:[%s3794 + $0x158] sm:$0xff] %v3849
                %v3851 = vld [vmem:[%s3793 + $0xe0] sm:$0xff]
                %3852 = vst [vmem:[%s3794 + $0x160] sm:$0xff] %v3851
                %v3853 = vld [vmem:[%s3793 + $0xe8] sm:$0xff]
                %3854 = vst [vmem:[%s3794 + $0x168] sm:$0xff] %v3853
                %v3855 = vld [vmem:[%s3793 + $0xf0] sm:$0xff]
                %3856 = vst [vmem:[%s3794 + $0x170] sm:$0xff] %v3855
                %v3857 = vld [vmem:[%s3793 + $0xf8] sm:$0xff]
                %3858 = vst [vmem:[%s3794 + $0x178] sm:$0xff] %v3857
                %v3859 = vld [vmem:[%s3793 + $0x100] sm:$0xff]
                %3860 = vst [vmem:[%s3794 + $0x200] sm:$0xff] %v3859
                %v3861 = vld [vmem:[%s3793 + $0x108] sm:$0xff]
                %3862 = vst [vmem:[%s3794 + $0x208] sm:$0xff] %v3861
                %v3863 = vld [vmem:[%s3793 + $0x110] sm:$0xff]
                %3864 = vst [vmem:[%s3794 + $0x210] sm:$0xff] %v3863
                %v3865 = vld [vmem:[%s3793 + $0x118] sm:$0xff]
                %3866 = vst [vmem:[%s3794 + $0x218] sm:$0xff] %v3865
                %v3867 = vld [vmem:[%s3793 + $0x120] sm:$0xff]
                %3868 = vst [vmem:[%s3794 + $0x220] sm:$0xff] %v3867
                %v3869 = vld [vmem:[%s3793 + $0x128] sm:$0xff]
                %3870 = vst [vmem:[%s3794 + $0x228] sm:$0xff] %v3869
                %v3871 = vld [vmem:[%s3793 + $0x130] sm:$0xff]
                %3872 = vst [vmem:[%s3794 + $0x230] sm:$0xff] %v3871
                %v3873 = vld [vmem:[%s3793 + $0x138] sm:$0xff]
                %3874 = vst [vmem:[%s3794 + $0x238] sm:$0xff] %v3873
                %v3875 = vld [vmem:[%s3793 + $0x140] sm:$0xff]
                %3876 = vst [vmem:[%s3794 + $0x240] sm:$0xff] %v3875
                %v3877 = vld [vmem:[%s3793 + $0x148] sm:$0xff]
                %3878 = vst [vmem:[%s3794 + $0x248] sm:$0xff] %v3877
                %v3879 = vld [vmem:[%s3793 + $0x150] sm:$0xff]
                %3880 = vst [vmem:[%s3794 + $0x250] sm:$0xff] %v3879
                %v3881 = vld [vmem:[%s3793 + $0x158] sm:$0xff]
                %3882 = vst [vmem:[%s3794 + $0x258] sm:$0xff] %v3881
                %v3883 = vld [vmem:[%s3793 + $0x160] sm:$0xff]
                %3884 = vst [vmem:[%s3794 + $0x260] sm:$0xff] %v3883
                %v3885 = vld [vmem:[%s3793 + $0x168] sm:$0xff]
                %3886 = vst [vmem:[%s3794 + $0x268] sm:$0xff] %v3885
                %v3887 = vld [vmem:[%s3793 + $0x170] sm:$0xff]
                %3888 = vst [vmem:[%s3794 + $0x270] sm:$0xff] %v3887
                %v3889 = vld [vmem:[%s3793 + $0x178] sm:$0xff]
                %3890 = vst [vmem:[%s3794 + $0x278] sm:$0xff] %v3889
                %v3891 = vld [vmem:[%s3793 + $0x180] sm:$0xff]
                %3892 = vst [vmem:[%s3794 + $0x300] sm:$0xff] %v3891
                %v3893 = vld [vmem:[%s3793 + $0x188] sm:$0xff]
                %3894 = vst [vmem:[%s3794 + $0x308] sm:$0xff] %v3893
                %v3895 = vld [vmem:[%s3793 + $0x190] sm:$0xff]
                %3896 = vst [vmem:[%s3794 + $0x310] sm:$0xff] %v3895
                %v3897 = vld [vmem:[%s3793 + $0x198] sm:$0xff]
                %3898 = vst [vmem:[%s3794 + $0x318] sm:$0xff] %v3897
                %v3899 = vld [vmem:[%s3793 + $0x1a0] sm:$0xff]
                %3900 = vst [vmem:[%s3794 + $0x320] sm:$0xff] %v3899
                %v3901 = vld [vmem:[%s3793 + $0x1a8] sm:$0xff]
                %3902 = vst [vmem:[%s3794 + $0x328] sm:$0xff] %v3901
                %v3903 = vld [vmem:[%s3793 + $0x1b0] sm:$0xff]
                %3904 = vst [vmem:[%s3794 + $0x330] sm:$0xff] %v3903
                %v3905 = vld [vmem:[%s3793 + $0x1b8] sm:$0xff]
                %3906 = vst [vmem:[%s3794 + $0x338] sm:$0xff] %v3905
                %v3907 = vld [vmem:[%s3793 + $0x1c0] sm:$0xff]
                %3908 = vst [vmem:[%s3794 + $0x340] sm:$0xff] %v3907
                %v3909 = vld [vmem:[%s3793 + $0x1c8] sm:$0xff]
                %3910 = vst [vmem:[%s3794 + $0x348] sm:$0xff] %v3909
                %v3911 = vld [vmem:[%s3793 + $0x1d0] sm:$0xff]
                %3912 = vst [vmem:[%s3794 + $0x350] sm:$0xff] %v3911
                %v3913 = vld [vmem:[%s3793 + $0x1d8] sm:$0xff]
                %3914 = vst [vmem:[%s3794 + $0x358] sm:$0xff] %v3913
                %v3915 = vld [vmem:[%s3793 + $0x1e0] sm:$0xff]
                %3916 = vst [vmem:[%s3794 + $0x360] sm:$0xff] %v3915
                %v3917 = vld [vmem:[%s3793 + $0x1e8] sm:$0xff]
                %3918 = vst [vmem:[%s3794 + $0x368] sm:$0xff] %v3917
                %v3919 = vld [vmem:[%s3793 + $0x1f0] sm:$0xff]
                %3920 = vst [vmem:[%s3794 + $0x370] sm:$0xff] %v3919
                %v3921 = vld [vmem:[%s3793 + $0x1f8] sm:$0xff]
                %3922 = vst [vmem:[%s3794 + $0x378] sm:$0xff] %v3921
              $region99: #{_lambda_.1} parent=93 // loop_footer
                %s3792 = sadd.s32 1, %s3788
              $region100: #{_lambda_.1} parent=93 // loop_footer_branch
                %3787 = sbr.rel target = $region96
              $region101: #{_lambda_.1} parent=93 // loop_exit
                _
            $region94: #{_lambda_.1} parent=89 // pred_fallthru
              _
            // Predicated region
            $region102: #{_lambda_.1} parent=89 // pred_check
              _
            $region103: #{_lambda_.1} parent=89 // pred_check_branch
              %3924 = sbr.rel target = $region105
            $region104: #{_lambda_.1} parent=89 // pred_region
              _
            $region105: #{_lambda_.1} parent=89 // pred_fallthru
              _
          $region90: #{_lambda_.1} parent=85 // pred_fallthru
            _
          %3925 = vnop
        $region86: #{_lambda_.1} parent=73 // pred_fallthru
          _
        // Predicated region
        $region106: #{_lambda_.1} parent=73 // pred_check
          %p3926 = pneg %p175
        $region107: #{_lambda_.1} parent=73 // pred_check_branch
          %3928 = sbr.rel (%p3926) target = $region109
        $region108: #{_lambda_.1} parent=73 // pred_region
          %s3929 = smul.u32 16, %s22
          %s3930 = smul.addr %s21, 128
          %s3931 = sadd.s32 %s3929, %s3930
          %s3932 = smul.addr %s3931, 8
          %s3933 = scalar_lea.vmem %s5, %s3932
          // Predicated region
          $region110: #{_lambda_.1} parent=108 // pred_check
            _
          $region111: #{_lambda_.1} parent=108 // pred_check_branch
            %3935 = sbr.rel (0) target = $region113
          $region112: #{_lambda_.1} parent=108 // pred_region
            // Predicated region
            $region114: #{_lambda_.1} parent=112 // pred_check
              _
            $region115: #{_lambda_.1} parent=112 // pred_check_branch
              %3937 = sbr.rel (0) target = $region117
            $region116: #{_lambda_.1} parent=112 // pred_region
              loop: start=0, step=1, limit=1
              $region118: #{_lambda_.1} parent=116 // loop_pre_header
                _
              $region119: #{_lambda_.1} parent=116 // loop_header
                %s3939 = sphi 0, %s3943
                %p3940 = scmp.ge.s32.totalorder %s3939, 1
                %s3944 = sphi %s3774, %s3774
                %s3945 = sphi %s3933, %s3933
              $region120: #{_lambda_.1} parent=116 // loop_header_branch
                %3942 = sbr.rel (%p3940) target = $region124
              $region121: #{_lambda_.1} parent=116 // loop_body
                %v3946 = vld [vmem:[%s3944] sm:$0xff]
                %3947 = vst [vmem:[%s3945] sm:$0xff] %v3946
                %v3948 = vld [vmem:[%s3944 + $0x8] sm:$0xff]
                %3949 = vst [vmem:[%s3945 + $0x8] sm:$0xff] %v3948
                %v3950 = vld [vmem:[%s3944 + $0x10] sm:$0xff]
                %3951 = vst [vmem:[%s3945 + $0x10] sm:$0xff] %v3950
                %v3952 = vld [vmem:[%s3944 + $0x18] sm:$0xff]
                %3953 = vst [vmem:[%s3945 + $0x18] sm:$0xff] %v3952
                %v3954 = vld [vmem:[%s3944 + $0x20] sm:$0xff]
                %3955 = vst [vmem:[%s3945 + $0x20] sm:$0xff] %v3954
                %v3956 = vld [vmem:[%s3944 + $0x28] sm:$0xff]
                %3957 = vst [vmem:[%s3945 + $0x28] sm:$0xff] %v3956
                %v3958 = vld [vmem:[%s3944 + $0x30] sm:$0xff]
                %3959 = vst [vmem:[%s3945 + $0x30] sm:$0xff] %v3958
                %v3960 = vld [vmem:[%s3944 + $0x38] sm:$0xff]
                %3961 = vst [vmem:[%s3945 + $0x38] sm:$0xff] %v3960
                %v3962 = vld [vmem:[%s3944 + $0x40] sm:$0xff]
                %3963 = vst [vmem:[%s3945 + $0x40] sm:$0xff] %v3962
                %v3964 = vld [vmem:[%s3944 + $0x48] sm:$0xff]
                %3965 = vst [vmem:[%s3945 + $0x48] sm:$0xff] %v3964
                %v3966 = vld [vmem:[%s3944 + $0x50] sm:$0xff]
                %3967 = vst [vmem:[%s3945 + $0x50] sm:$0xff] %v3966
                %v3968 = vld [vmem:[%s3944 + $0x58] sm:$0xff]
                %3969 = vst [vmem:[%s3945 + $0x58] sm:$0xff] %v3968
                %v3970 = vld [vmem:[%s3944 + $0x60] sm:$0xff]
                %3971 = vst [vmem:[%s3945 + $0x60] sm:$0xff] %v3970
                %v3972 = vld [vmem:[%s3944 + $0x68] sm:$0xff]
                %3973 = vst [vmem:[%s3945 + $0x68] sm:$0xff] %v3972
                %v3974 = vld [vmem:[%s3944 + $0x70] sm:$0xff]
                %3975 = vst [vmem:[%s3945 + $0x70] sm:$0xff] %v3974
                %v3976 = vld [vmem:[%s3944 + $0x78] sm:$0xff]
                %3977 = vst [vmem:[%s3945 + $0x78] sm:$0xff] %v3976
                %v3978 = vld [vmem:[%s3944 + $0x80] sm:$0xff]
                %3979 = vst [vmem:[%s3945 + $0x100] sm:$0xff] %v3978
                %v3980 = vld [vmem:[%s3944 + $0x88] sm:$0xff]
                %3981 = vst [vmem:[%s3945 + $0x108] sm:$0xff] %v3980
                %v3982 = vld [vmem:[%s3944 + $0x90] sm:$0xff]
                %3983 = vst [vmem:[%s3945 + $0x110] sm:$0xff] %v3982
                %v3984 = vld [vmem:[%s3944 + $0x98] sm:$0xff]
                %3985 = vst [vmem:[%s3945 + $0x118] sm:$0xff] %v3984
                %v3986 = vld [vmem:[%s3944 + $0xa0] sm:$0xff]
                %3987 = vst [vmem:[%s3945 + $0x120] sm:$0xff] %v3986
                %v3988 = vld [vmem:[%s3944 + $0xa8] sm:$0xff]
                %3989 = vst [vmem:[%s3945 + $0x128] sm:$0xff] %v3988
                %v3990 = vld [vmem:[%s3944 + $0xb0] sm:$0xff]
                %3991 = vst [vmem:[%s3945 + $0x130] sm:$0xff] %v3990
                %v3992 = vld [vmem:[%s3944 + $0xb8] sm:$0xff]
                %3993 = vst [vmem:[%s3945 + $0x138] sm:$0xff] %v3992
                %v3994 = vld [vmem:[%s3944 + $0xc0] sm:$0xff]
                %3995 = vst [vmem:[%s3945 + $0x140] sm:$0xff] %v3994
                %v3996 = vld [vmem:[%s3944 + $0xc8] sm:$0xff]
                %3997 = vst [vmem:[%s3945 + $0x148] sm:$0xff] %v3996
                %v3998 = vld [vmem:[%s3944 + $0xd0] sm:$0xff]
                %3999 = vst [vmem:[%s3945 + $0x150] sm:$0xff] %v3998
                %v4000 = vld [vmem:[%s3944 + $0xd8] sm:$0xff]
                %4001 = vst [vmem:[%s3945 + $0x158] sm:$0xff] %v4000
                %v4002 = vld [vmem:[%s3944 + $0xe0] sm:$0xff]
                %4003 = vst [vmem:[%s3945 + $0x160] sm:$0xff] %v4002
                %v4004 = vld [vmem:[%s3944 + $0xe8] sm:$0xff]
                %4005 = vst [vmem:[%s3945 + $0x168] sm:$0xff] %v4004
                %v4006 = vld [vmem:[%s3944 + $0xf0] sm:$0xff]
                %4007 = vst [vmem:[%s3945 + $0x170] sm:$0xff] %v4006
                %v4008 = vld [vmem:[%s3944 + $0xf8] sm:$0xff]
                %4009 = vst [vmem:[%s3945 + $0x178] sm:$0xff] %v4008
                %v4010 = vld [vmem:[%s3944 + $0x100] sm:$0xff]
                %4011 = vst [vmem:[%s3945 + $0x200] sm:$0xff] %v4010
                %v4012 = vld [vmem:[%s3944 + $0x108] sm:$0xff]
                %4013 = vst [vmem:[%s3945 + $0x208] sm:$0xff] %v4012
                %v4014 = vld [vmem:[%s3944 + $0x110] sm:$0xff]
                %4015 = vst [vmem:[%s3945 + $0x210] sm:$0xff] %v4014
                %v4016 = vld [vmem:[%s3944 + $0x118] sm:$0xff]
                %4017 = vst [vmem:[%s3945 + $0x218] sm:$0xff] %v4016
                %v4018 = vld [vmem:[%s3944 + $0x120] sm:$0xff]
                %4019 = vst [vmem:[%s3945 + $0x220] sm:$0xff] %v4018
                %v4020 = vld [vmem:[%s3944 + $0x128] sm:$0xff]
                %4021 = vst [vmem:[%s3945 + $0x228] sm:$0xff] %v4020
                %v4022 = vld [vmem:[%s3944 + $0x130] sm:$0xff]
                %4023 = vst [vmem:[%s3945 + $0x230] sm:$0xff] %v4022
                %v4024 = vld [vmem:[%s3944 + $0x138] sm:$0xff]
                %4025 = vst [vmem:[%s3945 + $0x238] sm:$0xff] %v4024
                %v4026 = vld [vmem:[%s3944 + $0x140] sm:$0xff]
                %4027 = vst [vmem:[%s3945 + $0x240] sm:$0xff] %v4026
                %v4028 = vld [vmem:[%s3944 + $0x148] sm:$0xff]
                %4029 = vst [vmem:[%s3945 + $0x248] sm:$0xff] %v4028
                %v4030 = vld [vmem:[%s3944 + $0x150] sm:$0xff]
                %4031 = vst [vmem:[%s3945 + $0x250] sm:$0xff] %v4030
                %v4032 = vld [vmem:[%s3944 + $0x158] sm:$0xff]
                %4033 = vst [vmem:[%s3945 + $0x258] sm:$0xff] %v4032
                %v4034 = vld [vmem:[%s3944 + $0x160] sm:$0xff]
                %4035 = vst [vmem:[%s3945 + $0x260] sm:$0xff] %v4034
                %v4036 = vld [vmem:[%s3944 + $0x168] sm:$0xff]
                %4037 = vst [vmem:[%s3945 + $0x268] sm:$0xff] %v4036
                %v4038 = vld [vmem:[%s3944 + $0x170] sm:$0xff]
                %4039 = vst [vmem:[%s3945 + $0x270] sm:$0xff] %v4038
                %v4040 = vld [vmem:[%s3944 + $0x178] sm:$0xff]
                %4041 = vst [vmem:[%s3945 + $0x278] sm:$0xff] %v4040
                %v4042 = vld [vmem:[%s3944 + $0x180] sm:$0xff]
                %4043 = vst [vmem:[%s3945 + $0x300] sm:$0xff] %v4042
                %v4044 = vld [vmem:[%s3944 + $0x188] sm:$0xff]
                %4045 = vst [vmem:[%s3945 + $0x308] sm:$0xff] %v4044
                %v4046 = vld [vmem:[%s3944 + $0x190] sm:$0xff]
                %4047 = vst [vmem:[%s3945 + $0x310] sm:$0xff] %v4046
                %v4048 = vld [vmem:[%s3944 + $0x198] sm:$0xff]
                %4049 = vst [vmem:[%s3945 + $0x318] sm:$0xff] %v4048
                %v4050 = vld [vmem:[%s3944 + $0x1a0] sm:$0xff]
                %4051 = vst [vmem:[%s3945 + $0x320] sm:$0xff] %v4050
                %v4052 = vld [vmem:[%s3944 + $0x1a8] sm:$0xff]
                %4053 = vst [vmem:[%s3945 + $0x328] sm:$0xff] %v4052
                %v4054 = vld [vmem:[%s3944 + $0x1b0] sm:$0xff]
                %4055 = vst [vmem:[%s3945 + $0x330] sm:$0xff] %v4054
                %v4056 = vld [vmem:[%s3944 + $0x1b8] sm:$0xff]
                %4057 = vst [vmem:[%s3945 + $0x338] sm:$0xff] %v4056
                %v4058 = vld [vmem:[%s3944 + $0x1c0] sm:$0xff]
                %4059 = vst [vmem:[%s3945 + $0x340] sm:$0xff] %v4058
                %v4060 = vld [vmem:[%s3944 + $0x1c8] sm:$0xff]
                %4061 = vst [vmem:[%s3945 + $0x348] sm:$0xff] %v4060
                %v4062 = vld [vmem:[%s3944 + $0x1d0] sm:$0xff]
                %4063 = vst [vmem:[%s3945 + $0x350] sm:$0xff] %v4062
                %v4064 = vld [vmem:[%s3944 + $0x1d8] sm:$0xff]
                %4065 = vst [vmem:[%s3945 + $0x358] sm:$0xff] %v4064
                %v4066 = vld [vmem:[%s3944 + $0x1e0] sm:$0xff]
                %4067 = vst [vmem:[%s3945 + $0x360] sm:$0xff] %v4066
                %v4068 = vld [vmem:[%s3944 + $0x1e8] sm:$0xff]
                %4069 = vst [vmem:[%s3945 + $0x368] sm:$0xff] %v4068
                %v4070 = vld [vmem:[%s3944 + $0x1f0] sm:$0xff]
                %4071 = vst [vmem:[%s3945 + $0x370] sm:$0xff] %v4070
                %v4072 = vld [vmem:[%s3944 + $0x1f8] sm:$0xff]
                %4073 = vst [vmem:[%s3945 + $0x378] sm:$0xff] %v4072
              $region122: #{_lambda_.1} parent=116 // loop_footer
                %s3943 = sadd.s32 1, %s3939
              $region123: #{_lambda_.1} parent=116 // loop_footer_branch
                %3938 = sbr.rel target = $region119
              $region124: #{_lambda_.1} parent=116 // loop_exit
                _
            $region117: #{_lambda_.1} parent=112 // pred_fallthru
              _
            // Predicated region
            $region125: #{_lambda_.1} parent=112 // pred_check
              _
            $region126: #{_lambda_.1} parent=112 // pred_check_branch
              %4075 = sbr.rel target = $region128
            $region127: #{_lambda_.1} parent=112 // pred_region
              _
            $region128: #{_lambda_.1} parent=112 // pred_fallthru
              _
          $region113: #{_lambda_.1} parent=108 // pred_fallthru
            _
          %4076 = vnop
        $region109: #{_lambda_.1} parent=73 // pred_fallthru
          _
      $region74: #{_lambda_.1} parent=5 // pred_fallthru
        _
      %p4077 = scmp.le.s32.totalorder 2, %s12
      // Predicated region
      $region129: #{_lambda_.1} parent=5 // pred_check
        %p4078 = pneg %p4077
      $region130: #{_lambda_.1} parent=5 // pred_check_branch
        %4080 = sbr.rel (%p4078) target = $region132
      $region131: #{_lambda_.1} parent=5 // pred_region
        %s4081 = ssub.s32 %s12, 2
        // Predicated region
        $region133: #{_lambda_.1} parent=131 // pred_check
          %p4082 = pneg %p153
        $region134: #{_lambda_.1} parent=131 // pred_check_branch
          %4084 = sbr.rel (%p4082) target = $region136
        $region135: #{_lambda_.1} parent=131 // pred_region
          %s4085 = sand.u32 %s138, 1
          %s4086 = sand.u32 %s138, 1
          %s4087 = smul.addr %s4086, 512
          %s4088 = scalar_lea.vmem [#allocation4], %s4087
        $region136: #{_lambda_.1} parent=131 // pred_fallthru
          _
        // Predicated region
        $region137: #{_lambda_.1} parent=131 // pred_check
          %p4089 = pneg %p181
        $region138: #{_lambda_.1} parent=131 // pred_check_branch
          %4091 = sbr.rel (%p4089) target = $region140
        $region139: #{_lambda_.1} parent=131 // pred_region
          %s4092 = sand.u32 %s166, 1
          %s4093 = sand.u32 %s166, 1
          %s4094 = smul.addr %s4093, 512
          %s4095 = scalar_lea.vmem [#allocation5], %s4094
        $region140: #{_lambda_.1} parent=131 // pred_fallthru
          _
      $region132: #{_lambda_.1} parent=5 // pred_fallthru
        _
    $region6: #{_lambda_.1} parent=1 // loop_footer
      %s16 = sadd.s32 1, %s12
    $region7: #{_lambda_.1} parent=1 // loop_footer_branch
      %11 = sbr.rel target = $region3
    $region8: #{_lambda_.1} parent=1 // loop_exit
      _

</llo_original>
